<compile_context>
chip_gen: v6e
topology: v6e:2x2x1
jax: 0.10.0
libtpu: 0.0.40
codegen_flags: <defaults>
</compile_context>

<pallas_src>
import functools

import jax
import jax.numpy as jnp
from jax import lax
from jax.experimental import pallas as pl
from jax.experimental.pallas import tpu as pltpu


def _attention_kernel(x_ref, pol_ref, polr_ref, wqkv_ref, wproj_ref, bproj_ref,
                      o_ref, *, num_heads, head_dim, scale, eps, n_real,
                      mxu_dtype, approx_recip):
    x = x_ref[0]              # (Np, C)  f32
    pol = pol_ref[0]          # (Np, 1)  f32
    pol_row = polr_ref[0]     # (1, Np)  f32  (transposed host-side)
    n_pad = x.shape[0]
    c = num_heads * head_dim

    # Policy applied once to the input (per-row scalar -> identical to masking
    # q, k, v after the projection because the QKV linear has no bias).
    xm = x * pol                                                   # (Np, C)

    # Fused QKV projection: (Np, C) @ (C, 3C), bf16 operands, f32 accumulation.
    qkv = jnp.dot(xm.astype(mxu_dtype), wqkv_ref[...],
                  preferred_element_type=jnp.float32)              # (Np, 3C)

    # softmax_with_policy mask, built once per batch step (shared by all heads):
    #   attn_policy = 1 on the diagonal, policy[j] off-diagonal.
    row = lax.broadcasted_iota(jnp.int32, (n_pad, n_pad), 0)
    col = lax.broadcasted_iota(jnp.int32, (n_pad, n_pad), 1)
    attn_policy = jnp.where(row == col, jnp.float32(1.0), pol_row)  # (Np, Np)

    # Padded key columns must never win the row max (the eps-softmax is not
    # shift-invariant), so bias them to -1e9 before the max; exp() then makes
    # them exactly 0.  Real columns get a 0 bias.
    col1 = lax.broadcasted_iota(jnp.int32, (1, n_pad), 1)
    score_bias = jnp.where(col1 < n_real, jnp.float32(0.0), jnp.float32(-1e9))

    eps_over_n = jnp.float32(eps / n_real)

    outs = []
    for h in range(num_heads):
        lo = h * head_dim
        hi = lo + head_dim
        q_h = qkv[:, lo:hi].astype(mxu_dtype)                  # (Np, Dh)
        k_h = qkv[:, c + lo:c + hi].astype(mxu_dtype)          # (Np, Dh)
        v_h = qkv[:, 2 * c + lo:2 * c + hi].astype(mxu_dtype)  # (Np, Dh)

        # q @ k^T without materializing a transpose (contract the last dims).
        attn = lax.dot_general(
            q_h, k_h, (((1,), (1,)), ((), ())),
            preferred_element_type=jnp.float32) * scale            # (Np, Np)
        attn = attn + score_bias

        max_att = jnp.max(attn, axis=-1, keepdims=True)
        p = jnp.exp(attn - max_att) * attn_policy
        inv = pl.reciprocal(jnp.sum(p, axis=-1, keepdims=True) + eps,
                            approx=approx_recip)
        attn_n = (p + eps_over_n) * inv

        outs.append(jnp.dot(attn_n.astype(mxu_dtype), v_h,
                            preferred_element_type=jnp.float32))   # (Np, Dh)

    # Keep the per-head concat as a value -- no scratch round-trip, no masked
    # partial stores; one full-depth (Np, C) @ (C, C) output projection.
    xcat = jnp.concatenate(outs, axis=1)                           # (Np, C)

    y = jnp.dot(xcat.astype(mxu_dtype), wproj_ref[...],
                preferred_element_type=jnp.float32)
    y = (y + bproj_ref[...]) * pol
    o_ref[0] = y.astype(o_ref.dtype)


def attention_pallas(x, policy, w_qkv, w_proj, b_proj, num_heads, eps=1e-6,
                     use_bf16_mxu=True):
    B, N, C = x.shape
    Dh = C // num_heads
    scale = Dh ** (-0.5)
    mxu_dtype = jnp.bfloat16 if use_bf16_mxu else jnp.float32

    # Pad the token axis to a multiple of 128 so the whole N^2 softmax path is
    # lane-dense.  Padded rows/cols carry policy = 0 and zero activations; the
    # in-kernel score_bias keeps the row max over real columns, so kept rows
    # match the unpadded reference; the wrapper slices padded rows off.
    n_pad = ((N + 127) // 128) * 128
    if n_pad != N:
        x = jnp.pad(x, ((0, 0), (0, n_pad - N), (0, 0)))
        policy = jnp.pad(policy, ((0, 0), (0, n_pad - N), (0, 0)))
    policy_row = jnp.transpose(policy, (0, 2, 1))          # (B, 1, Np), once in XLA

    # nn.Linear weight is (out, in): y = x @ W^T.  Cast to the MXU input dtype
    # host-side so resident VMEM weight copies shrink on the bf16 path.
    wqkv_t = jnp.transpose(w_qkv).astype(mxu_dtype)        # (C, 3C), [3, H, Dh] cols
    wproj_t = jnp.transpose(w_proj).astype(mxu_dtype)      # (C, C)
    bproj = b_proj.reshape(1, C).astype(jnp.float32)

    kernel = functools.partial(
        _attention_kernel, num_heads=num_heads, head_dim=Dh, scale=scale,
        eps=eps, n_real=N, mxu_dtype=mxu_dtype, approx_recip=use_bf16_mxu)

    out = pl.pallas_call(
        kernel,
        out_shape=jax.ShapeDtypeStruct((B, n_pad, C), jnp.float32),
        grid_spec=pltpu.PrefetchScalarGridSpec(
            num_scalar_prefetch=0,
            grid=(B,),
            in_specs=[
                pl.BlockSpec((1, n_pad, C), lambda b: (b, 0, 0)),   # x
                pl.BlockSpec((1, n_pad, 1), lambda b: (b, 0, 0)),   # policy column
                pl.BlockSpec((1, 1, n_pad), lambda b: (b, 0, 0)),   # policy row
                pl.BlockSpec((C, 3 * C), lambda b: (0, 0)),         # qkv W (resident)
                pl.BlockSpec((C, C), lambda b: (0, 0)),             # proj W (resident)
                pl.BlockSpec((1, C), lambda b: (0, 0)),             # proj bias
            ],
            out_specs=pl.BlockSpec((1, n_pad, C), lambda b: (b, 0, 0)),
        ),
        compiler_params=pltpu.CompilerParams(
            dimension_semantics=("parallel",)),
    )(x, policy, policy_row, wqkv_t, wproj_t, bproj)

    return out[:, :N, :]


def attention_reference(x, policy, w_qkv, w_proj, b_proj, num_heads, eps=1e-6):
    """Pure-JAX replica of the PyTorch forward (full-precision matmuls)."""
    B, N, C = x.shape
    Dh = C // num_heads
    scale = Dh ** (-0.5)
    hp = lax.Precision.HIGHEST
    qkv = jnp.einsum("bnc,oc->bno", x, w_qkv,
                     precision=hp).reshape(B, N, 3, num_heads, Dh)
    qkv = jnp.transpose(qkv, (2, 0, 3, 1, 4))              # (3, B, H, N, Dh)
    qkv = qkv * policy[None, :, None, :, :]                # policy (B, N, 1)
    q, k, v = qkv[0], qkv[1], qkv[2]
    attn = jnp.einsum("bhnd,bhmd->bhnm", q, k, precision=hp) * scale
    attn_policy = policy.reshape(B, 1, 1, N)
    eye = jnp.eye(N, dtype=attn_policy.dtype).reshape(1, 1, N, N)
    attn_policy = attn_policy + (1.0 - attn_policy) * eye
    max_att = jnp.max(attn, axis=-1, keepdims=True)
    attn = jnp.exp(attn - max_att) * attn_policy
    attn = (attn + eps / N) / (jnp.sum(attn, axis=-1, keepdims=True) + eps)
    out = jnp.einsum("bhnm,bhmd->bhnd", attn, v, precision=hp)
    out = jnp.transpose(out, (0, 2, 1, 3)).reshape(B, N, C)
    out = jnp.einsum("bnc,oc->bno", out, w_proj, precision=hp) + b_proj
    return out * policy


if __name__ == "__main__":
    B, C, H = 2, 128, 4
    key = jax.random.PRNGKey(0)
    kx1, kx2, kqkv, kproj, kbias = jax.random.split(key, 5)

    # Module parameters: qkv (3C, C) no bias; proj (C, C) + bias.
    w_qkv = jax.random.normal(kqkv, (3 * C, C), dtype=jnp.float32) * 0.05
    w_proj = jax.random.normal(kproj, (C, C), dtype=jnp.float32) * 0.05
    b_proj = jax.random.normal(kbias, (C,), dtype=jnp.float32) * 0.02

    # Case 1: exact-math path (f32 MXU, exact reciprocal), tight tolerance.
    # Exercises the ragged pad-to-128 path and the padded-column max fix.
    N1 = 10
    x1 = jax.random.normal(kx1, (B, N1, C), dtype=jnp.float32)
    tok1 = jnp.arange(N1)
    pol1 = jnp.stack([(tok1 < 7).astype(jnp.float32),
                      (tok1 < 9).astype(jnp.float32)]).reshape(B, N1, 1)
    out1 = jax.block_until_ready(
        attention_pallas(x1, pol1, w_qkv, w_proj, b_proj, H, use_bf16_mxu=False))
    ref1 = attention_reference(x1, pol1, w_qkv, w_proj, b_proj, H)
    assert out1.shape == (B, N1, C)
    assert jnp.allclose(out1, ref1, rtol=1e-4, atol=1e-4), \
        "mismatch vs reference (f32 path)"

    # Case 2: performance path (bf16 MXU operands + f32 accumulation, approx
    # reciprocal), tolerance appropriate for bf16 inputs.
    N2 = 24
    x2 = jax.random.normal(kx2, (B, N2, C), dtype=jnp.float32)
    tok2 = jnp.arange(N2)
    pol2 = jnp.stack([(tok2 < 20).astype(jnp.float32),
                      (tok2 < 13).astype(jnp.float32)]).reshape(B, N2, 1)
    out2 = jax.block_until_ready(
        attention_pallas(x2, pol2, w_qkv, w_proj, b_proj, H))
    ref2 = attention_reference(x2, pol2, w_qkv, w_proj, b_proj, H)
    assert out2.shape == (B, N2, C)
    max_err = float(jnp.max(jnp.abs(out2 - ref2)))
    assert jnp.allclose(out2, ref2, rtol=5e-2, atol=5e-2), \
        f"mismatch vs reference (bf16 path), max_err={max_err}"

    print("KERNEL_OK")
</pallas_src>

<mosaic_0001>
module attributes {stable_mosaic.version = 11 : i64} {
  func.func @_attention_kernel(%arg0: i32, %arg1: memref<1x128x128xf32, #tpu.memory_space<vmem>>, %arg2: memref<1x128x1xf32, #tpu.memory_space<vmem>>, %arg3: memref<1x1x128xf32, #tpu.memory_space<vmem>>, %arg4: memref<128x384xf32, #tpu.memory_space<vmem>>, %arg5: memref<128x128xf32, #tpu.memory_space<vmem>>, %arg6: memref<1x128xf32, #tpu.memory_space<vmem>>, %arg7: memref<1x128x128xf32, #tpu.memory_space<vmem>>) attributes {dimension_semantics = [#tpu.dimension_semantics<parallel>], iteration_bounds = array<i64: 2>, scalar_prefetch = 0 : i64, scratch_operands = 0 : i64, tpu.core_type = #tpu.core_type<tc>, window_params = [{transform_indices = @transform_0, window_bounds = array<i64: 1, 128, 128>}, {transform_indices = @transform_1, window_bounds = array<i64: 1, 128, 1>}, {transform_indices = @transform_2, window_bounds = array<i64: 1, 1, 128>}, {pipeline_mode = #tpu.pipeline_mode<synchronous>, transform_indices = @transform_3, window_bounds = array<i64: 128, 384>}, {pipeline_mode = #tpu.pipeline_mode<synchronous>, transform_indices = @transform_4, window_bounds = array<i64: 128, 128>}, {pipeline_mode = #tpu.pipeline_mode<synchronous>, transform_indices = @transform_5, window_bounds = array<i64: 1, 128>}, {transform_indices = @transform_6, window_bounds = array<i64: 1, 128, 128>}]} {
    %c0 = arith.constant 0 : index
    %c0_0 = arith.constant 0 : index
    %c0_1 = arith.constant 0 : index
    %0 = vector.load %arg1[%c0, %c0_0, %c0_1] : memref<1x128x128xf32, #tpu.memory_space<vmem>>, vector<1x128x128xf32>
    %1 = vector.shape_cast %0 : vector<1x128x128xf32> to vector<128x128xf32>
    %c0_2 = arith.constant 0 : index
    %c0_3 = arith.constant 0 : index
    %c0_4 = arith.constant 0 : index
    %2 = vector.load %arg2[%c0_2, %c0_3, %c0_4] : memref<1x128x1xf32, #tpu.memory_space<vmem>>, vector<1x128x1xf32>
    %3 = vector.shape_cast %2 : vector<1x128x1xf32> to vector<128x1xf32>
    %c0_5 = arith.constant 0 : index
    %c0_6 = arith.constant 0 : index
    %c0_7 = arith.constant 0 : index
    %4 = vector.load %arg3[%c0_5, %c0_6, %c0_7] : memref<1x1x128xf32, #tpu.memory_space<vmem>>, vector<1x1x128xf32>
    %5 = vector.shape_cast %4 : vector<1x1x128xf32> to vector<1x128xf32>
    %6 = vector.broadcast %3 : vector<128x1xf32> to vector<128x128xf32>
    %7 = arith.mulf %1, %6 : vector<128x128xf32>
    %c0_8 = arith.constant 0 : index
    %c0_9 = arith.constant 0 : index
    %8 = vector.load %arg4[%c0_8, %c0_9] : memref<128x384xf32, #tpu.memory_space<vmem>>, vector<128x384xf32>
    %cst = arith.constant dense<0.000000e+00> : vector<128x384xf32>
    %9 = tpu.matmul %7, %8, %cst {dimension_numbers = #tpu.dot_dimension_numbers<[1], [0], [0], [1], [0, 0, 1, 1], [], []>} : vector<128x128xf32>, vector<128x384xf32>, vector<128x384xf32> -> vector<128x384xf32>
    %10 = tpu.iota {dimensions = array<i32: 0>} : vector<128x128xi32>
    %11 = tpu.iota {dimensions = array<i32: 1>} : vector<128x128xi32>
    %12 = arith.cmpi eq, %10, %11 : vector<128x128xi32>
    %cst_10 = arith.constant 1.000000e+00 : f32
    %13 = vector.broadcast %cst_10 : f32 to vector<128x128xf32>
    %14 = vector.shape_cast %5 : vector<1x128xf32> to vector<1x128xf32>
    %15 = vector.broadcast %14 : vector<1x128xf32> to vector<128x128xf32>
    %16 = arith.select %12, %13, %15 : vector<128x128xi1>, vector<128x128xf32>
    %17 = tpu.iota {dimensions = array<i32: 1>} : vector<1x128xi32>
    %c10_i32 = arith.constant 10 : i32
    %18 = vector.broadcast %c10_i32 : i32 to vector<1x128xi32>
    %19 = arith.cmpi slt, %17, %18 : vector<1x128xi32>
    %cst_11 = arith.constant 0.000000e+00 : f32
    %cst_12 = arith.constant -1.000000e+09 : f32
    %20 = vector.broadcast %cst_11 : f32 to vector<1x128xf32>
    %21 = vector.broadcast %cst_12 : f32 to vector<1x128xf32>
    %22 = arith.select %19, %20, %21 : vector<1x128xi1>, vector<1x128xf32>
    %23 = vector.extract_strided_slice %9 {offsets = [0, 0], sizes = [128, 32], strides = [1, 1]} : vector<128x384xf32> to vector<128x32xf32>
    %24 = vector.extract_strided_slice %9 {offsets = [0, 128], sizes = [128, 32], strides = [1, 1]} : vector<128x384xf32> to vector<128x32xf32>
    %25 = vector.extract_strided_slice %9 {offsets = [0, 256], sizes = [128, 32], strides = [1, 1]} : vector<128x384xf32> to vector<128x32xf32>
    %cst_13 = arith.constant dense<0.000000e+00> : vector<128x128xf32>
    %26 = tpu.matmul %23, %24, %cst_13 {dimension_numbers = #tpu.dot_dimension_numbers<[1], [1], [0], [0], [0, 0, 1, 0], [], []>} : vector<128x32xf32>, vector<128x32xf32>, vector<128x128xf32> -> vector<128x128xf32>
    %cst_14 = arith.constant 0.176776692 : f32
    %27 = vector.broadcast %cst_14 : f32 to vector<128x128xf32>
    %28 = arith.mulf %26, %27 : vector<128x128xf32>
    %29 = vector.broadcast %22 : vector<1x128xf32> to vector<128x128xf32>
    %30 = arith.addf %28, %29 : vector<128x128xf32>
    %cst_15 = arith.constant dense<0xFF800000> : vector<128xf32>
    %31 = vector.multi_reduction <maximumf>, %30, %cst_15 [1] : vector<128x128xf32> to vector<128xf32>
    %32 = vector.shape_cast %31 : vector<128xf32> to vector<128x1xf32>
    %33 = vector.broadcast %32 : vector<128x1xf32> to vector<128x128xf32>
    %34 = arith.subf %30, %33 : vector<128x128xf32>
    %35 = math.exp %34 : vector<128x128xf32>
    %36 = arith.mulf %35, %16 : vector<128x128xf32>
    %cst_16 = arith.constant dense<0.000000e+00> : vector<128xf32>
    %37 = vector.multi_reduction <add>, %36, %cst_16 [1] : vector<128x128xf32> to vector<128xf32>
    %38 = vector.shape_cast %37 : vector<128xf32> to vector<128x1xf32>
    %cst_17 = arith.constant 9.99999997E-7 : f32
    %39 = vector.broadcast %cst_17 : f32 to vector<128x1xf32>
    %40 = arith.addf %38, %39 : vector<128x1xf32>
    %41 = tpu.reciprocal %40 : vector<128x1xf32> -> vector<128x1xf32>
    %cst_18 = arith.constant 1.000000e-07 : f32
    %42 = vector.broadcast %cst_18 : f32 to vector<128x128xf32>
    %43 = arith.addf %36, %42 : vector<128x128xf32>
    %44 = vector.broadcast %41 : vector<128x1xf32> to vector<128x128xf32>
    %45 = arith.mulf %43, %44 : vector<128x128xf32>
    %cst_19 = arith.constant dense<0.000000e+00> : vector<128x32xf32>
    %46 = tpu.matmul %45, %25, %cst_19 {dimension_numbers = #tpu.dot_dimension_numbers<[1], [0], [0], [1], [0, 0, 1, 1], [], []>} : vector<128x128xf32>, vector<128x32xf32>, vector<128x32xf32> -> vector<128x32xf32>
    %47 = vector.extract_strided_slice %9 {offsets = [0, 32], sizes = [128, 32], strides = [1, 1]} : vector<128x384xf32> to vector<128x32xf32>
    %48 = vector.extract_strided_slice %9 {offsets = [0, 160], sizes = [128, 32], strides = [1, 1]} : vector<128x384xf32> to vector<128x32xf32>
    %49 = vector.extract_strided_slice %9 {offsets = [0, 288], sizes = [128, 32], strides = [1, 1]} : vector<128x384xf32> to vector<128x32xf32>
    %cst_20 = arith.constant dense<0.000000e+00> : vector<128x128xf32>
    %50 = tpu.matmul %47, %48, %cst_20 {dimension_numbers = #tpu.dot_dimension_numbers<[1], [1], [0], [0], [0, 0, 1, 0], [], []>} : vector<128x32xf32>, vector<128x32xf32>, vector<128x128xf32> -> vector<128x128xf32>
    %cst_21 = arith.constant 0.176776692 : f32
    %51 = vector.broadcast %cst_21 : f32 to vector<128x128xf32>
    %52 = arith.mulf %50, %51 : vector<128x128xf32>
    %53 = vector.broadcast %22 : vector<1x128xf32> to vector<128x128xf32>
    %54 = arith.addf %52, %53 : vector<128x128xf32>
    %cst_22 = arith.constant dense<0xFF800000> : vector<128xf32>
    %55 = vector.multi_reduction <maximumf>, %54, %cst_22 [1] : vector<128x128xf32> to vector<128xf32>
    %56 = vector.shape_cast %55 : vector<128xf32> to vector<128x1xf32>
    %57 = vector.broadcast %56 : vector<128x1xf32> to vector<128x128xf32>
    %58 = arith.subf %54, %57 : vector<128x128xf32>
    %59 = math.exp %58 : vector<128x128xf32>
    %60 = arith.mulf %59, %16 : vector<128x128xf32>
    %cst_23 = arith.constant dense<0.000000e+00> : vector<128xf32>
    %61 = vector.multi_reduction <add>, %60, %cst_23 [1] : vector<128x128xf32> to vector<128xf32>
    %62 = vector.shape_cast %61 : vector<128xf32> to vector<128x1xf32>
    %cst_24 = arith.constant 9.99999997E-7 : f32
    %63 = vector.broadcast %cst_24 : f32 to vector<128x1xf32>
    %64 = arith.addf %62, %63 : vector<128x1xf32>
    %65 = tpu.reciprocal %64 : vector<128x1xf32> -> vector<128x1xf32>
    %cst_25 = arith.constant 1.000000e-07 : f32
    %66 = vector.broadcast %cst_25 : f32 to vector<128x128xf32>
    %67 = arith.addf %60, %66 : vector<128x128xf32>
    %68 = vector.broadcast %65 : vector<128x1xf32> to vector<128x128xf32>
    %69 = arith.mulf %67, %68 : vector<128x128xf32>
    %cst_26 = arith.constant dense<0.000000e+00> : vector<128x32xf32>
    %70 = tpu.matmul %69, %49, %cst_26 {dimension_numbers = #tpu.dot_dimension_numbers<[1], [0], [0], [1], [0, 0, 1, 1], [], []>} : vector<128x128xf32>, vector<128x32xf32>, vector<128x32xf32> -> vector<128x32xf32>
    %71 = vector.extract_strided_slice %9 {offsets = [0, 64], sizes = [128, 32], strides = [1, 1]} : vector<128x384xf32> to vector<128x32xf32>
    %72 = vector.extract_strided_slice %9 {offsets = [0, 192], sizes = [128, 32], strides = [1, 1]} : vector<128x384xf32> to vector<128x32xf32>
    %73 = vector.extract_strided_slice %9 {offsets = [0, 320], sizes = [128, 32], strides = [1, 1]} : vector<128x384xf32> to vector<128x32xf32>
    %cst_27 = arith.constant dense<0.000000e+00> : vector<128x128xf32>
    %74 = tpu.matmul %71, %72, %cst_27 {dimension_numbers = #tpu.dot_dimension_numbers<[1], [1], [0], [0], [0, 0, 1, 0], [], []>} : vector<128x32xf32>, vector<128x32xf32>, vector<128x128xf32> -> vector<128x128xf32>
    %cst_28 = arith.constant 0.176776692 : f32
    %75 = vector.broadcast %cst_28 : f32 to vector<128x128xf32>
    %76 = arith.mulf %74, %75 : vector<128x128xf32>
    %77 = vector.broadcast %22 : vector<1x128xf32> to vector<128x128xf32>
    %78 = arith.addf %76, %77 : vector<128x128xf32>
    %cst_29 = arith.constant dense<0xFF800000> : vector<128xf32>
    %79 = vector.multi_reduction <maximumf>, %78, %cst_29 [1] : vector<128x128xf32> to vector<128xf32>
    %80 = vector.shape_cast %79 : vector<128xf32> to vector<128x1xf32>
    %81 = vector.broadcast %80 : vector<128x1xf32> to vector<128x128xf32>
    %82 = arith.subf %78, %81 : vector<128x128xf32>
    %83 = math.exp %82 : vector<128x128xf32>
    %84 = arith.mulf %83, %16 : vector<128x128xf32>
    %cst_30 = arith.constant dense<0.000000e+00> : vector<128xf32>
    %85 = vector.multi_reduction <add>, %84, %cst_30 [1] : vector<128x128xf32> to vector<128xf32>
    %86 = vector.shape_cast %85 : vector<128xf32> to vector<128x1xf32>
    %cst_31 = arith.constant 9.99999997E-7 : f32
    %87 = vector.broadcast %cst_31 : f32 to vector<128x1xf32>
    %88 = arith.addf %86, %87 : vector<128x1xf32>
    %89 = tpu.reciprocal %88 : vector<128x1xf32> -> vector<128x1xf32>
    %cst_32 = arith.constant 1.000000e-07 : f32
    %90 = vector.broadcast %cst_32 : f32 to vector<128x128xf32>
    %91 = arith.addf %84, %90 : vector<128x128xf32>
    %92 = vector.broadcast %89 : vector<128x1xf32> to vector<128x128xf32>
    %93 = arith.mulf %91, %92 : vector<128x128xf32>
    %cst_33 = arith.constant dense<0.000000e+00> : vector<128x32xf32>
    %94 = tpu.matmul %93, %73, %cst_33 {dimension_numbers = #tpu.dot_dimension_numbers<[1], [0], [0], [1], [0, 0, 1, 1], [], []>} : vector<128x128xf32>, vector<128x32xf32>, vector<128x32xf32> -> vector<128x32xf32>
    %95 = vector.extract_strided_slice %9 {offsets = [0, 96], sizes = [128, 32], strides = [1, 1]} : vector<128x384xf32> to vector<128x32xf32>
    %96 = vector.extract_strided_slice %9 {offsets = [0, 224], sizes = [128, 32], strides = [1, 1]} : vector<128x384xf32> to vector<128x32xf32>
    %97 = vector.extract_strided_slice %9 {offsets = [0, 352], sizes = [128, 32], strides = [1, 1]} : vector<128x384xf32> to vector<128x32xf32>
    %cst_34 = arith.constant dense<0.000000e+00> : vector<128x128xf32>
    %98 = tpu.matmul %95, %96, %cst_34 {dimension_numbers = #tpu.dot_dimension_numbers<[1], [1], [0], [0], [0, 0, 1, 0], [], []>} : vector<128x32xf32>, vector<128x32xf32>, vector<128x128xf32> -> vector<128x128xf32>
    %cst_35 = arith.constant 0.176776692 : f32
    %99 = vector.broadcast %cst_35 : f32 to vector<128x128xf32>
    %100 = arith.mulf %98, %99 : vector<128x128xf32>
    %101 = vector.broadcast %22 : vector<1x128xf32> to vector<128x128xf32>
    %102 = arith.addf %100, %101 : vector<128x128xf32>
    %cst_36 = arith.constant dense<0xFF800000> : vector<128xf32>
    %103 = vector.multi_reduction <maximumf>, %102, %cst_36 [1] : vector<128x128xf32> to vector<128xf32>
    %104 = vector.shape_cast %103 : vector<128xf32> to vector<128x1xf32>
    %105 = vector.broadcast %104 : vector<128x1xf32> to vector<128x128xf32>
    %106 = arith.subf %102, %105 : vector<128x128xf32>
    %107 = math.exp %106 : vector<128x128xf32>
    %108 = arith.mulf %107, %16 : vector<128x128xf32>
    %cst_37 = arith.constant dense<0.000000e+00> : vector<128xf32>
    %109 = vector.multi_reduction <add>, %108, %cst_37 [1] : vector<128x128xf32> to vector<128xf32>
    %110 = vector.shape_cast %109 : vector<128xf32> to vector<128x1xf32>
    %cst_38 = arith.constant 9.99999997E-7 : f32
    %111 = vector.broadcast %cst_38 : f32 to vector<128x1xf32>
    %112 = arith.addf %110, %111 : vector<128x1xf32>
    %113 = tpu.reciprocal %112 : vector<128x1xf32> -> vector<128x1xf32>
    %cst_39 = arith.constant 1.000000e-07 : f32
    %114 = vector.broadcast %cst_39 : f32 to vector<128x128xf32>
    %115 = arith.addf %108, %114 : vector<128x128xf32>
    %116 = vector.broadcast %113 : vector<128x1xf32> to vector<128x128xf32>
    %117 = arith.mulf %115, %116 : vector<128x128xf32>
    %cst_40 = arith.constant dense<0.000000e+00> : vector<128x32xf32>
    %118 = tpu.matmul %117, %97, %cst_40 {dimension_numbers = #tpu.dot_dimension_numbers<[1], [0], [0], [1], [0, 0, 1, 1], [], []>} : vector<128x128xf32>, vector<128x32xf32>, vector<128x32xf32> -> vector<128x32xf32>
    %119 = tpu.concatenate %46, %70, %94, %118 in 1 : vector<128x32xf32>, vector<128x32xf32>, vector<128x32xf32>, vector<128x32xf32> -> vector<128x128xf32>
    %c0_41 = arith.constant 0 : index
    %c0_42 = arith.constant 0 : index
    %120 = vector.load %arg5[%c0_41, %c0_42] : memref<128x128xf32, #tpu.memory_space<vmem>>, vector<128x128xf32>
    %cst_43 = arith.constant dense<0.000000e+00> : vector<128x128xf32>
    %121 = tpu.matmul %119, %120, %cst_43 {dimension_numbers = #tpu.dot_dimension_numbers<[1], [0], [0], [1], [0, 0, 1, 1], [], []>} : vector<128x128xf32>, vector<128x128xf32>, vector<128x128xf32> -> vector<128x128xf32>
    %c0_44 = arith.constant 0 : index
    %c0_45 = arith.constant 0 : index
    %122 = vector.load %arg6[%c0_44, %c0_45] : memref<1x128xf32, #tpu.memory_space<vmem>>, vector<1x128xf32>
    %123 = vector.broadcast %122 : vector<1x128xf32> to vector<128x128xf32>
    %124 = arith.addf %121, %123 : vector<128x128xf32>
    %125 = vector.broadcast %3 : vector<128x1xf32> to vector<128x128xf32>
    %126 = arith.mulf %124, %125 : vector<128x128xf32>
    %c0_46 = arith.constant 0 : index
    %c0_47 = arith.constant 0 : index
    %c0_48 = arith.constant 0 : index
    %127 = vector.load %arg7[%c0_46, %c0_47, %c0_48] : memref<1x128x128xf32, #tpu.memory_space<vmem>>, vector<1x128x128xf32>
    %128 = vector.shape_cast %127 : vector<1x128x128xf32> to vector<128x128xf32>
    %129 = vector.shape_cast %126 : vector<128x128xf32> to vector<1x128x128xf32>
    tpu.vector_store %arg7[%c0_46, %c0_47, %c0_48], %129 {strides = array<i32>} : memref<1x128x128xf32, #tpu.memory_space<vmem>>, vector<1x128x128xf32>,
    return
  }
  func.func @transform_0(%arg0: i32) -> (i32, i32, i32) {
    %c0_i32 = arith.constant 0 : i32
    %c0_i32_0 = arith.constant 0 : i32
    %c0_i32_1 = arith.constant 0 : i32
    return %arg0, %c0_i32, %c0_i32_0 : i32, i32, i32
  }
  func.func @transform_1(%arg0: i32) -> (i32, i32, i32) {
    %c0_i32 = arith.constant 0 : i32
    %c0_i32_0 = arith.constant 0 : i32
    %c0_i32_1 = arith.constant 0 : i32
    return %arg0, %c0_i32, %c0_i32_0 : i32, i32, i32
  }
  func.func @transform_2(%arg0: i32) -> (i32, i32, i32) {
    %c0_i32 = arith.constant 0 : i32
    %c0_i32_0 = arith.constant 0 : i32
    %c0_i32_1 = arith.constant 0 : i32
    return %arg0, %c0_i32, %c0_i32_0 : i32, i32, i32
  }
  func.func @transform_3(%arg0: i32) -> (i32, i32) {
    %c0_i32 = arith.constant 0 : i32
    %c0_i32_0 = arith.constant 0 : i32
    %c0_i32_1 = arith.constant 0 : i32
    return %c0_i32, %c0_i32_0 : i32, i32
  }
  func.func @transform_4(%arg0: i32) -> (i32, i32) {
    %c0_i32 = arith.constant 0 : i32
    %c0_i32_0 = arith.constant 0 : i32
    %c0_i32_1 = arith.constant 0 : i32
    return %c0_i32, %c0_i32_0 : i32, i32
  }
  func.func @transform_5(%arg0: i32) -> (i32, i32) {
    %c0_i32 = arith.constant 0 : i32
    %c0_i32_0 = arith.constant 0 : i32
    %c0_i32_1 = arith.constant 0 : i32
    return %c0_i32, %c0_i32_0 : i32, i32
  }
  func.func @transform_6(%arg0: i32) -> (i32, i32, i32) {
    %c0_i32 = arith.constant 0 : i32
    %c0_i32_0 = arith.constant 0 : i32
    %c0_i32_1 = arith.constant 0 : i32
    return %arg0, %c0_i32, %c0_i32_0 : i32, i32, i32
  }
}

</mosaic_0001>

<llo_original>
// kernel: tpu_custom_call.1
$region0: #{tpu_custom_call.1}
  #allocation0 [shape = 'u32[]', space=smem, size = 0x4, offset = 0x4, fixed_abs, tag = 'smem constant byte address 0x4 - core index']
  #allocation1 [shape = 'u32[144,128]{1,0:T(1,128)}', space=vmem, size = 0x12000, scoped, tag = 'internal scratch']
  %s0 = inlined_call_operand.vmem [shape: f32[2,128,128], index: 0, kind: input, shape index: {}]
  %s1 = inlined_call_operand.vmem [shape: f32[2,128,1], index: 1, kind: input, shape index: {}]
  %s2 = inlined_call_operand.vmem [shape: f32[2,1,128], index: 2, kind: input, shape index: {}]
  %s3 = inlined_call_operand.hbm [shape: f32[128,384], index: 3, kind: input, shape index: {}]
  %s4 = inlined_call_operand.hbm [shape: f32[128,128], index: 4, kind: input, shape index: {}]
  %s5 = inlined_call_operand.vmem [shape: f32[1,128], index: 5, kind: input, shape index: {}]
  %s6 = inlined_call_operand.hbm [shape: f32[2,128,128], index: 6, kind: output, shape index: {}]
  %s7 = sld [smem:[#allocation0]]
  $region65: #{tpu_custom_call.1} parent=0
    _
  %s9 = ssub.s32 1, %s7
  %s10 = scalar_select 0, %s9, %s7
  $region1: #{tpu_custom_call.1} parent=0
    #allocation2 [shape = 'u8[196608]{0}', space=vmem, size = 0x30000, scoped, tag = 'input window, operand 3, single buffered']
    #allocation3 [shape = 's32[2]{0}', space=sflag, size = 0x8, scoped, tag = 'scoped memory for tpu_custom_call.1']
    #allocation4 [shape = 's32[2]{0}', space=sflag, size = 0x8, scoped, tag = 'scoped memory for tpu_custom_call.1']
    #allocation5 [shape = 'u8[65536]{0}', space=vmem, size = 0x10000, scoped, tag = 'input window, operand 4, single buffered']
    #allocation6 [shape = 's32[1]{0}', space=sflag, size = 0x4, scoped, tag = 'scoped memory for tpu_custom_call.1']
    #allocation7 [shape = 'u8[131072]{0}', space=vmem, size = 0x20000, scoped, tag = 'output window, operand 0']
    %11 = vsyncpa [#allocation3], 0
    %12 = vsyncpa [#allocation6], 0
    %13 = vsyncpa [#allocation4], 0
    %s14 = scalar_lea.sflag [#allocation4], 1
    %15 = vsyncpa %s14, 0
    loop: start=0, step=1, limit=4
    $region2: #{tpu_custom_call.1} parent=1 // loop_pre_header
      _
    $region3: #{tpu_custom_call.1} parent=1 // loop_header
      %s17 = sphi 0, %s21
      %p18 = scmp.ge.s32.totalorder %s17, 4
      %s27 = sphi 0, %s29
      %s30 = sphi 0, %s27
      %s31 = sphi 0, %s30
      %s47 = sphi 0, %s31
      %s53 = sphi 0, %s55
      %s56 = sphi 0, %s53
      %s57 = sphi 0, %s56
      %s73 = sphi 0, %s57
      %s79 = sphi 0, %s81
      %s82 = sphi 0, %s79
      %s83 = sphi 0, %s82
      %s99 = sphi 0, %s83
      %s103 = sphi 0, %s103
      %s105 = sphi 0, %s103
      %s106 = sphi 0, %s105
      %s120 = sphi 0, %s106
      %s124 = sphi 0, %s124
      %s126 = sphi 0, %s124
      %s127 = sphi 0, %s126
      %s141 = sphi 0, %s127
      %s145 = sphi 0, %s145
      %s147 = sphi 0, %s145
      %s148 = sphi 0, %s147
      %s162 = sphi 0, %s148
      %s168 = sphi 0, %s170
      %s171 = sphi 0, %s168
      %s172 = sphi 0, %s171
      %s188 = sphi 0, %s172
    $region4: #{tpu_custom_call.1} parent=1 // loop_header_branch
      %20 = sbr.rel (%p18) target = $region8
    $region5: #{tpu_custom_call.1} parent=1 // loop_body
      %s22 = ssub.s32 %s17, 1
      %s23 = ssub.s32 %s17, 2
      %s24 = sadd.s32 %s17, 1
      %s25 = ssub.s32 %s17, %s24
      %p26 = scmp.eq.s32.totalorder %s25, 0
      %s28 = sadd.s32 %s27, 1
      %s29 = scalar_select %p26, %s27, %s28
      %p32 = pneg %p26
      %p33 = scmp.eq.s32.totalorder %s17, 1
      %p34 = por %p32, %p33
      %p35 = scmp.ne.s32.totalorder %s27, %s30
      %p36 = scmp.eq.s32.totalorder %s17, 0
      %p37 = por %p35, %p36
      %p38 = scmp.ne.s32.totalorder %s27, %s30
      %p39 = scmp.eq.s32.totalorder %s22, 1
      %p40 = por %p38, %p39
      %p41 = scmp.ne.s32.totalorder %s30, %s31
      %p42 = scmp.eq.s32.totalorder %s22, 0
      %p43 = por %p41, %p42
      %p44 = scmp.ne.s32.totalorder %s30, %s31
      %p45 = scmp.eq.s32.totalorder %s23, 1
      %p46 = por %p44, %p45
      %p48 = scmp.ne.s32.totalorder %s31, %s47
      %p49 = scmp.eq.s32.totalorder %s23, 0
      %p50 = por %p48, %p49
      %s51 = ssub.s32 %s17, %s24
      %p52 = scmp.eq.s32.totalorder %s51, 0
      %s54 = sadd.s32 %s53, 1
      %s55 = scalar_select %p52, %s53, %s54
      %p58 = pneg %p52
      %p59 = scmp.eq.s32.totalorder %s17, 1
      %p60 = por %p58, %p59
      %p61 = scmp.ne.s32.totalorder %s53, %s56
      %p62 = scmp.eq.s32.totalorder %s17, 0
      %p63 = por %p61, %p62
      %p64 = scmp.ne.s32.totalorder %s53, %s56
      %p65 = scmp.eq.s32.totalorder %s22, 1
      %p66 = por %p64, %p65
      %p67 = scmp.ne.s32.totalorder %s56, %s57
      %p68 = scmp.eq.s32.totalorder %s22, 0
      %p69 = por %p67, %p68
      %p70 = scmp.ne.s32.totalorder %s56, %s57
      %p71 = scmp.eq.s32.totalorder %s23, 1
      %p72 = por %p70, %p71
      %p74 = scmp.ne.s32.totalorder %s57, %s73
      %p75 = scmp.eq.s32.totalorder %s23, 0
      %p76 = por %p74, %p75
      %s77 = ssub.s32 %s17, %s24
      %p78 = scmp.eq.s32.totalorder %s77, 0
      %s80 = sadd.s32 %s79, 1
      %s81 = scalar_select %p78, %s79, %s80
      %p84 = pneg %p78
      %p85 = scmp.eq.s32.totalorder %s17, 1
      %p86 = por %p84, %p85
      %p87 = scmp.ne.s32.totalorder %s79, %s82
      %p88 = scmp.eq.s32.totalorder %s17, 0
      %p89 = por %p87, %p88
      %p90 = scmp.ne.s32.totalorder %s79, %s82
      %p91 = scmp.eq.s32.totalorder %s22, 1
      %p92 = por %p90, %p91
      %p93 = scmp.ne.s32.totalorder %s82, %s83
      %p94 = scmp.eq.s32.totalorder %s22, 0
      %p95 = por %p93, %p94
      %p96 = scmp.ne.s32.totalorder %s82, %s83
      %p97 = scmp.eq.s32.totalorder %s23, 1
      %p98 = por %p96, %p97
      %p100 = scmp.ne.s32.totalorder %s83, %s99
      %p101 = scmp.eq.s32.totalorder %s23, 0
      %p102 = por %p100, %p101
      %s104 = sadd.s32 %s103, 1
      %p107 = scmp.eq.s32.totalorder %s17, 1
      %p108 = scmp.ne.s32.totalorder %s103, %s105
      %p109 = scmp.eq.s32.totalorder %s17, 0
      %p110 = por %p108, %p109
      %p111 = scmp.ne.s32.totalorder %s103, %s105
      %p112 = scmp.eq.s32.totalorder %s22, 1
      %p113 = por %p111, %p112
      %p114 = scmp.ne.s32.totalorder %s105, %s106
      %p115 = scmp.eq.s32.totalorder %s22, 0
      %p116 = por %p114, %p115
      %p117 = scmp.ne.s32.totalorder %s105, %s106
      %p118 = scmp.eq.s32.totalorder %s23, 1
      %p119 = por %p117, %p118
      %p121 = scmp.ne.s32.totalorder %s106, %s120
      %p122 = scmp.eq.s32.totalorder %s23, 0
      %p123 = por %p121, %p122
      %s125 = sadd.s32 %s124, 1
      %p128 = scmp.eq.s32.totalorder %s17, 1
      %p129 = scmp.ne.s32.totalorder %s124, %s126
      %p130 = scmp.eq.s32.totalorder %s17, 0
      %p131 = por %p129, %p130
      %p132 = scmp.ne.s32.totalorder %s124, %s126
      %p133 = scmp.eq.s32.totalorder %s22, 1
      %p134 = por %p132, %p133
      %p135 = scmp.ne.s32.totalorder %s126, %s127
      %p136 = scmp.eq.s32.totalorder %s22, 0
      %p137 = por %p135, %p136
      %p138 = scmp.ne.s32.totalorder %s126, %s127
      %p139 = scmp.eq.s32.totalorder %s23, 1
      %p140 = por %p138, %p139
      %p142 = scmp.ne.s32.totalorder %s127, %s141
      %p143 = scmp.eq.s32.totalorder %s23, 0
      %p144 = por %p142, %p143
      %s146 = sadd.s32 %s145, 1
      %p149 = scmp.eq.s32.totalorder %s17, 1
      %p150 = scmp.ne.s32.totalorder %s145, %s147
      %p151 = scmp.eq.s32.totalorder %s17, 0
      %p152 = por %p150, %p151
      %p153 = scmp.ne.s32.totalorder %s145, %s147
      %p154 = scmp.eq.s32.totalorder %s22, 1
      %p155 = por %p153, %p154
      %p156 = scmp.ne.s32.totalorder %s147, %s148
      %p157 = scmp.eq.s32.totalorder %s22, 0
      %p158 = por %p156, %p157
      %p159 = scmp.ne.s32.totalorder %s147, %s148
      %p160 = scmp.eq.s32.totalorder %s23, 1
      %p161 = por %p159, %p160
      %p163 = scmp.ne.s32.totalorder %s148, %s162
      %p164 = scmp.eq.s32.totalorder %s23, 0
      %p165 = por %p163, %p164
      %s166 = ssub.s32 %s17, %s24
      %p167 = scmp.eq.s32.totalorder %s166, 0
      %s169 = sadd.s32 %s168, 1
      %s170 = scalar_select %p167, %s168, %s169
      %p173 = pneg %p167
      %p174 = scmp.eq.s32.totalorder %s17, 1
      %p175 = por %p173, %p174
      %p176 = scmp.ne.s32.totalorder %s168, %s171
      %p177 = scmp.eq.s32.totalorder %s17, 0
      %p178 = por %p176, %p177
      %p179 = scmp.ne.s32.totalorder %s168, %s171
      %p180 = scmp.eq.s32.totalorder %s22, 1
      %p181 = por %p179, %p180
      %p182 = scmp.ne.s32.totalorder %s171, %s172
      %p183 = scmp.eq.s32.totalorder %s22, 0
      %p184 = por %p182, %p183
      %p185 = scmp.ne.s32.totalorder %s171, %s172
      %p186 = scmp.eq.s32.totalorder %s23, 1
      %p187 = por %p185, %p186
      %p189 = scmp.ne.s32.totalorder %s172, %s188
      %p190 = scmp.eq.s32.totalorder %s23, 0
      %p191 = por %p189, %p190
      %p192 = scmp.le.s32.totalorder 1, %s17
      %p193 = scmp.lt.s32.totalorder %s17, 3
      %p194 = pnand %p192, %p193
      %p195 = pneg %p194
      // Predicated region
      $region9: #{tpu_custom_call.1} parent=5 // pred_check
        _
      $region10: #{tpu_custom_call.1} parent=5 // pred_check_branch
        %197 = sbr.rel (%p194) target = $region12
      $region11: #{tpu_custom_call.1} parent=5 // pred_region
        %s198 = ssub.s32 %s17, 1
        // Predicated region
        $region13: #{tpu_custom_call.1} parent=11 // pred_check
          %p199 = pneg %p116
        $region14: #{tpu_custom_call.1} parent=11 // pred_check_branch
          %201 = sbr.rel (%p199) target = $region16
        $region15: #{tpu_custom_call.1} parent=11 // pred_region
          %s203 = ssub.s32 6144, 6144
          %204 = vsyncadd [#allocation3], %s203
          %s205 = sshll.u32 [#allocation2], 4
          %s206 = int_to_ptr.vmem [resolvable:$true] %s205
          %211 = dma.hbm_to_vmem [thread:$0]  %s3, 6144, %s206, [#allocation3], 384, 384, 24
        $region16: #{tpu_custom_call.1} parent=11 // pred_fallthru
          _
        // Predicated region
        $region17: #{tpu_custom_call.1} parent=11 // pred_check
          %p212 = pneg %p137
        $region18: #{tpu_custom_call.1} parent=11 // pred_check_branch
          %214 = sbr.rel (%p212) target = $region20
        $region19: #{tpu_custom_call.1} parent=11 // pred_region
          %s216 = ssub.s32 2048, 2048
          %217 = vsyncadd [#allocation6], %s216
          %s218 = sshll.u32 [#allocation5], 4
          %s219 = int_to_ptr.vmem [resolvable:$true] %s218
          %224 = dma.hbm_to_vmem [thread:$0]  %s4, 2048, %s219, [#allocation6], 128, 128, 8
        $region20: #{tpu_custom_call.1} parent=11 // pred_fallthru
          _
        // Predicated region
        $region21: #{tpu_custom_call.1} parent=11 // pred_check
          %p225 = pneg %p158
        $region22: #{tpu_custom_call.1} parent=11 // pred_check_branch
          %227 = sbr.rel (%p225) target = $region24
        $region23: #{tpu_custom_call.1} parent=11 // pred_region
          _
        $region24: #{tpu_custom_call.1} parent=11 // pred_fallthru
          _
      $region12: #{tpu_custom_call.1} parent=5 // pred_fallthru
        _
      %p228 = scmp.lt.s32.totalorder %s17, 2
      // Predicated region
      $region25: #{tpu_custom_call.1} parent=5 // pred_check
        %p229 = pneg %p228
      $region26: #{tpu_custom_call.1} parent=5 // pred_check_branch
        %231 = sbr.rel (%p229) target = $region28
      $region27: #{tpu_custom_call.1} parent=5 // pred_region
        // Predicated region
        $region29: #{tpu_custom_call.1} parent=27 // pred_check
          %p232 = pneg %p37
        $region30: #{tpu_custom_call.1} parent=27 // pred_check_branch
          %234 = sbr.rel (%p232) target = $region32
        $region31: #{tpu_custom_call.1} parent=27 // pred_region
          %p235 = scmp.lt.s32.totalorder %s17, 1
          %s236 = scalar_select %p235, %s17, 1
          %s237 = smul.addr %s236, 16
          %s238 = smul.addr %s237, 8
          %s239 = scalar_lea.vmem %s0, %s238
        $region32: #{tpu_custom_call.1} parent=27 // pred_fallthru
          _
        // Predicated region
        $region33: #{tpu_custom_call.1} parent=27 // pred_check
          %p240 = pneg %p63
        $region34: #{tpu_custom_call.1} parent=27 // pred_check_branch
          %242 = sbr.rel (%p240) target = $region36
        $region35: #{tpu_custom_call.1} parent=27 // pred_region
          %p243 = scmp.lt.s32.totalorder %s17, 1
          %s244 = scalar_select %p243, %s17, 1
          %s245 = smul.addr %s244, 16
          %s246 = smul.addr %s245, 8
          %s247 = scalar_lea.vmem %s1, %s246
        $region36: #{tpu_custom_call.1} parent=27 // pred_fallthru
          _
        // Predicated region
        $region37: #{tpu_custom_call.1} parent=27 // pred_check
          %p248 = pneg %p89
        $region38: #{tpu_custom_call.1} parent=27 // pred_check_branch
          %250 = sbr.rel (%p248) target = $region40
        $region39: #{tpu_custom_call.1} parent=27 // pred_region
          %p251 = scmp.lt.s32.totalorder %s17, 1
          %s252 = scalar_select %p251, %s17, 1
          %s253 = scalar_lea.vmem %s2, %s252
        $region40: #{tpu_custom_call.1} parent=27 // pred_fallthru
          _
      $region28: #{tpu_custom_call.1} parent=5 // pred_fallthru
        _
      %p254 = scmp.le.s32.totalorder 1, %s17
      %p255 = scmp.lt.s32.totalorder %s17, 3
      %p256 = pnand %p254, %p255
      %p257 = pneg %p256
      // Predicated region
      $region41: #{tpu_custom_call.1} parent=5 // pred_check
        _
      $region42: #{tpu_custom_call.1} parent=5 // pred_check_branch
        %259 = sbr.rel (%p256) target = $region44
      $region43: #{tpu_custom_call.1} parent=5 // pred_region
        %s260 = ssub.s32 %s17, 1
        // Predicated region
        $region45: #{tpu_custom_call.1} parent=43 // pred_check
          %p261 = pneg %p116
        $region46: #{tpu_custom_call.1} parent=43 // pred_check_branch
          %263 = sbr.rel (%p261) target = $region48
        $region47: #{tpu_custom_call.1} parent=43 // pred_region
          %264 = dma.done [#allocation3], 6144
        $region48: #{tpu_custom_call.1} parent=43 // pred_fallthru
          _
        // Predicated region
        $region49: #{tpu_custom_call.1} parent=43 // pred_check
          %p265 = pneg %p137
        $region50: #{tpu_custom_call.1} parent=43 // pred_check_branch
          %267 = sbr.rel (%p265) target = $region52
        $region51: #{tpu_custom_call.1} parent=43 // pred_region
          %268 = dma.done [#allocation6], 2048
        $region52: #{tpu_custom_call.1} parent=43 // pred_fallthru
          _
        %p269 = scmp.lt.s32.totalorder %s22, 1
        %s270 = scalar_select %p269, %s22, 1
        %s271 = smul.addr %s270, 16
        %s272 = smul.addr %s271, 8
        %s273 = scalar_lea.vmem %s0, %s272
        %p274 = pneg %p43
        %p275 = pneg %p40
        %p276 = scmp.lt.s32.totalorder %s22, 1
        %s277 = scalar_select %p276, %s22, 1
        %s278 = smul.addr %s277, 16
        %s279 = smul.addr %s278, 8
        %s280 = scalar_lea.vmem %s1, %s279
        %p281 = pneg %p69
        %p282 = pneg %p66
        %p283 = scmp.lt.s32.totalorder %s22, 1
        %s284 = scalar_select %p283, %s22, 1
        %s285 = scalar_lea.vmem %s2, %s284
        %p286 = pneg %p95
        %p287 = pneg %p92
        %p288 = pneg %p116
        %p289 = pneg %p113
        %p290 = pneg %p137
        %p291 = pneg %p134
        %p292 = pneg %p158
        %p293 = pneg %p155
        %p294 = pneg %p184
        %p295 = pneg %p181
        %s296 = sand.u32 %s171, 1
        %s297 = scalar_lea.sflag [#allocation4], %s296
        %s298 = sand.u32 %s171, 1
        %s299 = smul.addr %s298, 128
        %s300 = scalar_lea.vmem [#allocation7], %s299
        %p301 = scmp.lt.s32.totalorder %s22, 1
        %s302 = scalar_select %p301, %s22, 1
        %s303 = smul.addr %s302, 16
        %s304 = smul.addr %s303, 8
        %s305 = scalar_lea.vmem %s0, %s304
        %p306 = scmp.lt.s32.totalorder %s22, 1
        %s307 = scalar_select %p306, %s22, 1
        %s308 = smul.addr %s307, 16
        %s309 = smul.addr %s308, 8
        %s310 = scalar_lea.vmem %s1, %s309
        %p311 = scmp.lt.s32.totalorder %s22, 1
        %s312 = scalar_select %p311, %s22, 1
        %s313 = scalar_lea.vmem %s2, %s312
        %v314 = vld [vmem:[%s305] sm:$0xff]
        %v315 = vld [vmem:[%s305 + $0x8] sm:$0xff]
        %v316 = vld [vmem:[%s305 + $0x10] sm:$0xff]
        %v317 = vld [vmem:[%s305 + $0x18] sm:$0xff]
        %v318 = vld [vmem:[%s305 + $0x20] sm:$0xff]
        %v319 = vld [vmem:[%s305 + $0x28] sm:$0xff]
        %v320 = vld [vmem:[%s305 + $0x30] sm:$0xff]
        %v321 = vld [vmem:[%s305 + $0x38] sm:$0xff]
        %v322 = vld [vmem:[%s305 + $0x40] sm:$0xff]
        %v323 = vld [vmem:[%s305 + $0x48] sm:$0xff]
        %v324 = vld [vmem:[%s305 + $0x50] sm:$0xff]
        %v325 = vld [vmem:[%s305 + $0x58] sm:$0xff]
        %v326 = vld [vmem:[%s305 + $0x60] sm:$0xff]
        %v327 = vld [vmem:[%s305 + $0x68] sm:$0xff]
        %v328 = vld [vmem:[%s305 + $0x70] sm:$0xff]
        %v329 = vld [vmem:[%s305 + $0x78] sm:$0xff]
        %v330 = vld [vmem:[%s310] sm:$0xff]
        %v331 = vld [vmem:[%s310 + $0x8] sm:$0xff]
        %v332 = vld [vmem:[%s310 + $0x10] sm:$0xff]
        %v333 = vld [vmem:[%s310 + $0x18] sm:$0xff]
        %v334 = vld [vmem:[%s310 + $0x20] sm:$0xff]
        %v335 = vld [vmem:[%s310 + $0x28] sm:$0xff]
        %v336 = vld [vmem:[%s310 + $0x30] sm:$0xff]
        %v337 = vld [vmem:[%s310 + $0x38] sm:$0xff]
        %v338 = vld [vmem:[%s310 + $0x40] sm:$0xff]
        %v339 = vld [vmem:[%s310 + $0x48] sm:$0xff]
        %v340 = vld [vmem:[%s310 + $0x50] sm:$0xff]
        %v341 = vld [vmem:[%s310 + $0x58] sm:$0xff]
        %v342 = vld [vmem:[%s310 + $0x60] sm:$0xff]
        %v343 = vld [vmem:[%s310 + $0x68] sm:$0xff]
        %v344 = vld [vmem:[%s310 + $0x70] sm:$0xff]
        %v345 = vld [vmem:[%s310 + $0x78] sm:$0xff]
        %v346 = vld [vmem:[%s313] sm:$0x1]
        %348 = vset.pattern.permute.xlu0 0
        %349 = vperm.xlu0 %348, %v330
        %v350 = vpop.permute.xlu0 %349
        %353 = vset.pattern.permute.xlu0 0
        %354 = vperm.xlu0 %353, %v331
        %v355 = vpop.permute.xlu0 %354
        %358 = vset.pattern.permute.xlu0 0
        %359 = vperm.xlu0 %358, %v332
        %v360 = vpop.permute.xlu0 %359
        %363 = vset.pattern.permute.xlu0 0
        %364 = vperm.xlu0 %363, %v333
        %v365 = vpop.permute.xlu0 %364
        %368 = vset.pattern.permute.xlu0 0
        %369 = vperm.xlu0 %368, %v334
        %v370 = vpop.permute.xlu0 %369
        %373 = vset.pattern.permute.xlu0 0
        %374 = vperm.xlu0 %373, %v335
        %v375 = vpop.permute.xlu0 %374
        %378 = vset.pattern.permute.xlu0 0
        %379 = vperm.xlu0 %378, %v336
        %v380 = vpop.permute.xlu0 %379
        %383 = vset.pattern.permute.xlu0 0
        %384 = vperm.xlu0 %383, %v337
        %v385 = vpop.permute.xlu0 %384
        %388 = vset.pattern.permute.xlu0 0
        %389 = vperm.xlu0 %388, %v338
        %v390 = vpop.permute.xlu0 %389
        %393 = vset.pattern.permute.xlu0 0
        %394 = vperm.xlu0 %393, %v339
        %v395 = vpop.permute.xlu0 %394
        %398 = vset.pattern.permute.xlu0 0
        %399 = vperm.xlu0 %398, %v340
        %v400 = vpop.permute.xlu0 %399
        %403 = vset.pattern.permute.xlu0 0
        %404 = vperm.xlu0 %403, %v341
        %v405 = vpop.permute.xlu0 %404
        %408 = vset.pattern.permute.xlu0 0
        %409 = vperm.xlu0 %408, %v342
        %v410 = vpop.permute.xlu0 %409
        %413 = vset.pattern.permute.xlu0 0
        %414 = vperm.xlu0 %413, %v343
        %v415 = vpop.permute.xlu0 %414
        %418 = vset.pattern.permute.xlu0 0
        %419 = vperm.xlu0 %418, %v344
        %v420 = vpop.permute.xlu0 %419
        %423 = vset.pattern.permute.xlu0 0
        %424 = vperm.xlu0 %423, %v345
        %v425 = vpop.permute.xlu0 %424
        %v427 = vmul.f32 %v314, %v350
        %v428 = vmul.f32 %v315, %v355
        %v429 = vmul.f32 %v316, %v360
        %v430 = vmul.f32 %v317, %v365
        %v431 = vmul.f32 %v318, %v370
        %v432 = vmul.f32 %v319, %v375
        %v433 = vmul.f32 %v320, %v380
        %v434 = vmul.f32 %v321, %v385
        %v435 = vmul.f32 %v322, %v390
        %v436 = vmul.f32 %v323, %v395
        %v437 = vmul.f32 %v324, %v400
        %v438 = vmul.f32 %v325, %v405
        %v439 = vmul.f32 %v326, %v410
        %v440 = vmul.f32 %v327, %v415
        %v441 = vmul.f32 %v328, %v420
        %v442 = vmul.f32 %v329, %v425
        %v443 = vld [vmem:[#allocation2] sm:$0xff]
        %v444 = vld [vmem:[#allocation2 + $0x8] sm:$0xff]
        %v445 = vld [vmem:[#allocation2 + $0x10] sm:$0xff]
        %v446 = vld [vmem:[#allocation2 + $0x18] sm:$0xff]
        %v447 = vld [vmem:[#allocation2 + $0x20] sm:$0xff]
        %v448 = vld [vmem:[#allocation2 + $0x28] sm:$0xff]
        %v449 = vld [vmem:[#allocation2 + $0x30] sm:$0xff]
        %v450 = vld [vmem:[#allocation2 + $0x38] sm:$0xff]
        %v451 = vld [vmem:[#allocation2 + $0x40] sm:$0xff]
        %v452 = vld [vmem:[#allocation2 + $0x48] sm:$0xff]
        %v453 = vld [vmem:[#allocation2 + $0x50] sm:$0xff]
        %v454 = vld [vmem:[#allocation2 + $0x58] sm:$0xff]
        %v455 = vld [vmem:[#allocation2 + $0x60] sm:$0xff]
        %v456 = vld [vmem:[#allocation2 + $0x68] sm:$0xff]
        %v457 = vld [vmem:[#allocation2 + $0x70] sm:$0xff]
        %v458 = vld [vmem:[#allocation2 + $0x78] sm:$0xff]
        %v459 = vld [vmem:[#allocation2 + $0x80] sm:$0xff]
        %v460 = vld [vmem:[#allocation2 + $0x88] sm:$0xff]
        %v461 = vld [vmem:[#allocation2 + $0x90] sm:$0xff]
        %v462 = vld [vmem:[#allocation2 + $0x98] sm:$0xff]
        %v463 = vld [vmem:[#allocation2 + $0xa0] sm:$0xff]
        %v464 = vld [vmem:[#allocation2 + $0xa8] sm:$0xff]
        %v465 = vld [vmem:[#allocation2 + $0xb0] sm:$0xff]
        %v466 = vld [vmem:[#allocation2 + $0xb8] sm:$0xff]
        %v467 = vld [vmem:[#allocation2 + $0xc0] sm:$0xff]
        %v468 = vld [vmem:[#allocation2 + $0xc8] sm:$0xff]
        %v469 = vld [vmem:[#allocation2 + $0xd0] sm:$0xff]
        %v470 = vld [vmem:[#allocation2 + $0xd8] sm:$0xff]
        %v471 = vld [vmem:[#allocation2 + $0xe0] sm:$0xff]
        %v472 = vld [vmem:[#allocation2 + $0xe8] sm:$0xff]
        %v473 = vld [vmem:[#allocation2 + $0xf0] sm:$0xff]
        %v474 = vld [vmem:[#allocation2 + $0xf8] sm:$0xff]
        %v475 = vld [vmem:[#allocation2 + $0x100] sm:$0xff]
        %v476 = vld [vmem:[#allocation2 + $0x108] sm:$0xff]
        %v477 = vld [vmem:[#allocation2 + $0x110] sm:$0xff]
        %v478 = vld [vmem:[#allocation2 + $0x118] sm:$0xff]
        %v479 = vld [vmem:[#allocation2 + $0x120] sm:$0xff]
        %v480 = vld [vmem:[#allocation2 + $0x128] sm:$0xff]
        %v481 = vld [vmem:[#allocation2 + $0x130] sm:$0xff]
        %v482 = vld [vmem:[#allocation2 + $0x138] sm:$0xff]
        %v483 = vld [vmem:[#allocation2 + $0x140] sm:$0xff]
        %v484 = vld [vmem:[#allocation2 + $0x148] sm:$0xff]
        %v485 = vld [vmem:[#allocation2 + $0x150] sm:$0xff]
        %v486 = vld [vmem:[#allocation2 + $0x158] sm:$0xff]
        %v487 = vld [vmem:[#allocation2 + $0x160] sm:$0xff]
        %v488 = vld [vmem:[#allocation2 + $0x168] sm:$0xff]
        %v489 = vld [vmem:[#allocation2 + $0x170] sm:$0xff]
        %v490 = vld [vmem:[#allocation2 + $0x178] sm:$0xff]
        %491 = vmatprep.subr.mxu0 %v489
        %492 = vmatpush1.msra.mxu0 %v488
        %493 = vmatprep.subr.mxu0 %v486
        %494 = vmatpush1.msra.mxu0 %v485
        %495 = vmatprep.subr.mxu0 %v483
        %496 = vmatpush1.msra.mxu0 %v482
        %497 = vmatprep.subr.mxu0 %v480
        %498 = vmatpush1.msra.mxu0 %v479
        %499 = vmatprep.subr.mxu0 %v477
        %500 = vmatpush1.msra.mxu0 %v476
        %501 = vmatprep.subr.mxu0 %v474
        %502 = vmatpush1.msra.mxu0 %v473
        %503 = vmatprep.subr.mxu0 %v471
        %504 = vmatpush1.msra.mxu0 %v470
        %505 = vmatprep.subr.mxu0 %v468
        %506 = vmatpush1.msra.mxu0 %v467
        %507 = vmatprep.subr.mxu0 %v465
        %508 = vmatpush1.msra.mxu0 %v464
        %509 = vmatprep.subr.mxu0 %v462
        %510 = vmatpush1.msra.mxu0 %v461
        %511 = vmatprep.subr.mxu0 %v459
        %512 = vmatpush1.msra.mxu0 %v458
        %513 = vmatprep.subr.mxu0 %v456
        %514 = vmatpush1.msra.mxu0 %v455
        %515 = vmatprep.subr.mxu0 %v453
        %516 = vmatpush1.msra.mxu0 %v452
        %517 = vmatprep.subr.mxu0 %v450
        %518 = vmatpush1.msra.mxu0 %v449
        %519 = vmatprep.subr.mxu0 %v447
        %520 = vmatpush1.msra.mxu0 %v446
        %521 = vmatprep.subr.mxu0 %v444
        %522 = vmatpush1.msra.mxu0 %v443
        %523 = vmatprep.subr.mxu0 0.0
        %524 = vmatpush2.msra.mxu0 0.0
        %525 = vmatprep.subr.mxu0 0.0
        %526 = vmatpush2.msra.mxu0 0.0
        %527 = vmatprep.subr.mxu0 0.0
        %528 = vmatpush2.msra.mxu0 0.0
        %529 = vmatprep.subr.mxu0 0.0
        %530 = vmatpush2.msra.mxu0 0.0
        %531 = vmatprep.subr.mxu0 0.0
        %532 = vmatpush2.msra.mxu0 0.0
        %533 = vmatprep.subr.mxu0 0.0
        %534 = vmatpush2.msra.mxu0 0.0
        %535 = vmatprep.subr.mxu0 0.0
        %536 = vmatpush2.msra.mxu0 0.0
        %537 = vmatprep.subr.mxu0 0.0
        %538 = vmatpush2.msra.mxu0 0.0
        %539 = vmatprep.subr.mxu0 0.0
        %540 = vmatpush2.msra.mxu0 0.0
        %541 = vmatprep.subr.mxu0 0.0
        %542 = vmatpush2.msra.mxu0 0.0
        %543 = vmatprep.subr.mxu0 0.0
        %544 = vmatpush2.msra.mxu0 0.0
        %545 = vmatprep.subr.mxu0 0.0
        %546 = vmatpush2.msra.mxu0 0.0
        %547 = vmatprep.subr.mxu0 0.0
        %548 = vmatpush2.msra.mxu0 0.0
        %549 = vmatprep.subr.mxu0 0.0
        %550 = vmatpush2.msra.mxu0 0.0
        %551 = vmatprep.subr.mxu0 0.0
        %552 = vmatpush2.msra.mxu0 0.0
        %553 = vmatprep.subr.mxu0 0.0
        %554 = vmatpush2.msra.mxu0 0.0
        %555 = vmatprep.mubr.f32.mxu0 0.0
        %556 = vmatmul.mubr.f32.gmra.mxu0 %v427
        %v557 = vpop.f32.mrf.mxu0
        %v558 = vadd.f32 0.0, %v557
        %v559 = vpop.f32.mrf.mxu0
        %v560 = vadd.f32 0.0, %v559
        %561 = vmatprep.mubr.f32.mxu0 0.0
        %562 = vmatmul.mubr.f32.gmra.mxu0 %v428
        %v563 = vpop.f32.mrf.mxu0
        %v564 = vadd.f32 0.0, %v563
        %v565 = vpop.f32.mrf.mxu0
        %v566 = vadd.f32 0.0, %v565
        %567 = vmatprep.mubr.f32.mxu0 0.0
        %568 = vmatmul.mubr.f32.gmra.mxu0 %v429
        %v569 = vpop.f32.mrf.mxu0
        %v570 = vadd.f32 0.0, %v569
        %v571 = vpop.f32.mrf.mxu0
        %v572 = vadd.f32 0.0, %v571
        %573 = vmatprep.mubr.f32.mxu0 0.0
        %574 = vmatmul.mubr.f32.gmra.mxu0 %v430
        %v575 = vpop.f32.mrf.mxu0
        %v576 = vadd.f32 0.0, %v575
        %v577 = vpop.f32.mrf.mxu0
        %v578 = vadd.f32 0.0, %v577
        %579 = vmatprep.mubr.f32.mxu0 0.0
        %580 = vmatmul.mubr.f32.gmra.mxu0 %v431
        %v581 = vpop.f32.mrf.mxu0
        %v582 = vadd.f32 0.0, %v581
        %v583 = vpop.f32.mrf.mxu0
        %v584 = vadd.f32 0.0, %v583
        %585 = vmatprep.mubr.f32.mxu0 0.0
        %586 = vmatmul.mubr.f32.gmra.mxu0 %v432
        %v587 = vpop.f32.mrf.mxu0
        %v588 = vadd.f32 0.0, %v587
        %v589 = vpop.f32.mrf.mxu0
        %v590 = vadd.f32 0.0, %v589
        %591 = vmatprep.mubr.f32.mxu0 0.0
        %592 = vmatmul.mubr.f32.gmra.mxu0 %v433
        %v593 = vpop.f32.mrf.mxu0
        %v594 = vadd.f32 0.0, %v593
        %v595 = vpop.f32.mrf.mxu0
        %v596 = vadd.f32 0.0, %v595
        %597 = vmatprep.mubr.f32.mxu0 0.0
        %598 = vmatmul.mubr.f32.gmra.mxu0 %v434
        %v599 = vpop.f32.mrf.mxu0
        %v600 = vadd.f32 0.0, %v599
        %v601 = vpop.f32.mrf.mxu0
        %v602 = vadd.f32 0.0, %v601
        %603 = vmatprep.mubr.f32.mxu0 0.0
        %604 = vmatmul.mubr.f32.gmra.mxu0 %v435
        %v605 = vpop.f32.mrf.mxu0
        %v606 = vadd.f32 0.0, %v605
        %v607 = vpop.f32.mrf.mxu0
        %v608 = vadd.f32 0.0, %v607
        %609 = vmatprep.mubr.f32.mxu0 0.0
        %610 = vmatmul.mubr.f32.gmra.mxu0 %v436
        %v611 = vpop.f32.mrf.mxu0
        %v612 = vadd.f32 0.0, %v611
        %v613 = vpop.f32.mrf.mxu0
        %v614 = vadd.f32 0.0, %v613
        %615 = vmatprep.mubr.f32.mxu0 0.0
        %616 = vmatmul.mubr.f32.gmra.mxu0 %v437
        %v617 = vpop.f32.mrf.mxu0
        %v618 = vadd.f32 0.0, %v617
        %v619 = vpop.f32.mrf.mxu0
        %v620 = vadd.f32 0.0, %v619
        %621 = vmatprep.mubr.f32.mxu0 0.0
        %622 = vmatmul.mubr.f32.gmra.mxu0 %v438
        %v623 = vpop.f32.mrf.mxu0
        %v624 = vadd.f32 0.0, %v623
        %v625 = vpop.f32.mrf.mxu0
        %v626 = vadd.f32 0.0, %v625
        %627 = vmatprep.mubr.f32.mxu0 0.0
        %628 = vmatmul.mubr.f32.gmra.mxu0 %v439
        %v629 = vpop.f32.mrf.mxu0
        %v630 = vadd.f32 0.0, %v629
        %v631 = vpop.f32.mrf.mxu0
        %v632 = vadd.f32 0.0, %v631
        %633 = vmatprep.mubr.f32.mxu0 0.0
        %634 = vmatmul.mubr.f32.gmra.mxu0 %v440
        %v635 = vpop.f32.mrf.mxu0
        %v636 = vadd.f32 0.0, %v635
        %v637 = vpop.f32.mrf.mxu0
        %v638 = vadd.f32 0.0, %v637
        %639 = vmatprep.mubr.f32.mxu0 0.0
        %640 = vmatmul.mubr.f32.gmra.mxu0 %v441
        %v641 = vpop.f32.mrf.mxu0
        %v642 = vadd.f32 0.0, %v641
        %v643 = vpop.f32.mrf.mxu0
        %v644 = vadd.f32 0.0, %v643
        %645 = vmatprep.mubr.f32.mxu0 0.0
        %646 = vmatmul.mubr.f32.gmra.mxu0 %v442
        %v647 = vpop.f32.mrf.mxu0
        %v648 = vadd.f32 0.0, %v647
        %v649 = vpop.f32.mrf.mxu0
        %v650 = vadd.f32 0.0, %v649
        %651 = vdwg.mxu0
        %652 = vmatprep.subr.mxu0 0.0
        %653 = vmatpush1.msra.mxu0 %v490
        %654 = vmatprep.subr.mxu0 0.0
        %655 = vmatpush1.msra.mxu0 %v487
        %656 = vmatprep.subr.mxu0 0.0
        %657 = vmatpush1.msra.mxu0 %v484
        %658 = vmatprep.subr.mxu0 0.0
        %659 = vmatpush1.msra.mxu0 %v481
        %660 = vmatprep.subr.mxu0 0.0
        %661 = vmatpush1.msra.mxu0 %v478
        %662 = vmatprep.subr.mxu0 0.0
        %663 = vmatpush1.msra.mxu0 %v475
        %664 = vmatprep.subr.mxu0 0.0
        %665 = vmatpush1.msra.mxu0 %v472
        %666 = vmatprep.subr.mxu0 0.0
        %667 = vmatpush1.msra.mxu0 %v469
        %668 = vmatprep.subr.mxu0 0.0
        %669 = vmatpush1.msra.mxu0 %v466
        %670 = vmatprep.subr.mxu0 0.0
        %671 = vmatpush1.msra.mxu0 %v463
        %672 = vmatprep.subr.mxu0 0.0
        %673 = vmatpush1.msra.mxu0 %v460
        %674 = vmatprep.subr.mxu0 0.0
        %675 = vmatpush1.msra.mxu0 %v457
        %676 = vmatprep.subr.mxu0 0.0
        %677 = vmatpush1.msra.mxu0 %v454
        %678 = vmatprep.subr.mxu0 0.0
        %679 = vmatpush1.msra.mxu0 %v451
        %680 = vmatprep.subr.mxu0 0.0
        %681 = vmatpush1.msra.mxu0 %v448
        %682 = vmatprep.subr.mxu0 0.0
        %683 = vmatpush1.msra.mxu0 %v445
        %684 = vmatprep.subr.mxu0 0.0
        %685 = vmatpush2.msra.mxu0 0.0
        %686 = vmatprep.subr.mxu0 0.0
        %687 = vmatpush2.msra.mxu0 0.0
        %688 = vmatprep.subr.mxu0 0.0
        %689 = vmatpush2.msra.mxu0 0.0
        %690 = vmatprep.subr.mxu0 0.0
        %691 = vmatpush2.msra.mxu0 0.0
        %692 = vmatprep.subr.mxu0 0.0
        %693 = vmatpush2.msra.mxu0 0.0
        %694 = vmatprep.subr.mxu0 0.0
        %695 = vmatpush2.msra.mxu0 0.0
        %696 = vmatprep.subr.mxu0 0.0
        %697 = vmatpush2.msra.mxu0 0.0
        %698 = vmatprep.subr.mxu0 0.0
        %699 = vmatpush2.msra.mxu0 0.0
        %700 = vmatprep.subr.mxu0 0.0
        %701 = vmatpush2.msra.mxu0 0.0
        %702 = vmatprep.subr.mxu0 0.0
        %703 = vmatpush2.msra.mxu0 0.0
        %704 = vmatprep.subr.mxu0 0.0
        %705 = vmatpush2.msra.mxu0 0.0
        %706 = vmatprep.subr.mxu0 0.0
        %707 = vmatpush2.msra.mxu0 0.0
        %708 = vmatprep.subr.mxu0 0.0
        %709 = vmatpush2.msra.mxu0 0.0
        %710 = vmatprep.subr.mxu0 0.0
        %711 = vmatpush2.msra.mxu0 0.0
        %712 = vmatprep.subr.mxu0 0.0
        %713 = vmatpush2.msra.mxu0 0.0
        %714 = vmatprep.subr.mxu0 0.0
        %715 = vmatpush2.msra.mxu0 0.0
        %716 = vmatprep.mubr.f32.mxu0 0.0
        %717 = vmatmul.mubr.f32.gmra.mxu0 %v427
        %v718 = vpop.f32.mrf.mxu0
        %v719 = vadd.f32 0.0, %v718
        %v720 = vpop.f32.mrf.mxu0
        %721 = vmatprep.mubr.f32.mxu0 0.0
        %722 = vmatmul.mubr.f32.gmra.mxu0 %v428
        %v723 = vpop.f32.mrf.mxu0
        %v724 = vadd.f32 0.0, %v723
        %v725 = vpop.f32.mrf.mxu0
        %726 = vmatprep.mubr.f32.mxu0 0.0
        %727 = vmatmul.mubr.f32.gmra.mxu0 %v429
        %v728 = vpop.f32.mrf.mxu0
        %v729 = vadd.f32 0.0, %v728
        %v730 = vpop.f32.mrf.mxu0
        %731 = vmatprep.mubr.f32.mxu0 0.0
        %732 = vmatmul.mubr.f32.gmra.mxu0 %v430
        %v733 = vpop.f32.mrf.mxu0
        %v734 = vadd.f32 0.0, %v733
        %v735 = vpop.f32.mrf.mxu0
        %736 = vmatprep.mubr.f32.mxu0 0.0
        %737 = vmatmul.mubr.f32.gmra.mxu0 %v431
        %v738 = vpop.f32.mrf.mxu0
        %v739 = vadd.f32 0.0, %v738
        %v740 = vpop.f32.mrf.mxu0
        %741 = vmatprep.mubr.f32.mxu0 0.0
        %742 = vmatmul.mubr.f32.gmra.mxu0 %v432
        %v743 = vpop.f32.mrf.mxu0
        %v744 = vadd.f32 0.0, %v743
        %v745 = vpop.f32.mrf.mxu0
        %746 = vmatprep.mubr.f32.mxu0 0.0
        %747 = vmatmul.mubr.f32.gmra.mxu0 %v433
        %v748 = vpop.f32.mrf.mxu0
        %v749 = vadd.f32 0.0, %v748
        %v750 = vpop.f32.mrf.mxu0
        %751 = vmatprep.mubr.f32.mxu0 0.0
        %752 = vmatmul.mubr.f32.gmra.mxu0 %v434
        %v753 = vpop.f32.mrf.mxu0
        %v754 = vadd.f32 0.0, %v753
        %v755 = vpop.f32.mrf.mxu0
        %756 = vmatprep.mubr.f32.mxu0 0.0
        %757 = vmatmul.mubr.f32.gmra.mxu0 %v435
        %v758 = vpop.f32.mrf.mxu0
        %v759 = vadd.f32 0.0, %v758
        %v760 = vpop.f32.mrf.mxu0
        %761 = vmatprep.mubr.f32.mxu0 0.0
        %762 = vmatmul.mubr.f32.gmra.mxu0 %v436
        %v763 = vpop.f32.mrf.mxu0
        %v764 = vadd.f32 0.0, %v763
        %v765 = vpop.f32.mrf.mxu0
        %766 = vmatprep.mubr.f32.mxu0 0.0
        %767 = vmatmul.mubr.f32.gmra.mxu0 %v437
        %v768 = vpop.f32.mrf.mxu0
        %v769 = vadd.f32 0.0, %v768
        %v770 = vpop.f32.mrf.mxu0
        %771 = vmatprep.mubr.f32.mxu0 0.0
        %772 = vmatmul.mubr.f32.gmra.mxu0 %v438
        %v773 = vpop.f32.mrf.mxu0
        %v774 = vadd.f32 0.0, %v773
        %v775 = vpop.f32.mrf.mxu0
        %776 = vmatprep.mubr.f32.mxu0 0.0
        %777 = vmatmul.mubr.f32.gmra.mxu0 %v439
        %v778 = vpop.f32.mrf.mxu0
        %v779 = vadd.f32 0.0, %v778
        %v780 = vpop.f32.mrf.mxu0
        %781 = vmatprep.mubr.f32.mxu0 0.0
        %782 = vmatmul.mubr.f32.gmra.mxu0 %v440
        %v783 = vpop.f32.mrf.mxu0
        %v784 = vadd.f32 0.0, %v783
        %v785 = vpop.f32.mrf.mxu0
        %786 = vmatprep.mubr.f32.mxu0 0.0
        %787 = vmatmul.mubr.f32.gmra.mxu0 %v441
        %v788 = vpop.f32.mrf.mxu0
        %v789 = vadd.f32 0.0, %v788
        %v790 = vpop.f32.mrf.mxu0
        %791 = vmatprep.mubr.f32.mxu0 0.0
        %792 = vmatmul.mubr.f32.gmra.mxu0 %v442
        %v793 = vpop.f32.mrf.mxu0
        %v794 = vadd.f32 0.0, %v793
        %v795 = vpop.f32.mrf.mxu0
        %796 = vdwg.mxu0
        %v797 = vlaneseq
        %v798 = vshrl.u32 %v797, 7
        %v799 = vadd.s32 %v798, 8
        %v800 = vadd.s32 %v798, 16
        %v801 = vadd.s32 %v798, 24
        %v802 = vadd.s32 %v798, 32
        %v803 = vadd.s32 %v798, 40
        %v804 = vadd.s32 %v798, 48
        %v805 = vadd.s32 %v798, 56
        %v806 = vadd.s32 %v798, 64
        %v807 = vadd.s32 %v798, 72
        %v808 = vadd.s32 %v798, 80
        %v809 = vadd.s32 %v798, 88
        %v810 = vadd.s32 %v798, 96
        %v811 = vadd.s32 %v798, 104
        %v812 = vadd.s32 %v798, 112
        %v813 = vadd.s32 %v798, 120
        %v814 = vlaneseq
        %v815 = vand.u32 %v814, 127
        %vm816 = vcmp.eq.s32.totalorder %v798, %v815
        %vm817 = vcmp.eq.s32.totalorder %v799, %v815
        %vm818 = vcmp.eq.s32.totalorder %v800, %v815
        %vm819 = vcmp.eq.s32.totalorder %v801, %v815
        %vm820 = vcmp.eq.s32.totalorder %v802, %v815
        %vm821 = vcmp.eq.s32.totalorder %v803, %v815
        %vm822 = vcmp.eq.s32.totalorder %v804, %v815
        %vm823 = vcmp.eq.s32.totalorder %v805, %v815
        %vm824 = vcmp.eq.s32.totalorder %v806, %v815
        %vm825 = vcmp.eq.s32.totalorder %v807, %v815
        %vm826 = vcmp.eq.s32.totalorder %v808, %v815
        %vm827 = vcmp.eq.s32.totalorder %v809, %v815
        %vm828 = vcmp.eq.s32.totalorder %v810, %v815
        %vm829 = vcmp.eq.s32.totalorder %v811, %v815
        %vm830 = vcmp.eq.s32.totalorder %v812, %v815
        %vm831 = vcmp.eq.s32.totalorder %v813, %v815
        %v833 = vlaneseq
        %v834 = vshrl.u32 %v833, 7
        %v835 = vsub.s32 0, %v834
        %v836 = vrot.slane %v346, %v835
        %v838 = vsel %vm816, 1.0, %v836
        %v839 = vsel %vm817, 1.0, %v836
        %v840 = vsel %vm818, 1.0, %v836
        %v841 = vsel %vm819, 1.0, %v836
        %v842 = vsel %vm820, 1.0, %v836
        %v843 = vsel %vm821, 1.0, %v836
        %v844 = vsel %vm822, 1.0, %v836
        %v845 = vsel %vm823, 1.0, %v836
        %v846 = vsel %vm824, 1.0, %v836
        %v847 = vsel %vm825, 1.0, %v836
        %v848 = vsel %vm826, 1.0, %v836
        %v849 = vsel %vm827, 1.0, %v836
        %v850 = vsel %vm828, 1.0, %v836
        %v851 = vsel %vm829, 1.0, %v836
        %v852 = vsel %vm830, 1.0, %v836
        %v853 = vsel %vm831, 1.0, %v836
        %vm854 = vcmp.lt.s32.totalorder %v815, 10
        %v855 = vsel %vm854, 0.0, -1e+09
        %vm856 = vcmask 261120
        %v858 = vsel %vm856, %v558, 0
        %v861 = vsel %vm856, %v564, 0
        %v864 = vsel %vm856, %v570, 0
        %v867 = vsel %vm856, %v576, 0
        %v870 = vsel %vm856, %v582, 0
        %v873 = vsel %vm856, %v588, 0
        %v876 = vsel %vm856, %v594, 0
        %v879 = vsel %vm856, %v600, 0
        %v882 = vsel %vm856, %v606, 0
        %v885 = vsel %vm856, %v612, 0
        %v888 = vsel %vm856, %v618, 0
        %v891 = vsel %vm856, %v624, 0
        %v894 = vsel %vm856, %v630, 0
        %v897 = vsel %vm856, %v636, 0
        %v900 = vsel %vm856, %v642, 0
        %v903 = vsel %vm856, %v648, 0
        %v906 = vsel %vm856, %v560, 0
        %v909 = vsel %vm856, %v566, 0
        %v912 = vsel %vm856, %v572, 0
        %v915 = vsel %vm856, %v578, 0
        %v918 = vsel %vm856, %v584, 0
        %v921 = vsel %vm856, %v590, 0
        %v924 = vsel %vm856, %v596, 0
        %v927 = vsel %vm856, %v602, 0
        %v930 = vsel %vm856, %v608, 0
        %v933 = vsel %vm856, %v614, 0
        %v936 = vsel %vm856, %v620, 0
        %v939 = vsel %vm856, %v626, 0
        %v942 = vsel %vm856, %v632, 0
        %v945 = vsel %vm856, %v638, 0
        %v948 = vsel %vm856, %v644, 0
        %v951 = vsel %vm856, %v650, 0
        %953 = vmatprep.subr.mxu0 0.0
        %954 = vmatpush1.xpose.msra.mxu0 %v951
        %955 = vmatprep.subr.mxu0 0.0
        %956 = vmatpush1.xpose.msra.mxu0 %v948
        %957 = vmatprep.subr.mxu0 0.0
        %958 = vmatpush1.xpose.msra.mxu0 %v945
        %959 = vmatprep.subr.mxu0 0.0
        %960 = vmatpush1.xpose.msra.mxu0 %v942
        %961 = vmatprep.subr.mxu0 0.0
        %962 = vmatpush1.xpose.msra.mxu0 %v939
        %963 = vmatprep.subr.mxu0 0.0
        %964 = vmatpush1.xpose.msra.mxu0 %v936
        %965 = vmatprep.subr.mxu0 0.0
        %966 = vmatpush1.xpose.msra.mxu0 %v933
        %967 = vmatprep.subr.mxu0 0.0
        %968 = vmatpush1.xpose.msra.mxu0 %v930
        %969 = vmatprep.subr.mxu0 0.0
        %970 = vmatpush1.xpose.msra.mxu0 %v927
        %971 = vmatprep.subr.mxu0 0.0
        %972 = vmatpush1.xpose.msra.mxu0 %v924
        %973 = vmatprep.subr.mxu0 0.0
        %974 = vmatpush1.xpose.msra.mxu0 %v921
        %975 = vmatprep.subr.mxu0 0.0
        %976 = vmatpush1.xpose.msra.mxu0 %v918
        %977 = vmatprep.subr.mxu0 0.0
        %978 = vmatpush1.xpose.msra.mxu0 %v915
        %979 = vmatprep.subr.mxu0 0.0
        %980 = vmatpush1.xpose.msra.mxu0 %v912
        %981 = vmatprep.subr.mxu0 0.0
        %982 = vmatpush1.xpose.msra.mxu0 %v909
        %983 = vmatprep.subr.mxu0 0.0
        %984 = vmatpush1.xpose.msra.mxu0 %v906
        %985 = vmatprep.subr.mxu0 0.0
        %986 = vmatpush2.xpose.msra.mxu0 0.0
        %987 = vmatprep.subr.mxu0 0.0
        %988 = vmatpush2.xpose.msra.mxu0 0.0
        %989 = vmatprep.subr.mxu0 0.0
        %990 = vmatpush2.xpose.msra.mxu0 0.0
        %991 = vmatprep.subr.mxu0 0.0
        %992 = vmatpush2.xpose.msra.mxu0 0.0
        %993 = vmatprep.subr.mxu0 0.0
        %994 = vmatpush2.xpose.msra.mxu0 0.0
        %995 = vmatprep.subr.mxu0 0.0
        %996 = vmatpush2.xpose.msra.mxu0 0.0
        %997 = vmatprep.subr.mxu0 0.0
        %998 = vmatpush2.xpose.msra.mxu0 0.0
        %999 = vmatprep.subr.mxu0 0.0
        %1000 = vmatpush2.xpose.msra.mxu0 0.0
        %1001 = vmatprep.subr.mxu0 0.0
        %1002 = vmatpush2.xpose.msra.mxu0 0.0
        %1003 = vmatprep.subr.mxu0 0.0
        %1004 = vmatpush2.xpose.msra.mxu0 0.0
        %1005 = vmatprep.subr.mxu0 0.0
        %1006 = vmatpush2.xpose.msra.mxu0 0.0
        %1007 = vmatprep.subr.mxu0 0.0
        %1008 = vmatpush2.xpose.msra.mxu0 0.0
        %1009 = vmatprep.subr.mxu0 0.0
        %1010 = vmatpush2.xpose.msra.mxu0 0.0
        %1011 = vmatprep.subr.mxu0 0.0
        %1012 = vmatpush2.xpose.msra.mxu0 0.0
        %1013 = vmatprep.subr.mxu0 0.0
        %1014 = vmatpush2.xpose.msra.mxu0 0.0
        %1015 = vmatprep.subr.mxu0 0.0
        %1016 = vmatpush2.xpose.msra.mxu0 0.0
        %1017 = vmatprep.mubr.f32.mxu0 0.0
        %1018 = vmatmul.mubr.f32.gmra.mxu0 %v858
        %v1019 = vpop.f32.mrf.mxu0
        %v1020 = vadd.f32 0.0, %v1019
        %v1021 = vpop.f32.mrf.mxu0
        %1022 = vmatprep.mubr.f32.mxu0 0.0
        %1023 = vmatmul.mubr.f32.gmra.mxu0 %v861
        %v1024 = vpop.f32.mrf.mxu0
        %v1025 = vadd.f32 0.0, %v1024
        %v1026 = vpop.f32.mrf.mxu0
        %1027 = vmatprep.mubr.f32.mxu0 0.0
        %1028 = vmatmul.mubr.f32.gmra.mxu0 %v864
        %v1029 = vpop.f32.mrf.mxu0
        %v1030 = vadd.f32 0.0, %v1029
        %v1031 = vpop.f32.mrf.mxu0
        %1032 = vmatprep.mubr.f32.mxu0 0.0
        %1033 = vmatmul.mubr.f32.gmra.mxu0 %v867
        %v1034 = vpop.f32.mrf.mxu0
        %v1035 = vadd.f32 0.0, %v1034
        %v1036 = vpop.f32.mrf.mxu0
        %1037 = vmatprep.mubr.f32.mxu0 0.0
        %1038 = vmatmul.mubr.f32.gmra.mxu0 %v870
        %v1039 = vpop.f32.mrf.mxu0
        %v1040 = vadd.f32 0.0, %v1039
        %v1041 = vpop.f32.mrf.mxu0
        %1042 = vmatprep.mubr.f32.mxu0 0.0
        %1043 = vmatmul.mubr.f32.gmra.mxu0 %v873
        %v1044 = vpop.f32.mrf.mxu0
        %v1045 = vadd.f32 0.0, %v1044
        %v1046 = vpop.f32.mrf.mxu0
        %1047 = vmatprep.mubr.f32.mxu0 0.0
        %1048 = vmatmul.mubr.f32.gmra.mxu0 %v876
        %v1049 = vpop.f32.mrf.mxu0
        %v1050 = vadd.f32 0.0, %v1049
        %v1051 = vpop.f32.mrf.mxu0
        %1052 = vmatprep.mubr.f32.mxu0 0.0
        %1053 = vmatmul.mubr.f32.gmra.mxu0 %v879
        %v1054 = vpop.f32.mrf.mxu0
        %v1055 = vadd.f32 0.0, %v1054
        %v1056 = vpop.f32.mrf.mxu0
        %1057 = vmatprep.mubr.f32.mxu0 0.0
        %1058 = vmatmul.mubr.f32.gmra.mxu0 %v882
        %v1059 = vpop.f32.mrf.mxu0
        %v1060 = vadd.f32 0.0, %v1059
        %v1061 = vpop.f32.mrf.mxu0
        %1062 = vmatprep.mubr.f32.mxu0 0.0
        %1063 = vmatmul.mubr.f32.gmra.mxu0 %v885
        %v1064 = vpop.f32.mrf.mxu0
        %v1065 = vadd.f32 0.0, %v1064
        %v1066 = vpop.f32.mrf.mxu0
        %1067 = vmatprep.mubr.f32.mxu0 0.0
        %1068 = vmatmul.mubr.f32.gmra.mxu0 %v888
        %v1069 = vpop.f32.mrf.mxu0
        %v1070 = vadd.f32 0.0, %v1069
        %v1071 = vpop.f32.mrf.mxu0
        %1072 = vmatprep.mubr.f32.mxu0 0.0
        %1073 = vmatmul.mubr.f32.gmra.mxu0 %v891
        %v1074 = vpop.f32.mrf.mxu0
        %v1075 = vadd.f32 0.0, %v1074
        %v1076 = vpop.f32.mrf.mxu0
        %1077 = vmatprep.mubr.f32.mxu0 0.0
        %1078 = vmatmul.mubr.f32.gmra.mxu0 %v894
        %v1079 = vpop.f32.mrf.mxu0
        %v1080 = vadd.f32 0.0, %v1079
        %v1081 = vpop.f32.mrf.mxu0
        %1082 = vmatprep.mubr.f32.mxu0 0.0
        %1083 = vmatmul.mubr.f32.gmra.mxu0 %v897
        %v1084 = vpop.f32.mrf.mxu0
        %v1085 = vadd.f32 0.0, %v1084
        %v1086 = vpop.f32.mrf.mxu0
        %1087 = vmatprep.mubr.f32.mxu0 0.0
        %1088 = vmatmul.mubr.f32.gmra.mxu0 %v900
        %v1089 = vpop.f32.mrf.mxu0
        %v1090 = vadd.f32 0.0, %v1089
        %v1091 = vpop.f32.mrf.mxu0
        %1092 = vmatprep.mubr.f32.mxu0 0.0
        %1093 = vmatmul.mubr.f32.gmra.mxu0 %v903
        %v1094 = vpop.f32.mrf.mxu0
        %v1095 = vadd.f32 0.0, %v1094
        %v1096 = vpop.f32.mrf.mxu0
        %1097 = vdwg.mxu0
        %v1098 = vmul.f32 %v1020, 0.17677669
        %v1099 = vmul.f32 %v1025, 0.17677669
        %v1100 = vmul.f32 %v1030, 0.17677669
        %v1101 = vmul.f32 %v1035, 0.17677669
        %v1102 = vmul.f32 %v1040, 0.17677669
        %v1103 = vmul.f32 %v1045, 0.17677669
        %v1104 = vmul.f32 %v1050, 0.17677669
        %v1105 = vmul.f32 %v1055, 0.17677669
        %v1106 = vmul.f32 %v1060, 0.17677669
        %v1107 = vmul.f32 %v1065, 0.17677669
        %v1108 = vmul.f32 %v1070, 0.17677669
        %v1109 = vmul.f32 %v1075, 0.17677669
        %v1110 = vmul.f32 %v1080, 0.17677669
        %v1111 = vmul.f32 %v1085, 0.17677669
        %v1112 = vmul.f32 %v1090, 0.17677669
        %v1113 = vmul.f32 %v1095, 0.17677669
        %v1114 = vadd.f32 %v1098, %v855
        %v1115 = vadd.f32 %v1099, %v855
        %v1116 = vadd.f32 %v1100, %v855
        %v1117 = vadd.f32 %v1101, %v855
        %v1118 = vadd.f32 %v1102, %v855
        %v1119 = vadd.f32 %v1103, %v855
        %v1120 = vadd.f32 %v1104, %v855
        %v1121 = vadd.f32 %v1105, %v855
        %v1122 = vadd.f32 %v1106, %v855
        %v1123 = vadd.f32 %v1107, %v855
        %v1124 = vadd.f32 %v1108, %v855
        %v1125 = vadd.f32 %v1109, %v855
        %v1126 = vadd.f32 %v1110, %v855
        %v1127 = vadd.f32 %v1111, %v855
        %v1128 = vadd.f32 %v1112, %v855
        %v1129 = vadd.f32 %v1113, %v855
        %1130 = vmax.xlane.f32.xlu0 %v1114
        %v1131 = vpop.xlane.xlu0 %1130
        %1132 = vmax.xlane.f32.xlu0 %v1115
        %v1133 = vpop.xlane.xlu0 %1132
        %1134 = vmax.xlane.f32.xlu0 %v1116
        %v1135 = vpop.xlane.xlu0 %1134
        %1136 = vmax.xlane.f32.xlu0 %v1117
        %v1137 = vpop.xlane.xlu0 %1136
        %1138 = vmax.xlane.f32.xlu0 %v1118
        %v1139 = vpop.xlane.xlu0 %1138
        %1140 = vmax.xlane.f32.xlu0 %v1119
        %v1141 = vpop.xlane.xlu0 %1140
        %1142 = vmax.xlane.f32.xlu0 %v1120
        %v1143 = vpop.xlane.xlu0 %1142
        %1144 = vmax.xlane.f32.xlu0 %v1121
        %v1145 = vpop.xlane.xlu0 %1144
        %1146 = vmax.xlane.f32.xlu0 %v1122
        %v1147 = vpop.xlane.xlu0 %1146
        %1148 = vmax.xlane.f32.xlu0 %v1123
        %v1149 = vpop.xlane.xlu0 %1148
        %1150 = vmax.xlane.f32.xlu0 %v1124
        %v1151 = vpop.xlane.xlu0 %1150
        %1152 = vmax.xlane.f32.xlu0 %v1125
        %v1153 = vpop.xlane.xlu0 %1152
        %1154 = vmax.xlane.f32.xlu0 %v1126
        %v1155 = vpop.xlane.xlu0 %1154
        %1156 = vmax.xlane.f32.xlu0 %v1127
        %v1157 = vpop.xlane.xlu0 %1156
        %1158 = vmax.xlane.f32.xlu0 %v1128
        %v1159 = vpop.xlane.xlu0 %1158
        %1160 = vmax.xlane.f32.xlu0 %v1129
        %v1161 = vpop.xlane.xlu0 %1160
        %v1162 = vsub.f32 %v1114, %v1131
        %v1163 = vsub.f32 %v1115, %v1133
        %v1164 = vsub.f32 %v1116, %v1135
        %v1165 = vsub.f32 %v1117, %v1137
        %v1166 = vsub.f32 %v1118, %v1139
        %v1167 = vsub.f32 %v1119, %v1141
        %v1168 = vsub.f32 %v1120, %v1143
        %v1169 = vsub.f32 %v1121, %v1145
        %v1170 = vsub.f32 %v1122, %v1147
        %v1171 = vsub.f32 %v1123, %v1149
        %v1172 = vsub.f32 %v1124, %v1151
        %v1173 = vsub.f32 %v1125, %v1153
        %v1174 = vsub.f32 %v1126, %v1155
        %v1175 = vsub.f32 %v1127, %v1157
        %v1176 = vsub.f32 %v1128, %v1159
        %v1177 = vsub.f32 %v1129, %v1161
        %v1178 = vmul.f32 %v1162, 1.442695
        %v1179 = vpow.pop %v1178
        %v1180 = vmul.f32 %v1163, 1.442695
        %v1181 = vpow.pop %v1180
        %v1182 = vmul.f32 %v1164, 1.442695
        %v1183 = vpow.pop %v1182
        %v1184 = vmul.f32 %v1165, 1.442695
        %v1185 = vpow.pop %v1184
        %v1186 = vmul.f32 %v1166, 1.442695
        %v1187 = vpow.pop %v1186
        %v1188 = vmul.f32 %v1167, 1.442695
        %v1189 = vpow.pop %v1188
        %v1190 = vmul.f32 %v1168, 1.442695
        %v1191 = vpow.pop %v1190
        %v1192 = vmul.f32 %v1169, 1.442695
        %v1193 = vpow.pop %v1192
        %v1194 = vmul.f32 %v1170, 1.442695
        %v1195 = vpow.pop %v1194
        %v1196 = vmul.f32 %v1171, 1.442695
        %v1197 = vpow.pop %v1196
        %v1198 = vmul.f32 %v1172, 1.442695
        %v1199 = vpow.pop %v1198
        %v1200 = vmul.f32 %v1173, 1.442695
        %v1201 = vpow.pop %v1200
        %v1202 = vmul.f32 %v1174, 1.442695
        %v1203 = vpow.pop %v1202
        %v1204 = vmul.f32 %v1175, 1.442695
        %v1205 = vpow.pop %v1204
        %v1206 = vmul.f32 %v1176, 1.442695
        %v1207 = vpow.pop %v1206
        %v1208 = vmul.f32 %v1177, 1.442695
        %v1209 = vpow.pop %v1208
        %v1210 = vmul.f32 %v1179, %v838
        %v1211 = vmul.f32 %v1181, %v839
        %v1212 = vmul.f32 %v1183, %v840
        %v1213 = vmul.f32 %v1185, %v841
        %v1214 = vmul.f32 %v1187, %v842
        %v1215 = vmul.f32 %v1189, %v843
        %v1216 = vmul.f32 %v1191, %v844
        %v1217 = vmul.f32 %v1193, %v845
        %v1218 = vmul.f32 %v1195, %v846
        %v1219 = vmul.f32 %v1197, %v847
        %v1220 = vmul.f32 %v1199, %v848
        %v1221 = vmul.f32 %v1201, %v849
        %v1222 = vmul.f32 %v1203, %v850
        %v1223 = vmul.f32 %v1205, %v851
        %v1224 = vmul.f32 %v1207, %v852
        %v1225 = vmul.f32 %v1209, %v853
        %1226 = vadd.xlane.f32.xlu0 %v1210
        %v1227 = vpop.xlane.xlu0 %1226
        %1228 = vadd.xlane.f32.xlu0 %v1211
        %v1229 = vpop.xlane.xlu0 %1228
        %1230 = vadd.xlane.f32.xlu0 %v1212
        %v1231 = vpop.xlane.xlu0 %1230
        %1232 = vadd.xlane.f32.xlu0 %v1213
        %v1233 = vpop.xlane.xlu0 %1232
        %1234 = vadd.xlane.f32.xlu0 %v1214
        %v1235 = vpop.xlane.xlu0 %1234
        %1236 = vadd.xlane.f32.xlu0 %v1215
        %v1237 = vpop.xlane.xlu0 %1236
        %1238 = vadd.xlane.f32.xlu0 %v1216
        %v1239 = vpop.xlane.xlu0 %1238
        %1240 = vadd.xlane.f32.xlu0 %v1217
        %v1241 = vpop.xlane.xlu0 %1240
        %1242 = vadd.xlane.f32.xlu0 %v1218
        %v1243 = vpop.xlane.xlu0 %1242
        %1244 = vadd.xlane.f32.xlu0 %v1219
        %v1245 = vpop.xlane.xlu0 %1244
        %1246 = vadd.xlane.f32.xlu0 %v1220
        %v1247 = vpop.xlane.xlu0 %1246
        %1248 = vadd.xlane.f32.xlu0 %v1221
        %v1249 = vpop.xlane.xlu0 %1248
        %1250 = vadd.xlane.f32.xlu0 %v1222
        %v1251 = vpop.xlane.xlu0 %1250
        %1252 = vadd.xlane.f32.xlu0 %v1223
        %v1253 = vpop.xlane.xlu0 %1252
        %1254 = vadd.xlane.f32.xlu0 %v1224
        %v1255 = vpop.xlane.xlu0 %1254
        %1256 = vadd.xlane.f32.xlu0 %v1225
        %v1257 = vpop.xlane.xlu0 %1256
        %v1258 = vadd.f32 %v1227, 1e-06
        %v1259 = vadd.f32 %v1229, 1e-06
        %v1260 = vadd.f32 %v1231, 1e-06
        %v1261 = vadd.f32 %v1233, 1e-06
        %v1262 = vadd.f32 %v1235, 1e-06
        %v1263 = vadd.f32 %v1237, 1e-06
        %v1264 = vadd.f32 %v1239, 1e-06
        %v1265 = vadd.f32 %v1241, 1e-06
        %v1266 = vadd.f32 %v1243, 1e-06
        %v1267 = vadd.f32 %v1245, 1e-06
        %v1268 = vadd.f32 %v1247, 1e-06
        %v1269 = vadd.f32 %v1249, 1e-06
        %v1270 = vadd.f32 %v1251, 1e-06
        %v1271 = vadd.f32 %v1253, 1e-06
        %v1272 = vadd.f32 %v1255, 1e-06
        %v1273 = vadd.f32 %v1257, 1e-06
        %v1274 = vrcp.pop %v1258
        %v1275 = vrcp.pop %v1259
        %v1276 = vrcp.pop %v1260
        %v1277 = vrcp.pop %v1261
        %v1278 = vrcp.pop %v1262
        %v1279 = vrcp.pop %v1263
        %v1280 = vrcp.pop %v1264
        %v1281 = vrcp.pop %v1265
        %v1282 = vrcp.pop %v1266
        %v1283 = vrcp.pop %v1267
        %v1284 = vrcp.pop %v1268
        %v1285 = vrcp.pop %v1269
        %v1286 = vrcp.pop %v1270
        %v1287 = vrcp.pop %v1271
        %v1288 = vrcp.pop %v1272
        %v1289 = vrcp.pop %v1273
        %v1290 = vadd.f32 %v1210, 1e-07
        %v1291 = vadd.f32 %v1211, 1e-07
        %v1292 = vadd.f32 %v1212, 1e-07
        %v1293 = vadd.f32 %v1213, 1e-07
        %v1294 = vadd.f32 %v1214, 1e-07
        %v1295 = vadd.f32 %v1215, 1e-07
        %v1296 = vadd.f32 %v1216, 1e-07
        %v1297 = vadd.f32 %v1217, 1e-07
        %v1298 = vadd.f32 %v1218, 1e-07
        %v1299 = vadd.f32 %v1219, 1e-07
        %v1300 = vadd.f32 %v1220, 1e-07
        %v1301 = vadd.f32 %v1221, 1e-07
        %v1302 = vadd.f32 %v1222, 1e-07
        %v1303 = vadd.f32 %v1223, 1e-07
        %v1304 = vadd.f32 %v1224, 1e-07
        %v1305 = vadd.f32 %v1225, 1e-07
        %v1306 = vmul.f32 %v1290, %v1274
        %v1307 = vmul.f32 %v1291, %v1275
        %v1308 = vmul.f32 %v1292, %v1276
        %v1309 = vmul.f32 %v1293, %v1277
        %v1310 = vmul.f32 %v1294, %v1278
        %v1311 = vmul.f32 %v1295, %v1279
        %v1312 = vmul.f32 %v1296, %v1280
        %v1313 = vmul.f32 %v1297, %v1281
        %v1314 = vmul.f32 %v1298, %v1282
        %v1315 = vmul.f32 %v1299, %v1283
        %v1316 = vmul.f32 %v1300, %v1284
        %v1317 = vmul.f32 %v1301, %v1285
        %v1318 = vmul.f32 %v1302, %v1286
        %v1319 = vmul.f32 %v1303, %v1287
        %v1320 = vmul.f32 %v1304, %v1288
        %v1321 = vmul.f32 %v1305, %v1289
        %1322 = vmatprep.subr.mxu0 0.0
        %1323 = vmatpush1.msra.mxu0 %v794
        %1324 = vmatprep.subr.mxu0 0.0
        %1325 = vmatpush1.msra.mxu0 %v789
        %1326 = vmatprep.subr.mxu0 0.0
        %1327 = vmatpush1.msra.mxu0 %v784
        %1328 = vmatprep.subr.mxu0 0.0
        %1329 = vmatpush1.msra.mxu0 %v779
        %1330 = vmatprep.subr.mxu0 0.0
        %1331 = vmatpush1.msra.mxu0 %v774
        %1332 = vmatprep.subr.mxu0 0.0
        %1333 = vmatpush1.msra.mxu0 %v769
        %1334 = vmatprep.subr.mxu0 0.0
        %1335 = vmatpush1.msra.mxu0 %v764
        %1336 = vmatprep.subr.mxu0 0.0
        %1337 = vmatpush1.msra.mxu0 %v759
        %1338 = vmatprep.subr.mxu0 0.0
        %1339 = vmatpush1.msra.mxu0 %v754
        %1340 = vmatprep.subr.mxu0 0.0
        %1341 = vmatpush1.msra.mxu0 %v749
        %1342 = vmatprep.subr.mxu0 0.0
        %1343 = vmatpush1.msra.mxu0 %v744
        %1344 = vmatprep.subr.mxu0 0.0
        %1345 = vmatpush1.msra.mxu0 %v739
        %1346 = vmatprep.subr.mxu0 0.0
        %1347 = vmatpush1.msra.mxu0 %v734
        %1348 = vmatprep.subr.mxu0 0.0
        %1349 = vmatpush1.msra.mxu0 %v729
        %1350 = vmatprep.subr.mxu0 0.0
        %1351 = vmatpush1.msra.mxu0 %v724
        %1352 = vmatprep.subr.mxu0 0.0
        %1353 = vmatpush1.msra.mxu0 %v719
        %1354 = vmatprep.subr.mxu0 0.0
        %1355 = vmatpush2.msra.mxu0 0.0
        %1356 = vmatprep.subr.mxu0 0.0
        %1357 = vmatpush2.msra.mxu0 0.0
        %1358 = vmatprep.subr.mxu0 0.0
        %1359 = vmatpush2.msra.mxu0 0.0
        %1360 = vmatprep.subr.mxu0 0.0
        %1361 = vmatpush2.msra.mxu0 0.0
        %1362 = vmatprep.subr.mxu0 0.0
        %1363 = vmatpush2.msra.mxu0 0.0
        %1364 = vmatprep.subr.mxu0 0.0
        %1365 = vmatpush2.msra.mxu0 0.0
        %1366 = vmatprep.subr.mxu0 0.0
        %1367 = vmatpush2.msra.mxu0 0.0
        %1368 = vmatprep.subr.mxu0 0.0
        %1369 = vmatpush2.msra.mxu0 0.0
        %1370 = vmatprep.subr.mxu0 0.0
        %1371 = vmatpush2.msra.mxu0 0.0
        %1372 = vmatprep.subr.mxu0 0.0
        %1373 = vmatpush2.msra.mxu0 0.0
        %1374 = vmatprep.subr.mxu0 0.0
        %1375 = vmatpush2.msra.mxu0 0.0
        %1376 = vmatprep.subr.mxu0 0.0
        %1377 = vmatpush2.msra.mxu0 0.0
        %1378 = vmatprep.subr.mxu0 0.0
        %1379 = vmatpush2.msra.mxu0 0.0
        %1380 = vmatprep.subr.mxu0 0.0
        %1381 = vmatpush2.msra.mxu0 0.0
        %1382 = vmatprep.subr.mxu0 0.0
        %1383 = vmatpush2.msra.mxu0 0.0
        %1384 = vmatprep.subr.mxu0 0.0
        %1385 = vmatpush2.msra.mxu0 0.0
        %1386 = vmatprep.mubr.f32.mxu0 0.0
        %1387 = vmatmul.mubr.f32.gmra.mxu0 %v1306
        %v1388 = vpop.f32.mrf.mxu0
        %v1389 = vadd.f32 0.0, %v1388
        %v1390 = vpop.f32.mrf.mxu0
        %1391 = vmatprep.mubr.f32.mxu0 0.0
        %1392 = vmatmul.mubr.f32.gmra.mxu0 %v1307
        %v1393 = vpop.f32.mrf.mxu0
        %v1394 = vadd.f32 0.0, %v1393
        %v1395 = vpop.f32.mrf.mxu0
        %1396 = vmatprep.mubr.f32.mxu0 0.0
        %1397 = vmatmul.mubr.f32.gmra.mxu0 %v1308
        %v1398 = vpop.f32.mrf.mxu0
        %v1399 = vadd.f32 0.0, %v1398
        %v1400 = vpop.f32.mrf.mxu0
        %1401 = vmatprep.mubr.f32.mxu0 0.0
        %1402 = vmatmul.mubr.f32.gmra.mxu0 %v1309
        %v1403 = vpop.f32.mrf.mxu0
        %v1404 = vadd.f32 0.0, %v1403
        %v1405 = vpop.f32.mrf.mxu0
        %1406 = vmatprep.mubr.f32.mxu0 0.0
        %1407 = vmatmul.mubr.f32.gmra.mxu0 %v1310
        %v1408 = vpop.f32.mrf.mxu0
        %v1409 = vadd.f32 0.0, %v1408
        %v1410 = vpop.f32.mrf.mxu0
        %1411 = vmatprep.mubr.f32.mxu0 0.0
        %1412 = vmatmul.mubr.f32.gmra.mxu0 %v1311
        %v1413 = vpop.f32.mrf.mxu0
        %v1414 = vadd.f32 0.0, %v1413
        %v1415 = vpop.f32.mrf.mxu0
        %1416 = vmatprep.mubr.f32.mxu0 0.0
        %1417 = vmatmul.mubr.f32.gmra.mxu0 %v1312
        %v1418 = vpop.f32.mrf.mxu0
        %v1419 = vadd.f32 0.0, %v1418
        %v1420 = vpop.f32.mrf.mxu0
        %1421 = vmatprep.mubr.f32.mxu0 0.0
        %1422 = vmatmul.mubr.f32.gmra.mxu0 %v1313
        %v1423 = vpop.f32.mrf.mxu0
        %v1424 = vadd.f32 0.0, %v1423
        %v1425 = vpop.f32.mrf.mxu0
        %1426 = vmatprep.mubr.f32.mxu0 0.0
        %1427 = vmatmul.mubr.f32.gmra.mxu0 %v1314
        %v1428 = vpop.f32.mrf.mxu0
        %v1429 = vadd.f32 0.0, %v1428
        %v1430 = vpop.f32.mrf.mxu0
        %1431 = vmatprep.mubr.f32.mxu0 0.0
        %1432 = vmatmul.mubr.f32.gmra.mxu0 %v1315
        %v1433 = vpop.f32.mrf.mxu0
        %v1434 = vadd.f32 0.0, %v1433
        %v1435 = vpop.f32.mrf.mxu0
        %1436 = vmatprep.mubr.f32.mxu0 0.0
        %1437 = vmatmul.mubr.f32.gmra.mxu0 %v1316
        %v1438 = vpop.f32.mrf.mxu0
        %v1439 = vadd.f32 0.0, %v1438
        %v1440 = vpop.f32.mrf.mxu0
        %1441 = vmatprep.mubr.f32.mxu0 0.0
        %1442 = vmatmul.mubr.f32.gmra.mxu0 %v1317
        %v1443 = vpop.f32.mrf.mxu0
        %v1444 = vadd.f32 0.0, %v1443
        %v1445 = vpop.f32.mrf.mxu0
        %1446 = vmatprep.mubr.f32.mxu0 0.0
        %1447 = vmatmul.mubr.f32.gmra.mxu0 %v1318
        %v1448 = vpop.f32.mrf.mxu0
        %v1449 = vadd.f32 0.0, %v1448
        %v1450 = vpop.f32.mrf.mxu0
        %1451 = vmatprep.mubr.f32.mxu0 0.0
        %1452 = vmatmul.mubr.f32.gmra.mxu0 %v1319
        %v1453 = vpop.f32.mrf.mxu0
        %v1454 = vadd.f32 0.0, %v1453
        %v1455 = vpop.f32.mrf.mxu0
        %1456 = vmatprep.mubr.f32.mxu0 0.0
        %1457 = vmatmul.mubr.f32.gmra.mxu0 %v1320
        %v1458 = vpop.f32.mrf.mxu0
        %v1459 = vadd.f32 0.0, %v1458
        %v1460 = vpop.f32.mrf.mxu0
        %1461 = vmatprep.mubr.f32.mxu0 0.0
        %1462 = vmatmul.mubr.f32.gmra.mxu0 %v1321
        %v1463 = vpop.f32.mrf.mxu0
        %v1464 = vadd.f32 0.0, %v1463
        %v1465 = vpop.f32.mrf.mxu0
        %1466 = vdwg.mxu0
        %1467 = vrot.lane.b32.xlu0 %v558, 96
        %v1468 = vpop.permute.xlu0 %1467
        %1469 = vrot.lane.b32.xlu0 %v564, 96
        %v1470 = vpop.permute.xlu0 %1469
        %1471 = vrot.lane.b32.xlu0 %v570, 96
        %v1472 = vpop.permute.xlu0 %1471
        %1473 = vrot.lane.b32.xlu0 %v576, 96
        %v1474 = vpop.permute.xlu0 %1473
        %1475 = vrot.lane.b32.xlu0 %v582, 96
        %v1476 = vpop.permute.xlu0 %1475
        %1477 = vrot.lane.b32.xlu0 %v588, 96
        %v1478 = vpop.permute.xlu0 %1477
        %1479 = vrot.lane.b32.xlu0 %v594, 96
        %v1480 = vpop.permute.xlu0 %1479
        %1481 = vrot.lane.b32.xlu0 %v600, 96
        %v1482 = vpop.permute.xlu0 %1481
        %1483 = vrot.lane.b32.xlu0 %v606, 96
        %v1484 = vpop.permute.xlu0 %1483
        %1485 = vrot.lane.b32.xlu0 %v612, 96
        %v1486 = vpop.permute.xlu0 %1485
        %1487 = vrot.lane.b32.xlu0 %v618, 96
        %v1488 = vpop.permute.xlu0 %1487
        %1489 = vrot.lane.b32.xlu0 %v624, 96
        %v1490 = vpop.permute.xlu0 %1489
        %1491 = vrot.lane.b32.xlu0 %v630, 96
        %v1492 = vpop.permute.xlu0 %1491
        %1493 = vrot.lane.b32.xlu0 %v636, 96
        %v1494 = vpop.permute.xlu0 %1493
        %1495 = vrot.lane.b32.xlu0 %v642, 96
        %v1496 = vpop.permute.xlu0 %1495
        %1497 = vrot.lane.b32.xlu0 %v648, 96
        %v1498 = vpop.permute.xlu0 %1497
        %1499 = vrot.lane.b32.xlu0 %v560, 96
        %v1500 = vpop.permute.xlu0 %1499
        %1501 = vrot.lane.b32.xlu0 %v566, 96
        %v1502 = vpop.permute.xlu0 %1501
        %1503 = vrot.lane.b32.xlu0 %v572, 96
        %v1504 = vpop.permute.xlu0 %1503
        %1505 = vrot.lane.b32.xlu0 %v578, 96
        %v1506 = vpop.permute.xlu0 %1505
        %1507 = vrot.lane.b32.xlu0 %v584, 96
        %v1508 = vpop.permute.xlu0 %1507
        %1509 = vrot.lane.b32.xlu0 %v590, 96
        %v1510 = vpop.permute.xlu0 %1509
        %1511 = vrot.lane.b32.xlu0 %v596, 96
        %v1512 = vpop.permute.xlu0 %1511
        %1513 = vrot.lane.b32.xlu0 %v602, 96
        %v1514 = vpop.permute.xlu0 %1513
        %1515 = vrot.lane.b32.xlu0 %v608, 96
        %v1516 = vpop.permute.xlu0 %1515
        %1517 = vrot.lane.b32.xlu0 %v614, 96
        %v1518 = vpop.permute.xlu0 %1517
        %1519 = vrot.lane.b32.xlu0 %v620, 96
        %v1520 = vpop.permute.xlu0 %1519
        %1521 = vrot.lane.b32.xlu0 %v626, 96
        %v1522 = vpop.permute.xlu0 %1521
        %1523 = vrot.lane.b32.xlu0 %v632, 96
        %v1524 = vpop.permute.xlu0 %1523
        %1525 = vrot.lane.b32.xlu0 %v638, 96
        %v1526 = vpop.permute.xlu0 %1525
        %1527 = vrot.lane.b32.xlu0 %v644, 96
        %v1528 = vpop.permute.xlu0 %1527
        %1529 = vrot.lane.b32.xlu0 %v650, 96
        %v1530 = vpop.permute.xlu0 %1529
        %v1531 = vsel %vm856, %v1468, 0
        %v1533 = vsel %vm856, %v1470, 0
        %v1535 = vsel %vm856, %v1472, 0
        %v1537 = vsel %vm856, %v1474, 0
        %v1539 = vsel %vm856, %v1476, 0
        %v1541 = vsel %vm856, %v1478, 0
        %v1543 = vsel %vm856, %v1480, 0
        %v1545 = vsel %vm856, %v1482, 0
        %v1547 = vsel %vm856, %v1484, 0
        %v1549 = vsel %vm856, %v1486, 0
        %v1551 = vsel %vm856, %v1488, 0
        %v1553 = vsel %vm856, %v1490, 0
        %v1555 = vsel %vm856, %v1492, 0
        %v1557 = vsel %vm856, %v1494, 0
        %v1559 = vsel %vm856, %v1496, 0
        %v1561 = vsel %vm856, %v1498, 0
        %v1563 = vsel %vm856, %v1500, 0
        %v1565 = vsel %vm856, %v1502, 0
        %v1567 = vsel %vm856, %v1504, 0
        %v1569 = vsel %vm856, %v1506, 0
        %v1571 = vsel %vm856, %v1508, 0
        %v1573 = vsel %vm856, %v1510, 0
        %v1575 = vsel %vm856, %v1512, 0
        %v1577 = vsel %vm856, %v1514, 0
        %v1579 = vsel %vm856, %v1516, 0
        %v1581 = vsel %vm856, %v1518, 0
        %v1583 = vsel %vm856, %v1520, 0
        %v1585 = vsel %vm856, %v1522, 0
        %v1587 = vsel %vm856, %v1524, 0
        %v1589 = vsel %vm856, %v1526, 0
        %v1591 = vsel %vm856, %v1528, 0
        %v1593 = vsel %vm856, %v1530, 0
        %1595 = vmatprep.subr.mxu0 0.0
        %1596 = vmatpush1.xpose.msra.mxu0 %v1593
        %1597 = vmatprep.subr.mxu0 0.0
        %1598 = vmatpush1.xpose.msra.mxu0 %v1591
        %1599 = vmatprep.subr.mxu0 0.0
        %1600 = vmatpush1.xpose.msra.mxu0 %v1589
        %1601 = vmatprep.subr.mxu0 0.0
        %1602 = vmatpush1.xpose.msra.mxu0 %v1587
        %1603 = vmatprep.subr.mxu0 0.0
        %1604 = vmatpush1.xpose.msra.mxu0 %v1585
        %1605 = vmatprep.subr.mxu0 0.0
        %1606 = vmatpush1.xpose.msra.mxu0 %v1583
        %1607 = vmatprep.subr.mxu0 0.0
        %1608 = vmatpush1.xpose.msra.mxu0 %v1581
        %1609 = vmatprep.subr.mxu0 0.0
        %1610 = vmatpush1.xpose.msra.mxu0 %v1579
        %1611 = vmatprep.subr.mxu0 0.0
        %1612 = vmatpush1.xpose.msra.mxu0 %v1577
        %1613 = vmatprep.subr.mxu0 0.0
        %1614 = vmatpush1.xpose.msra.mxu0 %v1575
        %1615 = vmatprep.subr.mxu0 0.0
        %1616 = vmatpush1.xpose.msra.mxu0 %v1573
        %1617 = vmatprep.subr.mxu0 0.0
        %1618 = vmatpush1.xpose.msra.mxu0 %v1571
        %1619 = vmatprep.subr.mxu0 0.0
        %1620 = vmatpush1.xpose.msra.mxu0 %v1569
        %1621 = vmatprep.subr.mxu0 0.0
        %1622 = vmatpush1.xpose.msra.mxu0 %v1567
        %1623 = vmatprep.subr.mxu0 0.0
        %1624 = vmatpush1.xpose.msra.mxu0 %v1565
        %1625 = vmatprep.subr.mxu0 0.0
        %1626 = vmatpush1.xpose.msra.mxu0 %v1563
        %1627 = vmatprep.subr.mxu0 0.0
        %1628 = vmatpush2.xpose.msra.mxu0 0.0
        %1629 = vmatprep.subr.mxu0 0.0
        %1630 = vmatpush2.xpose.msra.mxu0 0.0
        %1631 = vmatprep.subr.mxu0 0.0
        %1632 = vmatpush2.xpose.msra.mxu0 0.0
        %1633 = vmatprep.subr.mxu0 0.0
        %1634 = vmatpush2.xpose.msra.mxu0 0.0
        %1635 = vmatprep.subr.mxu0 0.0
        %1636 = vmatpush2.xpose.msra.mxu0 0.0
        %1637 = vmatprep.subr.mxu0 0.0
        %1638 = vmatpush2.xpose.msra.mxu0 0.0
        %1639 = vmatprep.subr.mxu0 0.0
        %1640 = vmatpush2.xpose.msra.mxu0 0.0
        %1641 = vmatprep.subr.mxu0 0.0
        %1642 = vmatpush2.xpose.msra.mxu0 0.0
        %1643 = vmatprep.subr.mxu0 0.0
        %1644 = vmatpush2.xpose.msra.mxu0 0.0
        %1645 = vmatprep.subr.mxu0 0.0
        %1646 = vmatpush2.xpose.msra.mxu0 0.0
        %1647 = vmatprep.subr.mxu0 0.0
        %1648 = vmatpush2.xpose.msra.mxu0 0.0
        %1649 = vmatprep.subr.mxu0 0.0
        %1650 = vmatpush2.xpose.msra.mxu0 0.0
        %1651 = vmatprep.subr.mxu0 0.0
        %1652 = vmatpush2.xpose.msra.mxu0 0.0
        %1653 = vmatprep.subr.mxu0 0.0
        %1654 = vmatpush2.xpose.msra.mxu0 0.0
        %1655 = vmatprep.subr.mxu0 0.0
        %1656 = vmatpush2.xpose.msra.mxu0 0.0
        %1657 = vmatprep.subr.mxu0 0.0
        %1658 = vmatpush2.xpose.msra.mxu0 0.0
        %1659 = vmatprep.mubr.f32.mxu0 0.0
        %1660 = vmatmul.mubr.f32.gmra.mxu0 %v1531
        %v1661 = vpop.f32.mrf.mxu0
        %v1662 = vadd.f32 0.0, %v1661
        %v1663 = vpop.f32.mrf.mxu0
        %1664 = vmatprep.mubr.f32.mxu0 0.0
        %1665 = vmatmul.mubr.f32.gmra.mxu0 %v1533
        %v1666 = vpop.f32.mrf.mxu0
        %v1667 = vadd.f32 0.0, %v1666
        %v1668 = vpop.f32.mrf.mxu0
        %1669 = vmatprep.mubr.f32.mxu0 0.0
        %1670 = vmatmul.mubr.f32.gmra.mxu0 %v1535
        %v1671 = vpop.f32.mrf.mxu0
        %v1672 = vadd.f32 0.0, %v1671
        %v1673 = vpop.f32.mrf.mxu0
        %1674 = vmatprep.mubr.f32.mxu0 0.0
        %1675 = vmatmul.mubr.f32.gmra.mxu0 %v1537
        %v1676 = vpop.f32.mrf.mxu0
        %v1677 = vadd.f32 0.0, %v1676
        %v1678 = vpop.f32.mrf.mxu0
        %1679 = vmatprep.mubr.f32.mxu0 0.0
        %1680 = vmatmul.mubr.f32.gmra.mxu0 %v1539
        %v1681 = vpop.f32.mrf.mxu0
        %v1682 = vadd.f32 0.0, %v1681
        %v1683 = vpop.f32.mrf.mxu0
        %1684 = vmatprep.mubr.f32.mxu0 0.0
        %1685 = vmatmul.mubr.f32.gmra.mxu0 %v1541
        %v1686 = vpop.f32.mrf.mxu0
        %v1687 = vadd.f32 0.0, %v1686
        %v1688 = vpop.f32.mrf.mxu0
        %1689 = vmatprep.mubr.f32.mxu0 0.0
        %1690 = vmatmul.mubr.f32.gmra.mxu0 %v1543
        %v1691 = vpop.f32.mrf.mxu0
        %v1692 = vadd.f32 0.0, %v1691
        %v1693 = vpop.f32.mrf.mxu0
        %1694 = vmatprep.mubr.f32.mxu0 0.0
        %1695 = vmatmul.mubr.f32.gmra.mxu0 %v1545
        %v1696 = vpop.f32.mrf.mxu0
        %v1697 = vadd.f32 0.0, %v1696
        %v1698 = vpop.f32.mrf.mxu0
        %1699 = vmatprep.mubr.f32.mxu0 0.0
        %1700 = vmatmul.mubr.f32.gmra.mxu0 %v1547
        %v1701 = vpop.f32.mrf.mxu0
        %v1702 = vadd.f32 0.0, %v1701
        %v1703 = vpop.f32.mrf.mxu0
        %1704 = vmatprep.mubr.f32.mxu0 0.0
        %1705 = vmatmul.mubr.f32.gmra.mxu0 %v1549
        %v1706 = vpop.f32.mrf.mxu0
        %v1707 = vadd.f32 0.0, %v1706
        %v1708 = vpop.f32.mrf.mxu0
        %1709 = vmatprep.mubr.f32.mxu0 0.0
        %1710 = vmatmul.mubr.f32.gmra.mxu0 %v1551
        %v1711 = vpop.f32.mrf.mxu0
        %v1712 = vadd.f32 0.0, %v1711
        %v1713 = vpop.f32.mrf.mxu0
        %1714 = vmatprep.mubr.f32.mxu0 0.0
        %1715 = vmatmul.mubr.f32.gmra.mxu0 %v1553
        %v1716 = vpop.f32.mrf.mxu0
        %v1717 = vadd.f32 0.0, %v1716
        %v1718 = vpop.f32.mrf.mxu0
        %1719 = vmatprep.mubr.f32.mxu0 0.0
        %1720 = vmatmul.mubr.f32.gmra.mxu0 %v1555
        %v1721 = vpop.f32.mrf.mxu0
        %v1722 = vadd.f32 0.0, %v1721
        %v1723 = vpop.f32.mrf.mxu0
        %1724 = vmatprep.mubr.f32.mxu0 0.0
        %1725 = vmatmul.mubr.f32.gmra.mxu0 %v1557
        %v1726 = vpop.f32.mrf.mxu0
        %v1727 = vadd.f32 0.0, %v1726
        %v1728 = vpop.f32.mrf.mxu0
        %1729 = vmatprep.mubr.f32.mxu0 0.0
        %1730 = vmatmul.mubr.f32.gmra.mxu0 %v1559
        %v1731 = vpop.f32.mrf.mxu0
        %v1732 = vadd.f32 0.0, %v1731
        %v1733 = vpop.f32.mrf.mxu0
        %1734 = vmatprep.mubr.f32.mxu0 0.0
        %1735 = vmatmul.mubr.f32.gmra.mxu0 %v1561
        %v1736 = vpop.f32.mrf.mxu0
        %v1737 = vadd.f32 0.0, %v1736
        %v1738 = vpop.f32.mrf.mxu0
        %1739 = vdwg.mxu0
        %v1740 = vmul.f32 %v1662, 0.17677669
        %v1741 = vmul.f32 %v1667, 0.17677669
        %v1742 = vmul.f32 %v1672, 0.17677669
        %v1743 = vmul.f32 %v1677, 0.17677669
        %v1744 = vmul.f32 %v1682, 0.17677669
        %v1745 = vmul.f32 %v1687, 0.17677669
        %v1746 = vmul.f32 %v1692, 0.17677669
        %v1747 = vmul.f32 %v1697, 0.17677669
        %v1748 = vmul.f32 %v1702, 0.17677669
        %v1749 = vmul.f32 %v1707, 0.17677669
        %v1750 = vmul.f32 %v1712, 0.17677669
        %v1751 = vmul.f32 %v1717, 0.17677669
        %v1752 = vmul.f32 %v1722, 0.17677669
        %v1753 = vmul.f32 %v1727, 0.17677669
        %v1754 = vmul.f32 %v1732, 0.17677669
        %v1755 = vmul.f32 %v1737, 0.17677669
        %v1756 = vadd.f32 %v1740, %v855
        %v1757 = vadd.f32 %v1741, %v855
        %v1758 = vadd.f32 %v1742, %v855
        %v1759 = vadd.f32 %v1743, %v855
        %v1760 = vadd.f32 %v1744, %v855
        %v1761 = vadd.f32 %v1745, %v855
        %v1762 = vadd.f32 %v1746, %v855
        %v1763 = vadd.f32 %v1747, %v855
        %v1764 = vadd.f32 %v1748, %v855
        %v1765 = vadd.f32 %v1749, %v855
        %v1766 = vadd.f32 %v1750, %v855
        %v1767 = vadd.f32 %v1751, %v855
        %v1768 = vadd.f32 %v1752, %v855
        %v1769 = vadd.f32 %v1753, %v855
        %v1770 = vadd.f32 %v1754, %v855
        %v1771 = vadd.f32 %v1755, %v855
        %1772 = vmax.xlane.f32.xlu0 %v1756
        %v1773 = vpop.xlane.xlu0 %1772
        %1774 = vmax.xlane.f32.xlu0 %v1757
        %v1775 = vpop.xlane.xlu0 %1774
        %1776 = vmax.xlane.f32.xlu0 %v1758
        %v1777 = vpop.xlane.xlu0 %1776
        %1778 = vmax.xlane.f32.xlu0 %v1759
        %v1779 = vpop.xlane.xlu0 %1778
        %1780 = vmax.xlane.f32.xlu0 %v1760
        %v1781 = vpop.xlane.xlu0 %1780
        %1782 = vmax.xlane.f32.xlu0 %v1761
        %v1783 = vpop.xlane.xlu0 %1782
        %1784 = vmax.xlane.f32.xlu0 %v1762
        %v1785 = vpop.xlane.xlu0 %1784
        %1786 = vmax.xlane.f32.xlu0 %v1763
        %v1787 = vpop.xlane.xlu0 %1786
        %1788 = vmax.xlane.f32.xlu0 %v1764
        %v1789 = vpop.xlane.xlu0 %1788
        %1790 = vmax.xlane.f32.xlu0 %v1765
        %v1791 = vpop.xlane.xlu0 %1790
        %1792 = vmax.xlane.f32.xlu0 %v1766
        %v1793 = vpop.xlane.xlu0 %1792
        %1794 = vmax.xlane.f32.xlu0 %v1767
        %v1795 = vpop.xlane.xlu0 %1794
        %1796 = vmax.xlane.f32.xlu0 %v1768
        %v1797 = vpop.xlane.xlu0 %1796
        %1798 = vmax.xlane.f32.xlu0 %v1769
        %v1799 = vpop.xlane.xlu0 %1798
        %1800 = vmax.xlane.f32.xlu0 %v1770
        %v1801 = vpop.xlane.xlu0 %1800
        %1802 = vmax.xlane.f32.xlu0 %v1771
        %v1803 = vpop.xlane.xlu0 %1802
        %v1804 = vsub.f32 %v1756, %v1773
        %v1805 = vsub.f32 %v1757, %v1775
        %v1806 = vsub.f32 %v1758, %v1777
        %v1807 = vsub.f32 %v1759, %v1779
        %v1808 = vsub.f32 %v1760, %v1781
        %v1809 = vsub.f32 %v1761, %v1783
        %v1810 = vsub.f32 %v1762, %v1785
        %v1811 = vsub.f32 %v1763, %v1787
        %v1812 = vsub.f32 %v1764, %v1789
        %v1813 = vsub.f32 %v1765, %v1791
        %v1814 = vsub.f32 %v1766, %v1793
        %v1815 = vsub.f32 %v1767, %v1795
        %v1816 = vsub.f32 %v1768, %v1797
        %v1817 = vsub.f32 %v1769, %v1799
        %v1818 = vsub.f32 %v1770, %v1801
        %v1819 = vsub.f32 %v1771, %v1803
        %v1820 = vmul.f32 %v1804, 1.442695
        %v1821 = vpow.pop %v1820
        %v1822 = vmul.f32 %v1805, 1.442695
        %v1823 = vpow.pop %v1822
        %v1824 = vmul.f32 %v1806, 1.442695
        %v1825 = vpow.pop %v1824
        %v1826 = vmul.f32 %v1807, 1.442695
        %v1827 = vpow.pop %v1826
        %v1828 = vmul.f32 %v1808, 1.442695
        %v1829 = vpow.pop %v1828
        %v1830 = vmul.f32 %v1809, 1.442695
        %v1831 = vpow.pop %v1830
        %v1832 = vmul.f32 %v1810, 1.442695
        %v1833 = vpow.pop %v1832
        %v1834 = vmul.f32 %v1811, 1.442695
        %v1835 = vpow.pop %v1834
        %v1836 = vmul.f32 %v1812, 1.442695
        %v1837 = vpow.pop %v1836
        %v1838 = vmul.f32 %v1813, 1.442695
        %v1839 = vpow.pop %v1838
        %v1840 = vmul.f32 %v1814, 1.442695
        %v1841 = vpow.pop %v1840
        %v1842 = vmul.f32 %v1815, 1.442695
        %v1843 = vpow.pop %v1842
        %v1844 = vmul.f32 %v1816, 1.442695
        %v1845 = vpow.pop %v1844
        %v1846 = vmul.f32 %v1817, 1.442695
        %v1847 = vpow.pop %v1846
        %v1848 = vmul.f32 %v1818, 1.442695
        %v1849 = vpow.pop %v1848
        %v1850 = vmul.f32 %v1819, 1.442695
        %v1851 = vpow.pop %v1850
        %v1852 = vmul.f32 %v1821, %v838
        %v1853 = vmul.f32 %v1823, %v839
        %v1854 = vmul.f32 %v1825, %v840
        %v1855 = vmul.f32 %v1827, %v841
        %v1856 = vmul.f32 %v1829, %v842
        %v1857 = vmul.f32 %v1831, %v843
        %v1858 = vmul.f32 %v1833, %v844
        %v1859 = vmul.f32 %v1835, %v845
        %v1860 = vmul.f32 %v1837, %v846
        %v1861 = vmul.f32 %v1839, %v847
        %v1862 = vmul.f32 %v1841, %v848
        %v1863 = vmul.f32 %v1843, %v849
        %v1864 = vmul.f32 %v1845, %v850
        %v1865 = vmul.f32 %v1847, %v851
        %v1866 = vmul.f32 %v1849, %v852
        %v1867 = vmul.f32 %v1851, %v853
        %1868 = vadd.xlane.f32.xlu0 %v1852
        %v1869 = vpop.xlane.xlu0 %1868
        %1870 = vadd.xlane.f32.xlu0 %v1853
        %v1871 = vpop.xlane.xlu0 %1870
        %1872 = vadd.xlane.f32.xlu0 %v1854
        %v1873 = vpop.xlane.xlu0 %1872
        %1874 = vadd.xlane.f32.xlu0 %v1855
        %v1875 = vpop.xlane.xlu0 %1874
        %1876 = vadd.xlane.f32.xlu0 %v1856
        %v1877 = vpop.xlane.xlu0 %1876
        %1878 = vadd.xlane.f32.xlu0 %v1857
        %v1879 = vpop.xlane.xlu0 %1878
        %1880 = vadd.xlane.f32.xlu0 %v1858
        %v1881 = vpop.xlane.xlu0 %1880
        %1882 = vadd.xlane.f32.xlu0 %v1859
        %v1883 = vpop.xlane.xlu0 %1882
        %1884 = vadd.xlane.f32.xlu0 %v1860
        %v1885 = vpop.xlane.xlu0 %1884
        %1886 = vadd.xlane.f32.xlu0 %v1861
        %v1887 = vpop.xlane.xlu0 %1886
        %1888 = vadd.xlane.f32.xlu0 %v1862
        %v1889 = vpop.xlane.xlu0 %1888
        %1890 = vadd.xlane.f32.xlu0 %v1863
        %v1891 = vpop.xlane.xlu0 %1890
        %1892 = vadd.xlane.f32.xlu0 %v1864
        %v1893 = vpop.xlane.xlu0 %1892
        %1894 = vadd.xlane.f32.xlu0 %v1865
        %v1895 = vpop.xlane.xlu0 %1894
        %1896 = vadd.xlane.f32.xlu0 %v1866
        %v1897 = vpop.xlane.xlu0 %1896
        %1898 = vadd.xlane.f32.xlu0 %v1867
        %v1899 = vpop.xlane.xlu0 %1898
        %v1900 = vadd.f32 %v1869, 1e-06
        %v1901 = vadd.f32 %v1871, 1e-06
        %v1902 = vadd.f32 %v1873, 1e-06
        %v1903 = vadd.f32 %v1875, 1e-06
        %v1904 = vadd.f32 %v1877, 1e-06
        %v1905 = vadd.f32 %v1879, 1e-06
        %v1906 = vadd.f32 %v1881, 1e-06
        %v1907 = vadd.f32 %v1883, 1e-06
        %v1908 = vadd.f32 %v1885, 1e-06
        %v1909 = vadd.f32 %v1887, 1e-06
        %v1910 = vadd.f32 %v1889, 1e-06
        %v1911 = vadd.f32 %v1891, 1e-06
        %v1912 = vadd.f32 %v1893, 1e-06
        %v1913 = vadd.f32 %v1895, 1e-06
        %v1914 = vadd.f32 %v1897, 1e-06
        %v1915 = vadd.f32 %v1899, 1e-06
        %v1916 = vrcp.pop %v1900
        %v1917 = vrcp.pop %v1901
        %v1918 = vrcp.pop %v1902
        %v1919 = vrcp.pop %v1903
        %v1920 = vrcp.pop %v1904
        %v1921 = vrcp.pop %v1905
        %v1922 = vrcp.pop %v1906
        %v1923 = vrcp.pop %v1907
        %v1924 = vrcp.pop %v1908
        %v1925 = vrcp.pop %v1909
        %v1926 = vrcp.pop %v1910
        %v1927 = vrcp.pop %v1911
        %v1928 = vrcp.pop %v1912
        %v1929 = vrcp.pop %v1913
        %v1930 = vrcp.pop %v1914
        %v1931 = vrcp.pop %v1915
        %v1932 = vadd.f32 %v1852, 1e-07
        %v1933 = vadd.f32 %v1853, 1e-07
        %v1934 = vadd.f32 %v1854, 1e-07
        %v1935 = vadd.f32 %v1855, 1e-07
        %v1936 = vadd.f32 %v1856, 1e-07
        %v1937 = vadd.f32 %v1857, 1e-07
        %v1938 = vadd.f32 %v1858, 1e-07
        %v1939 = vadd.f32 %v1859, 1e-07
        %v1940 = vadd.f32 %v1860, 1e-07
        %v1941 = vadd.f32 %v1861, 1e-07
        %v1942 = vadd.f32 %v1862, 1e-07
        %v1943 = vadd.f32 %v1863, 1e-07
        %v1944 = vadd.f32 %v1864, 1e-07
        %v1945 = vadd.f32 %v1865, 1e-07
        %v1946 = vadd.f32 %v1866, 1e-07
        %v1947 = vadd.f32 %v1867, 1e-07
        %v1948 = vmul.f32 %v1932, %v1916
        %v1949 = vmul.f32 %v1933, %v1917
        %v1950 = vmul.f32 %v1934, %v1918
        %v1951 = vmul.f32 %v1935, %v1919
        %v1952 = vmul.f32 %v1936, %v1920
        %v1953 = vmul.f32 %v1937, %v1921
        %v1954 = vmul.f32 %v1938, %v1922
        %v1955 = vmul.f32 %v1939, %v1923
        %v1956 = vmul.f32 %v1940, %v1924
        %v1957 = vmul.f32 %v1941, %v1925
        %v1958 = vmul.f32 %v1942, %v1926
        %v1959 = vmul.f32 %v1943, %v1927
        %v1960 = vmul.f32 %v1944, %v1928
        %v1961 = vmul.f32 %v1945, %v1929
        %v1962 = vmul.f32 %v1946, %v1930
        %v1963 = vmul.f32 %v1947, %v1931
        %1980 = vrot.lane.b32.xlu0 %v719, 96
        %v1981 = vpop.permute.xlu0 %1980
        %1982 = vrot.lane.b32.xlu0 %v724, 96
        %v1983 = vpop.permute.xlu0 %1982
        %1984 = vrot.lane.b32.xlu0 %v729, 96
        %v1985 = vpop.permute.xlu0 %1984
        %1986 = vrot.lane.b32.xlu0 %v734, 96
        %v1987 = vpop.permute.xlu0 %1986
        %1988 = vrot.lane.b32.xlu0 %v739, 96
        %v1989 = vpop.permute.xlu0 %1988
        %1990 = vrot.lane.b32.xlu0 %v744, 96
        %v1991 = vpop.permute.xlu0 %1990
        %1992 = vrot.lane.b32.xlu0 %v749, 96
        %v1993 = vpop.permute.xlu0 %1992
        %1994 = vrot.lane.b32.xlu0 %v754, 96
        %v1995 = vpop.permute.xlu0 %1994
        %1996 = vrot.lane.b32.xlu0 %v759, 96
        %v1997 = vpop.permute.xlu0 %1996
        %1998 = vrot.lane.b32.xlu0 %v764, 96
        %v1999 = vpop.permute.xlu0 %1998
        %2000 = vrot.lane.b32.xlu0 %v769, 96
        %v2001 = vpop.permute.xlu0 %2000
        %2002 = vrot.lane.b32.xlu0 %v774, 96
        %v2003 = vpop.permute.xlu0 %2002
        %2004 = vrot.lane.b32.xlu0 %v779, 96
        %v2005 = vpop.permute.xlu0 %2004
        %2006 = vrot.lane.b32.xlu0 %v784, 96
        %v2007 = vpop.permute.xlu0 %2006
        %2008 = vrot.lane.b32.xlu0 %v789, 96
        %v2009 = vpop.permute.xlu0 %2008
        %2010 = vrot.lane.b32.xlu0 %v794, 96
        %v2011 = vpop.permute.xlu0 %2010
        %2028 = vmatprep.subr.mxu0 0.0
        %2029 = vmatpush1.msra.mxu0 %v2011
        %2030 = vmatprep.subr.mxu0 0.0
        %2031 = vmatpush1.msra.mxu0 %v2009
        %2032 = vmatprep.subr.mxu0 0.0
        %2033 = vmatpush1.msra.mxu0 %v2007
        %2034 = vmatprep.subr.mxu0 0.0
        %2035 = vmatpush1.msra.mxu0 %v2005
        %2036 = vmatprep.subr.mxu0 0.0
        %2037 = vmatpush1.msra.mxu0 %v2003
        %2038 = vmatprep.subr.mxu0 0.0
        %2039 = vmatpush1.msra.mxu0 %v2001
        %2040 = vmatprep.subr.mxu0 0.0
        %2041 = vmatpush1.msra.mxu0 %v1999
        %2042 = vmatprep.subr.mxu0 0.0
        %2043 = vmatpush1.msra.mxu0 %v1997
        %2044 = vmatprep.subr.mxu0 0.0
        %2045 = vmatpush1.msra.mxu0 %v1995
        %2046 = vmatprep.subr.mxu0 0.0
        %2047 = vmatpush1.msra.mxu0 %v1993
        %2048 = vmatprep.subr.mxu0 0.0
        %2049 = vmatpush1.msra.mxu0 %v1991
        %2050 = vmatprep.subr.mxu0 0.0
        %2051 = vmatpush1.msra.mxu0 %v1989
        %2052 = vmatprep.subr.mxu0 0.0
        %2053 = vmatpush1.msra.mxu0 %v1987
        %2054 = vmatprep.subr.mxu0 0.0
        %2055 = vmatpush1.msra.mxu0 %v1985
        %2056 = vmatprep.subr.mxu0 0.0
        %2057 = vmatpush1.msra.mxu0 %v1983
        %2058 = vmatprep.subr.mxu0 0.0
        %2059 = vmatpush1.msra.mxu0 %v1981
        %2060 = vmatprep.subr.mxu0 0.0
        %2061 = vmatpush2.msra.mxu0 0.0
        %2062 = vmatprep.subr.mxu0 0.0
        %2063 = vmatpush2.msra.mxu0 0.0
        %2064 = vmatprep.subr.mxu0 0.0
        %2065 = vmatpush2.msra.mxu0 0.0
        %2066 = vmatprep.subr.mxu0 0.0
        %2067 = vmatpush2.msra.mxu0 0.0
        %2068 = vmatprep.subr.mxu0 0.0
        %2069 = vmatpush2.msra.mxu0 0.0
        %2070 = vmatprep.subr.mxu0 0.0
        %2071 = vmatpush2.msra.mxu0 0.0
        %2072 = vmatprep.subr.mxu0 0.0
        %2073 = vmatpush2.msra.mxu0 0.0
        %2074 = vmatprep.subr.mxu0 0.0
        %2075 = vmatpush2.msra.mxu0 0.0
        %2076 = vmatprep.subr.mxu0 0.0
        %2077 = vmatpush2.msra.mxu0 0.0
        %2078 = vmatprep.subr.mxu0 0.0
        %2079 = vmatpush2.msra.mxu0 0.0
        %2080 = vmatprep.subr.mxu0 0.0
        %2081 = vmatpush2.msra.mxu0 0.0
        %2082 = vmatprep.subr.mxu0 0.0
        %2083 = vmatpush2.msra.mxu0 0.0
        %2084 = vmatprep.subr.mxu0 0.0
        %2085 = vmatpush2.msra.mxu0 0.0
        %2086 = vmatprep.subr.mxu0 0.0
        %2087 = vmatpush2.msra.mxu0 0.0
        %2088 = vmatprep.subr.mxu0 0.0
        %2089 = vmatpush2.msra.mxu0 0.0
        %2090 = vmatprep.subr.mxu0 0.0
        %2091 = vmatpush2.msra.mxu0 0.0
        %2092 = vmatprep.mubr.f32.mxu0 0.0
        %2093 = vmatmul.mubr.f32.gmra.mxu0 %v1948
        %v2094 = vpop.f32.mrf.mxu0
        %v2095 = vadd.f32 0.0, %v2094
        %v2096 = vpop.f32.mrf.mxu0
        %2097 = vmatprep.mubr.f32.mxu0 0.0
        %2098 = vmatmul.mubr.f32.gmra.mxu0 %v1949
        %v2099 = vpop.f32.mrf.mxu0
        %v2100 = vadd.f32 0.0, %v2099
        %v2101 = vpop.f32.mrf.mxu0
        %2102 = vmatprep.mubr.f32.mxu0 0.0
        %2103 = vmatmul.mubr.f32.gmra.mxu0 %v1950
        %v2104 = vpop.f32.mrf.mxu0
        %v2105 = vadd.f32 0.0, %v2104
        %v2106 = vpop.f32.mrf.mxu0
        %2107 = vmatprep.mubr.f32.mxu0 0.0
        %2108 = vmatmul.mubr.f32.gmra.mxu0 %v1951
        %v2109 = vpop.f32.mrf.mxu0
        %v2110 = vadd.f32 0.0, %v2109
        %v2111 = vpop.f32.mrf.mxu0
        %2112 = vmatprep.mubr.f32.mxu0 0.0
        %2113 = vmatmul.mubr.f32.gmra.mxu0 %v1952
        %v2114 = vpop.f32.mrf.mxu0
        %v2115 = vadd.f32 0.0, %v2114
        %v2116 = vpop.f32.mrf.mxu0
        %2117 = vmatprep.mubr.f32.mxu0 0.0
        %2118 = vmatmul.mubr.f32.gmra.mxu0 %v1953
        %v2119 = vpop.f32.mrf.mxu0
        %v2120 = vadd.f32 0.0, %v2119
        %v2121 = vpop.f32.mrf.mxu0
        %2122 = vmatprep.mubr.f32.mxu0 0.0
        %2123 = vmatmul.mubr.f32.gmra.mxu0 %v1954
        %v2124 = vpop.f32.mrf.mxu0
        %v2125 = vadd.f32 0.0, %v2124
        %v2126 = vpop.f32.mrf.mxu0
        %2127 = vmatprep.mubr.f32.mxu0 0.0
        %2128 = vmatmul.mubr.f32.gmra.mxu0 %v1955
        %v2129 = vpop.f32.mrf.mxu0
        %v2130 = vadd.f32 0.0, %v2129
        %v2131 = vpop.f32.mrf.mxu0
        %2132 = vmatprep.mubr.f32.mxu0 0.0
        %2133 = vmatmul.mubr.f32.gmra.mxu0 %v1956
        %v2134 = vpop.f32.mrf.mxu0
        %v2135 = vadd.f32 0.0, %v2134
        %v2136 = vpop.f32.mrf.mxu0
        %2137 = vmatprep.mubr.f32.mxu0 0.0
        %2138 = vmatmul.mubr.f32.gmra.mxu0 %v1957
        %v2139 = vpop.f32.mrf.mxu0
        %v2140 = vadd.f32 0.0, %v2139
        %v2141 = vpop.f32.mrf.mxu0
        %2142 = vmatprep.mubr.f32.mxu0 0.0
        %2143 = vmatmul.mubr.f32.gmra.mxu0 %v1958
        %v2144 = vpop.f32.mrf.mxu0
        %v2145 = vadd.f32 0.0, %v2144
        %v2146 = vpop.f32.mrf.mxu0
        %2147 = vmatprep.mubr.f32.mxu0 0.0
        %2148 = vmatmul.mubr.f32.gmra.mxu0 %v1959
        %v2149 = vpop.f32.mrf.mxu0
        %v2150 = vadd.f32 0.0, %v2149
        %v2151 = vpop.f32.mrf.mxu0
        %2152 = vmatprep.mubr.f32.mxu0 0.0
        %2153 = vmatmul.mubr.f32.gmra.mxu0 %v1960
        %v2154 = vpop.f32.mrf.mxu0
        %v2155 = vadd.f32 0.0, %v2154
        %v2156 = vpop.f32.mrf.mxu0
        %2157 = vmatprep.mubr.f32.mxu0 0.0
        %2158 = vmatmul.mubr.f32.gmra.mxu0 %v1961
        %v2159 = vpop.f32.mrf.mxu0
        %v2160 = vadd.f32 0.0, %v2159
        %v2161 = vpop.f32.mrf.mxu0
        %2162 = vmatprep.mubr.f32.mxu0 0.0
        %2163 = vmatmul.mubr.f32.gmra.mxu0 %v1962
        %v2164 = vpop.f32.mrf.mxu0
        %v2165 = vadd.f32 0.0, %v2164
        %v2166 = vpop.f32.mrf.mxu0
        %2167 = vmatprep.mubr.f32.mxu0 0.0
        %2168 = vmatmul.mubr.f32.gmra.mxu0 %v1963
        %v2169 = vpop.f32.mrf.mxu0
        %v2170 = vadd.f32 0.0, %v2169
        %v2171 = vpop.f32.mrf.mxu0
        %2172 = vdwg.mxu0
        %2173 = vrot.lane.b32.xlu0 %v558, 64
        %v2174 = vpop.permute.xlu0 %2173
        %2175 = vrot.lane.b32.xlu0 %v564, 64
        %v2176 = vpop.permute.xlu0 %2175
        %2177 = vrot.lane.b32.xlu0 %v570, 64
        %v2178 = vpop.permute.xlu0 %2177
        %2179 = vrot.lane.b32.xlu0 %v576, 64
        %v2180 = vpop.permute.xlu0 %2179
        %2181 = vrot.lane.b32.xlu0 %v582, 64
        %v2182 = vpop.permute.xlu0 %2181
        %2183 = vrot.lane.b32.xlu0 %v588, 64
        %v2184 = vpop.permute.xlu0 %2183
        %2185 = vrot.lane.b32.xlu0 %v594, 64
        %v2186 = vpop.permute.xlu0 %2185
        %2187 = vrot.lane.b32.xlu0 %v600, 64
        %v2188 = vpop.permute.xlu0 %2187
        %2189 = vrot.lane.b32.xlu0 %v606, 64
        %v2190 = vpop.permute.xlu0 %2189
        %2191 = vrot.lane.b32.xlu0 %v612, 64
        %v2192 = vpop.permute.xlu0 %2191
        %2193 = vrot.lane.b32.xlu0 %v618, 64
        %v2194 = vpop.permute.xlu0 %2193
        %2195 = vrot.lane.b32.xlu0 %v624, 64
        %v2196 = vpop.permute.xlu0 %2195
        %2197 = vrot.lane.b32.xlu0 %v630, 64
        %v2198 = vpop.permute.xlu0 %2197
        %2199 = vrot.lane.b32.xlu0 %v636, 64
        %v2200 = vpop.permute.xlu0 %2199
        %2201 = vrot.lane.b32.xlu0 %v642, 64
        %v2202 = vpop.permute.xlu0 %2201
        %2203 = vrot.lane.b32.xlu0 %v648, 64
        %v2204 = vpop.permute.xlu0 %2203
        %2205 = vrot.lane.b32.xlu0 %v560, 64
        %v2206 = vpop.permute.xlu0 %2205
        %2207 = vrot.lane.b32.xlu0 %v566, 64
        %v2208 = vpop.permute.xlu0 %2207
        %2209 = vrot.lane.b32.xlu0 %v572, 64
        %v2210 = vpop.permute.xlu0 %2209
        %2211 = vrot.lane.b32.xlu0 %v578, 64
        %v2212 = vpop.permute.xlu0 %2211
        %2213 = vrot.lane.b32.xlu0 %v584, 64
        %v2214 = vpop.permute.xlu0 %2213
        %2215 = vrot.lane.b32.xlu0 %v590, 64
        %v2216 = vpop.permute.xlu0 %2215
        %2217 = vrot.lane.b32.xlu0 %v596, 64
        %v2218 = vpop.permute.xlu0 %2217
        %2219 = vrot.lane.b32.xlu0 %v602, 64
        %v2220 = vpop.permute.xlu0 %2219
        %2221 = vrot.lane.b32.xlu0 %v608, 64
        %v2222 = vpop.permute.xlu0 %2221
        %2223 = vrot.lane.b32.xlu0 %v614, 64
        %v2224 = vpop.permute.xlu0 %2223
        %2225 = vrot.lane.b32.xlu0 %v620, 64
        %v2226 = vpop.permute.xlu0 %2225
        %2227 = vrot.lane.b32.xlu0 %v626, 64
        %v2228 = vpop.permute.xlu0 %2227
        %2229 = vrot.lane.b32.xlu0 %v632, 64
        %v2230 = vpop.permute.xlu0 %2229
        %2231 = vrot.lane.b32.xlu0 %v638, 64
        %v2232 = vpop.permute.xlu0 %2231
        %2233 = vrot.lane.b32.xlu0 %v644, 64
        %v2234 = vpop.permute.xlu0 %2233
        %2235 = vrot.lane.b32.xlu0 %v650, 64
        %v2236 = vpop.permute.xlu0 %2235
        %v2237 = vsel %vm856, %v2174, 0
        %v2239 = vsel %vm856, %v2176, 0
        %v2241 = vsel %vm856, %v2178, 0
        %v2243 = vsel %vm856, %v2180, 0
        %v2245 = vsel %vm856, %v2182, 0
        %v2247 = vsel %vm856, %v2184, 0
        %v2249 = vsel %vm856, %v2186, 0
        %v2251 = vsel %vm856, %v2188, 0
        %v2253 = vsel %vm856, %v2190, 0
        %v2255 = vsel %vm856, %v2192, 0
        %v2257 = vsel %vm856, %v2194, 0
        %v2259 = vsel %vm856, %v2196, 0
        %v2261 = vsel %vm856, %v2198, 0
        %v2263 = vsel %vm856, %v2200, 0
        %v2265 = vsel %vm856, %v2202, 0
        %v2267 = vsel %vm856, %v2204, 0
        %v2269 = vsel %vm856, %v2206, 0
        %v2271 = vsel %vm856, %v2208, 0
        %v2273 = vsel %vm856, %v2210, 0
        %v2275 = vsel %vm856, %v2212, 0
        %v2277 = vsel %vm856, %v2214, 0
        %v2279 = vsel %vm856, %v2216, 0
        %v2281 = vsel %vm856, %v2218, 0
        %v2283 = vsel %vm856, %v2220, 0
        %v2285 = vsel %vm856, %v2222, 0
        %v2287 = vsel %vm856, %v2224, 0
        %v2289 = vsel %vm856, %v2226, 0
        %v2291 = vsel %vm856, %v2228, 0
        %v2293 = vsel %vm856, %v2230, 0
        %v2295 = vsel %vm856, %v2232, 0
        %v2297 = vsel %vm856, %v2234, 0
        %v2299 = vsel %vm856, %v2236, 0
        %2301 = vmatprep.subr.mxu0 0.0
        %2302 = vmatpush1.xpose.msra.mxu0 %v2299
        %2303 = vmatprep.subr.mxu0 0.0
        %2304 = vmatpush1.xpose.msra.mxu0 %v2297
        %2305 = vmatprep.subr.mxu0 0.0
        %2306 = vmatpush1.xpose.msra.mxu0 %v2295
        %2307 = vmatprep.subr.mxu0 0.0
        %2308 = vmatpush1.xpose.msra.mxu0 %v2293
        %2309 = vmatprep.subr.mxu0 0.0
        %2310 = vmatpush1.xpose.msra.mxu0 %v2291
        %2311 = vmatprep.subr.mxu0 0.0
        %2312 = vmatpush1.xpose.msra.mxu0 %v2289
        %2313 = vmatprep.subr.mxu0 0.0
        %2314 = vmatpush1.xpose.msra.mxu0 %v2287
        %2315 = vmatprep.subr.mxu0 0.0
        %2316 = vmatpush1.xpose.msra.mxu0 %v2285
        %2317 = vmatprep.subr.mxu0 0.0
        %2318 = vmatpush1.xpose.msra.mxu0 %v2283
        %2319 = vmatprep.subr.mxu0 0.0
        %2320 = vmatpush1.xpose.msra.mxu0 %v2281
        %2321 = vmatprep.subr.mxu0 0.0
        %2322 = vmatpush1.xpose.msra.mxu0 %v2279
        %2323 = vmatprep.subr.mxu0 0.0
        %2324 = vmatpush1.xpose.msra.mxu0 %v2277
        %2325 = vmatprep.subr.mxu0 0.0
        %2326 = vmatpush1.xpose.msra.mxu0 %v2275
        %2327 = vmatprep.subr.mxu0 0.0
        %2328 = vmatpush1.xpose.msra.mxu0 %v2273
        %2329 = vmatprep.subr.mxu0 0.0
        %2330 = vmatpush1.xpose.msra.mxu0 %v2271
        %2331 = vmatprep.subr.mxu0 0.0
        %2332 = vmatpush1.xpose.msra.mxu0 %v2269
        %2333 = vmatprep.subr.mxu0 0.0
        %2334 = vmatpush2.xpose.msra.mxu0 0.0
        %2335 = vmatprep.subr.mxu0 0.0
        %2336 = vmatpush2.xpose.msra.mxu0 0.0
        %2337 = vmatprep.subr.mxu0 0.0
        %2338 = vmatpush2.xpose.msra.mxu0 0.0
        %2339 = vmatprep.subr.mxu0 0.0
        %2340 = vmatpush2.xpose.msra.mxu0 0.0
        %2341 = vmatprep.subr.mxu0 0.0
        %2342 = vmatpush2.xpose.msra.mxu0 0.0
        %2343 = vmatprep.subr.mxu0 0.0
        %2344 = vmatpush2.xpose.msra.mxu0 0.0
        %2345 = vmatprep.subr.mxu0 0.0
        %2346 = vmatpush2.xpose.msra.mxu0 0.0
        %2347 = vmatprep.subr.mxu0 0.0
        %2348 = vmatpush2.xpose.msra.mxu0 0.0
        %2349 = vmatprep.subr.mxu0 0.0
        %2350 = vmatpush2.xpose.msra.mxu0 0.0
        %2351 = vmatprep.subr.mxu0 0.0
        %2352 = vmatpush2.xpose.msra.mxu0 0.0
        %2353 = vmatprep.subr.mxu0 0.0
        %2354 = vmatpush2.xpose.msra.mxu0 0.0
        %2355 = vmatprep.subr.mxu0 0.0
        %2356 = vmatpush2.xpose.msra.mxu0 0.0
        %2357 = vmatprep.subr.mxu0 0.0
        %2358 = vmatpush2.xpose.msra.mxu0 0.0
        %2359 = vmatprep.subr.mxu0 0.0
        %2360 = vmatpush2.xpose.msra.mxu0 0.0
        %2361 = vmatprep.subr.mxu0 0.0
        %2362 = vmatpush2.xpose.msra.mxu0 0.0
        %2363 = vmatprep.subr.mxu0 0.0
        %2364 = vmatpush2.xpose.msra.mxu0 0.0
        %2365 = vmatprep.mubr.f32.mxu0 0.0
        %2366 = vmatmul.mubr.f32.gmra.mxu0 %v2237
        %v2367 = vpop.f32.mrf.mxu0
        %v2368 = vadd.f32 0.0, %v2367
        %v2369 = vpop.f32.mrf.mxu0
        %2370 = vmatprep.mubr.f32.mxu0 0.0
        %2371 = vmatmul.mubr.f32.gmra.mxu0 %v2239
        %v2372 = vpop.f32.mrf.mxu0
        %v2373 = vadd.f32 0.0, %v2372
        %v2374 = vpop.f32.mrf.mxu0
        %2375 = vmatprep.mubr.f32.mxu0 0.0
        %2376 = vmatmul.mubr.f32.gmra.mxu0 %v2241
        %v2377 = vpop.f32.mrf.mxu0
        %v2378 = vadd.f32 0.0, %v2377
        %v2379 = vpop.f32.mrf.mxu0
        %2380 = vmatprep.mubr.f32.mxu0 0.0
        %2381 = vmatmul.mubr.f32.gmra.mxu0 %v2243
        %v2382 = vpop.f32.mrf.mxu0
        %v2383 = vadd.f32 0.0, %v2382
        %v2384 = vpop.f32.mrf.mxu0
        %2385 = vmatprep.mubr.f32.mxu0 0.0
        %2386 = vmatmul.mubr.f32.gmra.mxu0 %v2245
        %v2387 = vpop.f32.mrf.mxu0
        %v2388 = vadd.f32 0.0, %v2387
        %v2389 = vpop.f32.mrf.mxu0
        %2390 = vmatprep.mubr.f32.mxu0 0.0
        %2391 = vmatmul.mubr.f32.gmra.mxu0 %v2247
        %v2392 = vpop.f32.mrf.mxu0
        %v2393 = vadd.f32 0.0, %v2392
        %v2394 = vpop.f32.mrf.mxu0
        %2395 = vmatprep.mubr.f32.mxu0 0.0
        %2396 = vmatmul.mubr.f32.gmra.mxu0 %v2249
        %v2397 = vpop.f32.mrf.mxu0
        %v2398 = vadd.f32 0.0, %v2397
        %v2399 = vpop.f32.mrf.mxu0
        %2400 = vmatprep.mubr.f32.mxu0 0.0
        %2401 = vmatmul.mubr.f32.gmra.mxu0 %v2251
        %v2402 = vpop.f32.mrf.mxu0
        %v2403 = vadd.f32 0.0, %v2402
        %v2404 = vpop.f32.mrf.mxu0
        %2405 = vmatprep.mubr.f32.mxu0 0.0
        %2406 = vmatmul.mubr.f32.gmra.mxu0 %v2253
        %v2407 = vpop.f32.mrf.mxu0
        %v2408 = vadd.f32 0.0, %v2407
        %v2409 = vpop.f32.mrf.mxu0
        %2410 = vmatprep.mubr.f32.mxu0 0.0
        %2411 = vmatmul.mubr.f32.gmra.mxu0 %v2255
        %v2412 = vpop.f32.mrf.mxu0
        %v2413 = vadd.f32 0.0, %v2412
        %v2414 = vpop.f32.mrf.mxu0
        %2415 = vmatprep.mubr.f32.mxu0 0.0
        %2416 = vmatmul.mubr.f32.gmra.mxu0 %v2257
        %v2417 = vpop.f32.mrf.mxu0
        %v2418 = vadd.f32 0.0, %v2417
        %v2419 = vpop.f32.mrf.mxu0
        %2420 = vmatprep.mubr.f32.mxu0 0.0
        %2421 = vmatmul.mubr.f32.gmra.mxu0 %v2259
        %v2422 = vpop.f32.mrf.mxu0
        %v2423 = vadd.f32 0.0, %v2422
        %v2424 = vpop.f32.mrf.mxu0
        %2425 = vmatprep.mubr.f32.mxu0 0.0
        %2426 = vmatmul.mubr.f32.gmra.mxu0 %v2261
        %v2427 = vpop.f32.mrf.mxu0
        %v2428 = vadd.f32 0.0, %v2427
        %v2429 = vpop.f32.mrf.mxu0
        %2430 = vmatprep.mubr.f32.mxu0 0.0
        %2431 = vmatmul.mubr.f32.gmra.mxu0 %v2263
        %v2432 = vpop.f32.mrf.mxu0
        %v2433 = vadd.f32 0.0, %v2432
        %v2434 = vpop.f32.mrf.mxu0
        %2435 = vmatprep.mubr.f32.mxu0 0.0
        %2436 = vmatmul.mubr.f32.gmra.mxu0 %v2265
        %v2437 = vpop.f32.mrf.mxu0
        %v2438 = vadd.f32 0.0, %v2437
        %v2439 = vpop.f32.mrf.mxu0
        %2440 = vmatprep.mubr.f32.mxu0 0.0
        %2441 = vmatmul.mubr.f32.gmra.mxu0 %v2267
        %v2442 = vpop.f32.mrf.mxu0
        %v2443 = vadd.f32 0.0, %v2442
        %v2444 = vpop.f32.mrf.mxu0
        %2445 = vdwg.mxu0
        %v2446 = vmul.f32 %v2368, 0.17677669
        %v2447 = vmul.f32 %v2373, 0.17677669
        %v2448 = vmul.f32 %v2378, 0.17677669
        %v2449 = vmul.f32 %v2383, 0.17677669
        %v2450 = vmul.f32 %v2388, 0.17677669
        %v2451 = vmul.f32 %v2393, 0.17677669
        %v2452 = vmul.f32 %v2398, 0.17677669
        %v2453 = vmul.f32 %v2403, 0.17677669
        %v2454 = vmul.f32 %v2408, 0.17677669
        %v2455 = vmul.f32 %v2413, 0.17677669
        %v2456 = vmul.f32 %v2418, 0.17677669
        %v2457 = vmul.f32 %v2423, 0.17677669
        %v2458 = vmul.f32 %v2428, 0.17677669
        %v2459 = vmul.f32 %v2433, 0.17677669
        %v2460 = vmul.f32 %v2438, 0.17677669
        %v2461 = vmul.f32 %v2443, 0.17677669
        %v2462 = vadd.f32 %v2446, %v855
        %v2463 = vadd.f32 %v2447, %v855
        %v2464 = vadd.f32 %v2448, %v855
        %v2465 = vadd.f32 %v2449, %v855
        %v2466 = vadd.f32 %v2450, %v855
        %v2467 = vadd.f32 %v2451, %v855
        %v2468 = vadd.f32 %v2452, %v855
        %v2469 = vadd.f32 %v2453, %v855
        %v2470 = vadd.f32 %v2454, %v855
        %v2471 = vadd.f32 %v2455, %v855
        %v2472 = vadd.f32 %v2456, %v855
        %v2473 = vadd.f32 %v2457, %v855
        %v2474 = vadd.f32 %v2458, %v855
        %v2475 = vadd.f32 %v2459, %v855
        %v2476 = vadd.f32 %v2460, %v855
        %v2477 = vadd.f32 %v2461, %v855
        %2478 = vmax.xlane.f32.xlu0 %v2462
        %v2479 = vpop.xlane.xlu0 %2478
        %2480 = vmax.xlane.f32.xlu0 %v2463
        %v2481 = vpop.xlane.xlu0 %2480
        %2482 = vmax.xlane.f32.xlu0 %v2464
        %v2483 = vpop.xlane.xlu0 %2482
        %2484 = vmax.xlane.f32.xlu0 %v2465
        %v2485 = vpop.xlane.xlu0 %2484
        %2486 = vmax.xlane.f32.xlu0 %v2466
        %v2487 = vpop.xlane.xlu0 %2486
        %2488 = vmax.xlane.f32.xlu0 %v2467
        %v2489 = vpop.xlane.xlu0 %2488
        %2490 = vmax.xlane.f32.xlu0 %v2468
        %v2491 = vpop.xlane.xlu0 %2490
        %2492 = vmax.xlane.f32.xlu0 %v2469
        %v2493 = vpop.xlane.xlu0 %2492
        %2494 = vmax.xlane.f32.xlu0 %v2470
        %v2495 = vpop.xlane.xlu0 %2494
        %2496 = vmax.xlane.f32.xlu0 %v2471
        %v2497 = vpop.xlane.xlu0 %2496
        %2498 = vmax.xlane.f32.xlu0 %v2472
        %v2499 = vpop.xlane.xlu0 %2498
        %2500 = vmax.xlane.f32.xlu0 %v2473
        %v2501 = vpop.xlane.xlu0 %2500
        %2502 = vmax.xlane.f32.xlu0 %v2474
        %v2503 = vpop.xlane.xlu0 %2502
        %2504 = vmax.xlane.f32.xlu0 %v2475
        %v2505 = vpop.xlane.xlu0 %2504
        %2506 = vmax.xlane.f32.xlu0 %v2476
        %v2507 = vpop.xlane.xlu0 %2506
        %2508 = vmax.xlane.f32.xlu0 %v2477
        %v2509 = vpop.xlane.xlu0 %2508
        %v2510 = vsub.f32 %v2462, %v2479
        %v2511 = vsub.f32 %v2463, %v2481
        %v2512 = vsub.f32 %v2464, %v2483
        %v2513 = vsub.f32 %v2465, %v2485
        %v2514 = vsub.f32 %v2466, %v2487
        %v2515 = vsub.f32 %v2467, %v2489
        %v2516 = vsub.f32 %v2468, %v2491
        %v2517 = vsub.f32 %v2469, %v2493
        %v2518 = vsub.f32 %v2470, %v2495
        %v2519 = vsub.f32 %v2471, %v2497
        %v2520 = vsub.f32 %v2472, %v2499
        %v2521 = vsub.f32 %v2473, %v2501
        %v2522 = vsub.f32 %v2474, %v2503
        %v2523 = vsub.f32 %v2475, %v2505
        %v2524 = vsub.f32 %v2476, %v2507
        %v2525 = vsub.f32 %v2477, %v2509
        %v2526 = vmul.f32 %v2510, 1.442695
        %v2527 = vpow.pop %v2526
        %v2528 = vmul.f32 %v2511, 1.442695
        %v2529 = vpow.pop %v2528
        %v2530 = vmul.f32 %v2512, 1.442695
        %v2531 = vpow.pop %v2530
        %v2532 = vmul.f32 %v2513, 1.442695
        %v2533 = vpow.pop %v2532
        %v2534 = vmul.f32 %v2514, 1.442695
        %v2535 = vpow.pop %v2534
        %v2536 = vmul.f32 %v2515, 1.442695
        %v2537 = vpow.pop %v2536
        %v2538 = vmul.f32 %v2516, 1.442695
        %v2539 = vpow.pop %v2538
        %v2540 = vmul.f32 %v2517, 1.442695
        %v2541 = vpow.pop %v2540
        %v2542 = vmul.f32 %v2518, 1.442695
        %v2543 = vpow.pop %v2542
        %v2544 = vmul.f32 %v2519, 1.442695
        %v2545 = vpow.pop %v2544
        %v2546 = vmul.f32 %v2520, 1.442695
        %v2547 = vpow.pop %v2546
        %v2548 = vmul.f32 %v2521, 1.442695
        %v2549 = vpow.pop %v2548
        %v2550 = vmul.f32 %v2522, 1.442695
        %v2551 = vpow.pop %v2550
        %v2552 = vmul.f32 %v2523, 1.442695
        %v2553 = vpow.pop %v2552
        %v2554 = vmul.f32 %v2524, 1.442695
        %v2555 = vpow.pop %v2554
        %v2556 = vmul.f32 %v2525, 1.442695
        %v2557 = vpow.pop %v2556
        %v2558 = vmul.f32 %v2527, %v838
        %v2559 = vmul.f32 %v2529, %v839
        %v2560 = vmul.f32 %v2531, %v840
        %v2561 = vmul.f32 %v2533, %v841
        %v2562 = vmul.f32 %v2535, %v842
        %v2563 = vmul.f32 %v2537, %v843
        %v2564 = vmul.f32 %v2539, %v844
        %v2565 = vmul.f32 %v2541, %v845
        %v2566 = vmul.f32 %v2543, %v846
        %v2567 = vmul.f32 %v2545, %v847
        %v2568 = vmul.f32 %v2547, %v848
        %v2569 = vmul.f32 %v2549, %v849
        %v2570 = vmul.f32 %v2551, %v850
        %v2571 = vmul.f32 %v2553, %v851
        %v2572 = vmul.f32 %v2555, %v852
        %v2573 = vmul.f32 %v2557, %v853
        %2574 = vadd.xlane.f32.xlu0 %v2558
        %v2575 = vpop.xlane.xlu0 %2574
        %2576 = vadd.xlane.f32.xlu0 %v2559
        %v2577 = vpop.xlane.xlu0 %2576
        %2578 = vadd.xlane.f32.xlu0 %v2560
        %v2579 = vpop.xlane.xlu0 %2578
        %2580 = vadd.xlane.f32.xlu0 %v2561
        %v2581 = vpop.xlane.xlu0 %2580
        %2582 = vadd.xlane.f32.xlu0 %v2562
        %v2583 = vpop.xlane.xlu0 %2582
        %2584 = vadd.xlane.f32.xlu0 %v2563
        %v2585 = vpop.xlane.xlu0 %2584
        %2586 = vadd.xlane.f32.xlu0 %v2564
        %v2587 = vpop.xlane.xlu0 %2586
        %2588 = vadd.xlane.f32.xlu0 %v2565
        %v2589 = vpop.xlane.xlu0 %2588
        %2590 = vadd.xlane.f32.xlu0 %v2566
        %v2591 = vpop.xlane.xlu0 %2590
        %2592 = vadd.xlane.f32.xlu0 %v2567
        %v2593 = vpop.xlane.xlu0 %2592
        %2594 = vadd.xlane.f32.xlu0 %v2568
        %v2595 = vpop.xlane.xlu0 %2594
        %2596 = vadd.xlane.f32.xlu0 %v2569
        %v2597 = vpop.xlane.xlu0 %2596
        %2598 = vadd.xlane.f32.xlu0 %v2570
        %v2599 = vpop.xlane.xlu0 %2598
        %2600 = vadd.xlane.f32.xlu0 %v2571
        %v2601 = vpop.xlane.xlu0 %2600
        %2602 = vadd.xlane.f32.xlu0 %v2572
        %v2603 = vpop.xlane.xlu0 %2602
        %2604 = vadd.xlane.f32.xlu0 %v2573
        %v2605 = vpop.xlane.xlu0 %2604
        %v2606 = vadd.f32 %v2575, 1e-06
        %v2607 = vadd.f32 %v2577, 1e-06
        %v2608 = vadd.f32 %v2579, 1e-06
        %v2609 = vadd.f32 %v2581, 1e-06
        %v2610 = vadd.f32 %v2583, 1e-06
        %v2611 = vadd.f32 %v2585, 1e-06
        %v2612 = vadd.f32 %v2587, 1e-06
        %v2613 = vadd.f32 %v2589, 1e-06
        %v2614 = vadd.f32 %v2591, 1e-06
        %v2615 = vadd.f32 %v2593, 1e-06
        %v2616 = vadd.f32 %v2595, 1e-06
        %v2617 = vadd.f32 %v2597, 1e-06
        %v2618 = vadd.f32 %v2599, 1e-06
        %v2619 = vadd.f32 %v2601, 1e-06
        %v2620 = vadd.f32 %v2603, 1e-06
        %v2621 = vadd.f32 %v2605, 1e-06
        %v2622 = vrcp.pop %v2606
        %v2623 = vrcp.pop %v2607
        %v2624 = vrcp.pop %v2608
        %v2625 = vrcp.pop %v2609
        %v2626 = vrcp.pop %v2610
        %v2627 = vrcp.pop %v2611
        %v2628 = vrcp.pop %v2612
        %v2629 = vrcp.pop %v2613
        %v2630 = vrcp.pop %v2614
        %v2631 = vrcp.pop %v2615
        %v2632 = vrcp.pop %v2616
        %v2633 = vrcp.pop %v2617
        %v2634 = vrcp.pop %v2618
        %v2635 = vrcp.pop %v2619
        %v2636 = vrcp.pop %v2620
        %v2637 = vrcp.pop %v2621
        %v2638 = vadd.f32 %v2558, 1e-07
        %v2639 = vadd.f32 %v2559, 1e-07
        %v2640 = vadd.f32 %v2560, 1e-07
        %v2641 = vadd.f32 %v2561, 1e-07
        %v2642 = vadd.f32 %v2562, 1e-07
        %v2643 = vadd.f32 %v2563, 1e-07
        %v2644 = vadd.f32 %v2564, 1e-07
        %v2645 = vadd.f32 %v2565, 1e-07
        %v2646 = vadd.f32 %v2566, 1e-07
        %v2647 = vadd.f32 %v2567, 1e-07
        %v2648 = vadd.f32 %v2568, 1e-07
        %v2649 = vadd.f32 %v2569, 1e-07
        %v2650 = vadd.f32 %v2570, 1e-07
        %v2651 = vadd.f32 %v2571, 1e-07
        %v2652 = vadd.f32 %v2572, 1e-07
        %v2653 = vadd.f32 %v2573, 1e-07
        %v2654 = vmul.f32 %v2638, %v2622
        %v2655 = vmul.f32 %v2639, %v2623
        %v2656 = vmul.f32 %v2640, %v2624
        %v2657 = vmul.f32 %v2641, %v2625
        %v2658 = vmul.f32 %v2642, %v2626
        %v2659 = vmul.f32 %v2643, %v2627
        %v2660 = vmul.f32 %v2644, %v2628
        %v2661 = vmul.f32 %v2645, %v2629
        %v2662 = vmul.f32 %v2646, %v2630
        %v2663 = vmul.f32 %v2647, %v2631
        %v2664 = vmul.f32 %v2648, %v2632
        %v2665 = vmul.f32 %v2649, %v2633
        %v2666 = vmul.f32 %v2650, %v2634
        %v2667 = vmul.f32 %v2651, %v2635
        %v2668 = vmul.f32 %v2652, %v2636
        %v2669 = vmul.f32 %v2653, %v2637
        %2670 = vrot.lane.b32.xlu0 %v719, 64
        %v2671 = vpop.permute.xlu0 %2670
        %2672 = vrot.lane.b32.xlu0 %v724, 64
        %v2673 = vpop.permute.xlu0 %2672
        %2674 = vrot.lane.b32.xlu0 %v729, 64
        %v2675 = vpop.permute.xlu0 %2674
        %2676 = vrot.lane.b32.xlu0 %v734, 64
        %v2677 = vpop.permute.xlu0 %2676
        %2678 = vrot.lane.b32.xlu0 %v739, 64
        %v2679 = vpop.permute.xlu0 %2678
        %2680 = vrot.lane.b32.xlu0 %v744, 64
        %v2681 = vpop.permute.xlu0 %2680
        %2682 = vrot.lane.b32.xlu0 %v749, 64
        %v2683 = vpop.permute.xlu0 %2682
        %2684 = vrot.lane.b32.xlu0 %v754, 64
        %v2685 = vpop.permute.xlu0 %2684
        %2686 = vrot.lane.b32.xlu0 %v759, 64
        %v2687 = vpop.permute.xlu0 %2686
        %2688 = vrot.lane.b32.xlu0 %v764, 64
        %v2689 = vpop.permute.xlu0 %2688
        %2690 = vrot.lane.b32.xlu0 %v769, 64
        %v2691 = vpop.permute.xlu0 %2690
        %2692 = vrot.lane.b32.xlu0 %v774, 64
        %v2693 = vpop.permute.xlu0 %2692
        %2694 = vrot.lane.b32.xlu0 %v779, 64
        %v2695 = vpop.permute.xlu0 %2694
        %2696 = vrot.lane.b32.xlu0 %v784, 64
        %v2697 = vpop.permute.xlu0 %2696
        %2698 = vrot.lane.b32.xlu0 %v789, 64
        %v2699 = vpop.permute.xlu0 %2698
        %2700 = vrot.lane.b32.xlu0 %v794, 64
        %v2701 = vpop.permute.xlu0 %2700
        %2718 = vmatprep.subr.mxu0 0.0
        %2719 = vmatpush1.msra.mxu0 %v2701
        %2720 = vmatprep.subr.mxu0 0.0
        %2721 = vmatpush1.msra.mxu0 %v2699
        %2722 = vmatprep.subr.mxu0 0.0
        %2723 = vmatpush1.msra.mxu0 %v2697
        %2724 = vmatprep.subr.mxu0 0.0
        %2725 = vmatpush1.msra.mxu0 %v2695
        %2726 = vmatprep.subr.mxu0 0.0
        %2727 = vmatpush1.msra.mxu0 %v2693
        %2728 = vmatprep.subr.mxu0 0.0
        %2729 = vmatpush1.msra.mxu0 %v2691
        %2730 = vmatprep.subr.mxu0 0.0
        %2731 = vmatpush1.msra.mxu0 %v2689
        %2732 = vmatprep.subr.mxu0 0.0
        %2733 = vmatpush1.msra.mxu0 %v2687
        %2734 = vmatprep.subr.mxu0 0.0
        %2735 = vmatpush1.msra.mxu0 %v2685
        %2736 = vmatprep.subr.mxu0 0.0
        %2737 = vmatpush1.msra.mxu0 %v2683
        %2738 = vmatprep.subr.mxu0 0.0
        %2739 = vmatpush1.msra.mxu0 %v2681
        %2740 = vmatprep.subr.mxu0 0.0
        %2741 = vmatpush1.msra.mxu0 %v2679
        %2742 = vmatprep.subr.mxu0 0.0
        %2743 = vmatpush1.msra.mxu0 %v2677
        %2744 = vmatprep.subr.mxu0 0.0
        %2745 = vmatpush1.msra.mxu0 %v2675
        %2746 = vmatprep.subr.mxu0 0.0
        %2747 = vmatpush1.msra.mxu0 %v2673
        %2748 = vmatprep.subr.mxu0 0.0
        %2749 = vmatpush1.msra.mxu0 %v2671
        %2750 = vmatprep.subr.mxu0 0.0
        %2751 = vmatpush2.msra.mxu0 0.0
        %2752 = vmatprep.subr.mxu0 0.0
        %2753 = vmatpush2.msra.mxu0 0.0
        %2754 = vmatprep.subr.mxu0 0.0
        %2755 = vmatpush2.msra.mxu0 0.0
        %2756 = vmatprep.subr.mxu0 0.0
        %2757 = vmatpush2.msra.mxu0 0.0
        %2758 = vmatprep.subr.mxu0 0.0
        %2759 = vmatpush2.msra.mxu0 0.0
        %2760 = vmatprep.subr.mxu0 0.0
        %2761 = vmatpush2.msra.mxu0 0.0
        %2762 = vmatprep.subr.mxu0 0.0
        %2763 = vmatpush2.msra.mxu0 0.0
        %2764 = vmatprep.subr.mxu0 0.0
        %2765 = vmatpush2.msra.mxu0 0.0
        %2766 = vmatprep.subr.mxu0 0.0
        %2767 = vmatpush2.msra.mxu0 0.0
        %2768 = vmatprep.subr.mxu0 0.0
        %2769 = vmatpush2.msra.mxu0 0.0
        %2770 = vmatprep.subr.mxu0 0.0
        %2771 = vmatpush2.msra.mxu0 0.0
        %2772 = vmatprep.subr.mxu0 0.0
        %2773 = vmatpush2.msra.mxu0 0.0
        %2774 = vmatprep.subr.mxu0 0.0
        %2775 = vmatpush2.msra.mxu0 0.0
        %2776 = vmatprep.subr.mxu0 0.0
        %2777 = vmatpush2.msra.mxu0 0.0
        %2778 = vmatprep.subr.mxu0 0.0
        %2779 = vmatpush2.msra.mxu0 0.0
        %2780 = vmatprep.subr.mxu0 0.0
        %2781 = vmatpush2.msra.mxu0 0.0
        %2782 = vmatprep.mubr.f32.mxu0 0.0
        %2783 = vmatmul.mubr.f32.gmra.mxu0 %v2654
        %v2784 = vpop.f32.mrf.mxu0
        %v2785 = vadd.f32 0.0, %v2784
        %v2786 = vpop.f32.mrf.mxu0
        %2787 = vmatprep.mubr.f32.mxu0 0.0
        %2788 = vmatmul.mubr.f32.gmra.mxu0 %v2655
        %v2789 = vpop.f32.mrf.mxu0
        %v2790 = vadd.f32 0.0, %v2789
        %v2791 = vpop.f32.mrf.mxu0
        %2792 = vmatprep.mubr.f32.mxu0 0.0
        %2793 = vmatmul.mubr.f32.gmra.mxu0 %v2656
        %v2794 = vpop.f32.mrf.mxu0
        %v2795 = vadd.f32 0.0, %v2794
        %v2796 = vpop.f32.mrf.mxu0
        %2797 = vmatprep.mubr.f32.mxu0 0.0
        %2798 = vmatmul.mubr.f32.gmra.mxu0 %v2657
        %v2799 = vpop.f32.mrf.mxu0
        %v2800 = vadd.f32 0.0, %v2799
        %v2801 = vpop.f32.mrf.mxu0
        %2802 = vmatprep.mubr.f32.mxu0 0.0
        %2803 = vmatmul.mubr.f32.gmra.mxu0 %v2658
        %v2804 = vpop.f32.mrf.mxu0
        %v2805 = vadd.f32 0.0, %v2804
        %v2806 = vpop.f32.mrf.mxu0
        %2807 = vmatprep.mubr.f32.mxu0 0.0
        %2808 = vmatmul.mubr.f32.gmra.mxu0 %v2659
        %v2809 = vpop.f32.mrf.mxu0
        %v2810 = vadd.f32 0.0, %v2809
        %v2811 = vpop.f32.mrf.mxu0
        %2812 = vmatprep.mubr.f32.mxu0 0.0
        %2813 = vmatmul.mubr.f32.gmra.mxu0 %v2660
        %v2814 = vpop.f32.mrf.mxu0
        %v2815 = vadd.f32 0.0, %v2814
        %v2816 = vpop.f32.mrf.mxu0
        %2817 = vmatprep.mubr.f32.mxu0 0.0
        %2818 = vmatmul.mubr.f32.gmra.mxu0 %v2661
        %v2819 = vpop.f32.mrf.mxu0
        %v2820 = vadd.f32 0.0, %v2819
        %v2821 = vpop.f32.mrf.mxu0
        %2822 = vmatprep.mubr.f32.mxu0 0.0
        %2823 = vmatmul.mubr.f32.gmra.mxu0 %v2662
        %v2824 = vpop.f32.mrf.mxu0
        %v2825 = vadd.f32 0.0, %v2824
        %v2826 = vpop.f32.mrf.mxu0
        %2827 = vmatprep.mubr.f32.mxu0 0.0
        %2828 = vmatmul.mubr.f32.gmra.mxu0 %v2663
        %v2829 = vpop.f32.mrf.mxu0
        %v2830 = vadd.f32 0.0, %v2829
        %v2831 = vpop.f32.mrf.mxu0
        %2832 = vmatprep.mubr.f32.mxu0 0.0
        %2833 = vmatmul.mubr.f32.gmra.mxu0 %v2664
        %v2834 = vpop.f32.mrf.mxu0
        %v2835 = vadd.f32 0.0, %v2834
        %v2836 = vpop.f32.mrf.mxu0
        %2837 = vmatprep.mubr.f32.mxu0 0.0
        %2838 = vmatmul.mubr.f32.gmra.mxu0 %v2665
        %v2839 = vpop.f32.mrf.mxu0
        %v2840 = vadd.f32 0.0, %v2839
        %v2841 = vpop.f32.mrf.mxu0
        %2842 = vmatprep.mubr.f32.mxu0 0.0
        %2843 = vmatmul.mubr.f32.gmra.mxu0 %v2666
        %v2844 = vpop.f32.mrf.mxu0
        %v2845 = vadd.f32 0.0, %v2844
        %v2846 = vpop.f32.mrf.mxu0
        %2847 = vmatprep.mubr.f32.mxu0 0.0
        %2848 = vmatmul.mubr.f32.gmra.mxu0 %v2667
        %v2849 = vpop.f32.mrf.mxu0
        %v2850 = vadd.f32 0.0, %v2849
        %v2851 = vpop.f32.mrf.mxu0
        %2852 = vmatprep.mubr.f32.mxu0 0.0
        %2853 = vmatmul.mubr.f32.gmra.mxu0 %v2668
        %v2854 = vpop.f32.mrf.mxu0
        %v2855 = vadd.f32 0.0, %v2854
        %v2856 = vpop.f32.mrf.mxu0
        %2857 = vmatprep.mubr.f32.mxu0 0.0
        %2858 = vmatmul.mubr.f32.gmra.mxu0 %v2669
        %v2859 = vpop.f32.mrf.mxu0
        %v2860 = vadd.f32 0.0, %v2859
        %v2861 = vpop.f32.mrf.mxu0
        %2862 = vdwg.mxu0
        %2863 = vrot.lane.b32.xlu0 %v558, 32
        %v2864 = vpop.permute.xlu0 %2863
        %2865 = vrot.lane.b32.xlu0 %v564, 32
        %v2866 = vpop.permute.xlu0 %2865
        %2867 = vrot.lane.b32.xlu0 %v570, 32
        %v2868 = vpop.permute.xlu0 %2867
        %2869 = vrot.lane.b32.xlu0 %v576, 32
        %v2870 = vpop.permute.xlu0 %2869
        %2871 = vrot.lane.b32.xlu0 %v582, 32
        %v2872 = vpop.permute.xlu0 %2871
        %2873 = vrot.lane.b32.xlu0 %v588, 32
        %v2874 = vpop.permute.xlu0 %2873
        %2875 = vrot.lane.b32.xlu0 %v594, 32
        %v2876 = vpop.permute.xlu0 %2875
        %2877 = vrot.lane.b32.xlu0 %v600, 32
        %v2878 = vpop.permute.xlu0 %2877
        %2879 = vrot.lane.b32.xlu0 %v606, 32
        %v2880 = vpop.permute.xlu0 %2879
        %2881 = vrot.lane.b32.xlu0 %v612, 32
        %v2882 = vpop.permute.xlu0 %2881
        %2883 = vrot.lane.b32.xlu0 %v618, 32
        %v2884 = vpop.permute.xlu0 %2883
        %2885 = vrot.lane.b32.xlu0 %v624, 32
        %v2886 = vpop.permute.xlu0 %2885
        %2887 = vrot.lane.b32.xlu0 %v630, 32
        %v2888 = vpop.permute.xlu0 %2887
        %2889 = vrot.lane.b32.xlu0 %v636, 32
        %v2890 = vpop.permute.xlu0 %2889
        %2891 = vrot.lane.b32.xlu0 %v642, 32
        %v2892 = vpop.permute.xlu0 %2891
        %2893 = vrot.lane.b32.xlu0 %v648, 32
        %v2894 = vpop.permute.xlu0 %2893
        %2895 = vrot.lane.b32.xlu0 %v560, 32
        %v2896 = vpop.permute.xlu0 %2895
        %2897 = vrot.lane.b32.xlu0 %v566, 32
        %v2898 = vpop.permute.xlu0 %2897
        %2899 = vrot.lane.b32.xlu0 %v572, 32
        %v2900 = vpop.permute.xlu0 %2899
        %2901 = vrot.lane.b32.xlu0 %v578, 32
        %v2902 = vpop.permute.xlu0 %2901
        %2903 = vrot.lane.b32.xlu0 %v584, 32
        %v2904 = vpop.permute.xlu0 %2903
        %2905 = vrot.lane.b32.xlu0 %v590, 32
        %v2906 = vpop.permute.xlu0 %2905
        %2907 = vrot.lane.b32.xlu0 %v596, 32
        %v2908 = vpop.permute.xlu0 %2907
        %2909 = vrot.lane.b32.xlu0 %v602, 32
        %v2910 = vpop.permute.xlu0 %2909
        %2911 = vrot.lane.b32.xlu0 %v608, 32
        %v2912 = vpop.permute.xlu0 %2911
        %2913 = vrot.lane.b32.xlu0 %v614, 32
        %v2914 = vpop.permute.xlu0 %2913
        %2915 = vrot.lane.b32.xlu0 %v620, 32
        %v2916 = vpop.permute.xlu0 %2915
        %2917 = vrot.lane.b32.xlu0 %v626, 32
        %v2918 = vpop.permute.xlu0 %2917
        %2919 = vrot.lane.b32.xlu0 %v632, 32
        %v2920 = vpop.permute.xlu0 %2919
        %2921 = vrot.lane.b32.xlu0 %v638, 32
        %v2922 = vpop.permute.xlu0 %2921
        %2923 = vrot.lane.b32.xlu0 %v644, 32
        %v2924 = vpop.permute.xlu0 %2923
        %2925 = vrot.lane.b32.xlu0 %v650, 32
        %v2926 = vpop.permute.xlu0 %2925
        %v2927 = vsel %vm856, %v2864, 0
        %v2929 = vsel %vm856, %v2866, 0
        %v2931 = vsel %vm856, %v2868, 0
        %v2933 = vsel %vm856, %v2870, 0
        %v2935 = vsel %vm856, %v2872, 0
        %v2937 = vsel %vm856, %v2874, 0
        %v2939 = vsel %vm856, %v2876, 0
        %v2941 = vsel %vm856, %v2878, 0
        %v2943 = vsel %vm856, %v2880, 0
        %v2945 = vsel %vm856, %v2882, 0
        %v2947 = vsel %vm856, %v2884, 0
        %v2949 = vsel %vm856, %v2886, 0
        %v2951 = vsel %vm856, %v2888, 0
        %v2953 = vsel %vm856, %v2890, 0
        %v2955 = vsel %vm856, %v2892, 0
        %v2957 = vsel %vm856, %v2894, 0
        %v2959 = vsel %vm856, %v2896, 0
        %v2961 = vsel %vm856, %v2898, 0
        %v2963 = vsel %vm856, %v2900, 0
        %v2965 = vsel %vm856, %v2902, 0
        %v2967 = vsel %vm856, %v2904, 0
        %v2969 = vsel %vm856, %v2906, 0
        %v2971 = vsel %vm856, %v2908, 0
        %v2973 = vsel %vm856, %v2910, 0
        %v2975 = vsel %vm856, %v2912, 0
        %v2977 = vsel %vm856, %v2914, 0
        %v2979 = vsel %vm856, %v2916, 0
        %v2981 = vsel %vm856, %v2918, 0
        %v2983 = vsel %vm856, %v2920, 0
        %v2985 = vsel %vm856, %v2922, 0
        %v2987 = vsel %vm856, %v2924, 0
        %v2989 = vsel %vm856, %v2926, 0
        %2991 = vmatprep.subr.mxu0 0.0
        %2992 = vmatpush1.xpose.msra.mxu0 %v2989
        %2993 = vmatprep.subr.mxu0 0.0
        %2994 = vmatpush1.xpose.msra.mxu0 %v2987
        %2995 = vmatprep.subr.mxu0 0.0
        %2996 = vmatpush1.xpose.msra.mxu0 %v2985
        %2997 = vmatprep.subr.mxu0 0.0
        %2998 = vmatpush1.xpose.msra.mxu0 %v2983
        %2999 = vmatprep.subr.mxu0 0.0
        %3000 = vmatpush1.xpose.msra.mxu0 %v2981
        %3001 = vmatprep.subr.mxu0 0.0
        %3002 = vmatpush1.xpose.msra.mxu0 %v2979
        %3003 = vmatprep.subr.mxu0 0.0
        %3004 = vmatpush1.xpose.msra.mxu0 %v2977
        %3005 = vmatprep.subr.mxu0 0.0
        %3006 = vmatpush1.xpose.msra.mxu0 %v2975
        %3007 = vmatprep.subr.mxu0 0.0
        %3008 = vmatpush1.xpose.msra.mxu0 %v2973
        %3009 = vmatprep.subr.mxu0 0.0
        %3010 = vmatpush1.xpose.msra.mxu0 %v2971
        %3011 = vmatprep.subr.mxu0 0.0
        %3012 = vmatpush1.xpose.msra.mxu0 %v2969
        %3013 = vmatprep.subr.mxu0 0.0
        %3014 = vmatpush1.xpose.msra.mxu0 %v2967
        %3015 = vmatprep.subr.mxu0 0.0
        %3016 = vmatpush1.xpose.msra.mxu0 %v2965
        %3017 = vmatprep.subr.mxu0 0.0
        %3018 = vmatpush1.xpose.msra.mxu0 %v2963
        %3019 = vmatprep.subr.mxu0 0.0
        %3020 = vmatpush1.xpose.msra.mxu0 %v2961
        %3021 = vmatprep.subr.mxu0 0.0
        %3022 = vmatpush1.xpose.msra.mxu0 %v2959
        %3023 = vmatprep.subr.mxu0 0.0
        %3024 = vmatpush2.xpose.msra.mxu0 0.0
        %3025 = vmatprep.subr.mxu0 0.0
        %3026 = vmatpush2.xpose.msra.mxu0 0.0
        %3027 = vmatprep.subr.mxu0 0.0
        %3028 = vmatpush2.xpose.msra.mxu0 0.0
        %3029 = vmatprep.subr.mxu0 0.0
        %3030 = vmatpush2.xpose.msra.mxu0 0.0
        %3031 = vmatprep.subr.mxu0 0.0
        %3032 = vmatpush2.xpose.msra.mxu0 0.0
        %3033 = vmatprep.subr.mxu0 0.0
        %3034 = vmatpush2.xpose.msra.mxu0 0.0
        %3035 = vmatprep.subr.mxu0 0.0
        %3036 = vmatpush2.xpose.msra.mxu0 0.0
        %3037 = vmatprep.subr.mxu0 0.0
        %3038 = vmatpush2.xpose.msra.mxu0 0.0
        %3039 = vmatprep.subr.mxu0 0.0
        %3040 = vmatpush2.xpose.msra.mxu0 0.0
        %3041 = vmatprep.subr.mxu0 0.0
        %3042 = vmatpush2.xpose.msra.mxu0 0.0
        %3043 = vmatprep.subr.mxu0 0.0
        %3044 = vmatpush2.xpose.msra.mxu0 0.0
        %3045 = vmatprep.subr.mxu0 0.0
        %3046 = vmatpush2.xpose.msra.mxu0 0.0
        %3047 = vmatprep.subr.mxu0 0.0
        %3048 = vmatpush2.xpose.msra.mxu0 0.0
        %3049 = vmatprep.subr.mxu0 0.0
        %3050 = vmatpush2.xpose.msra.mxu0 0.0
        %3051 = vmatprep.subr.mxu0 0.0
        %3052 = vmatpush2.xpose.msra.mxu0 0.0
        %3053 = vmatprep.subr.mxu0 0.0
        %3054 = vmatpush2.xpose.msra.mxu0 0.0
        %3055 = vmatprep.mubr.f32.mxu0 0.0
        %3056 = vmatmul.mubr.f32.gmra.mxu0 %v2927
        %v3057 = vpop.f32.mrf.mxu0
        %v3058 = vadd.f32 0.0, %v3057
        %v3059 = vpop.f32.mrf.mxu0
        %3060 = vmatprep.mubr.f32.mxu0 0.0
        %3061 = vmatmul.mubr.f32.gmra.mxu0 %v2929
        %v3062 = vpop.f32.mrf.mxu0
        %v3063 = vadd.f32 0.0, %v3062
        %v3064 = vpop.f32.mrf.mxu0
        %3065 = vmatprep.mubr.f32.mxu0 0.0
        %3066 = vmatmul.mubr.f32.gmra.mxu0 %v2931
        %v3067 = vpop.f32.mrf.mxu0
        %v3068 = vadd.f32 0.0, %v3067
        %v3069 = vpop.f32.mrf.mxu0
        %3070 = vmatprep.mubr.f32.mxu0 0.0
        %3071 = vmatmul.mubr.f32.gmra.mxu0 %v2933
        %v3072 = vpop.f32.mrf.mxu0
        %v3073 = vadd.f32 0.0, %v3072
        %v3074 = vpop.f32.mrf.mxu0
        %3075 = vmatprep.mubr.f32.mxu0 0.0
        %3076 = vmatmul.mubr.f32.gmra.mxu0 %v2935
        %v3077 = vpop.f32.mrf.mxu0
        %v3078 = vadd.f32 0.0, %v3077
        %v3079 = vpop.f32.mrf.mxu0
        %3080 = vmatprep.mubr.f32.mxu0 0.0
        %3081 = vmatmul.mubr.f32.gmra.mxu0 %v2937
        %v3082 = vpop.f32.mrf.mxu0
        %v3083 = vadd.f32 0.0, %v3082
        %v3084 = vpop.f32.mrf.mxu0
        %3085 = vmatprep.mubr.f32.mxu0 0.0
        %3086 = vmatmul.mubr.f32.gmra.mxu0 %v2939
        %v3087 = vpop.f32.mrf.mxu0
        %v3088 = vadd.f32 0.0, %v3087
        %v3089 = vpop.f32.mrf.mxu0
        %3090 = vmatprep.mubr.f32.mxu0 0.0
        %3091 = vmatmul.mubr.f32.gmra.mxu0 %v2941
        %v3092 = vpop.f32.mrf.mxu0
        %v3093 = vadd.f32 0.0, %v3092
        %v3094 = vpop.f32.mrf.mxu0
        %3095 = vmatprep.mubr.f32.mxu0 0.0
        %3096 = vmatmul.mubr.f32.gmra.mxu0 %v2943
        %v3097 = vpop.f32.mrf.mxu0
        %v3098 = vadd.f32 0.0, %v3097
        %v3099 = vpop.f32.mrf.mxu0
        %3100 = vmatprep.mubr.f32.mxu0 0.0
        %3101 = vmatmul.mubr.f32.gmra.mxu0 %v2945
        %v3102 = vpop.f32.mrf.mxu0
        %v3103 = vadd.f32 0.0, %v3102
        %v3104 = vpop.f32.mrf.mxu0
        %3105 = vmatprep.mubr.f32.mxu0 0.0
        %3106 = vmatmul.mubr.f32.gmra.mxu0 %v2947
        %v3107 = vpop.f32.mrf.mxu0
        %v3108 = vadd.f32 0.0, %v3107
        %v3109 = vpop.f32.mrf.mxu0
        %3110 = vmatprep.mubr.f32.mxu0 0.0
        %3111 = vmatmul.mubr.f32.gmra.mxu0 %v2949
        %v3112 = vpop.f32.mrf.mxu0
        %v3113 = vadd.f32 0.0, %v3112
        %v3114 = vpop.f32.mrf.mxu0
        %3115 = vmatprep.mubr.f32.mxu0 0.0
        %3116 = vmatmul.mubr.f32.gmra.mxu0 %v2951
        %v3117 = vpop.f32.mrf.mxu0
        %v3118 = vadd.f32 0.0, %v3117
        %v3119 = vpop.f32.mrf.mxu0
        %3120 = vmatprep.mubr.f32.mxu0 0.0
        %3121 = vmatmul.mubr.f32.gmra.mxu0 %v2953
        %v3122 = vpop.f32.mrf.mxu0
        %v3123 = vadd.f32 0.0, %v3122
        %v3124 = vpop.f32.mrf.mxu0
        %3125 = vmatprep.mubr.f32.mxu0 0.0
        %3126 = vmatmul.mubr.f32.gmra.mxu0 %v2955
        %v3127 = vpop.f32.mrf.mxu0
        %v3128 = vadd.f32 0.0, %v3127
        %v3129 = vpop.f32.mrf.mxu0
        %3130 = vmatprep.mubr.f32.mxu0 0.0
        %3131 = vmatmul.mubr.f32.gmra.mxu0 %v2957
        %v3132 = vpop.f32.mrf.mxu0
        %v3133 = vadd.f32 0.0, %v3132
        %v3134 = vpop.f32.mrf.mxu0
        %3135 = vdwg.mxu0
        %v3136 = vmul.f32 %v3058, 0.17677669
        %v3137 = vmul.f32 %v3063, 0.17677669
        %v3138 = vmul.f32 %v3068, 0.17677669
        %v3139 = vmul.f32 %v3073, 0.17677669
        %v3140 = vmul.f32 %v3078, 0.17677669
        %v3141 = vmul.f32 %v3083, 0.17677669
        %v3142 = vmul.f32 %v3088, 0.17677669
        %v3143 = vmul.f32 %v3093, 0.17677669
        %v3144 = vmul.f32 %v3098, 0.17677669
        %v3145 = vmul.f32 %v3103, 0.17677669
        %v3146 = vmul.f32 %v3108, 0.17677669
        %v3147 = vmul.f32 %v3113, 0.17677669
        %v3148 = vmul.f32 %v3118, 0.17677669
        %v3149 = vmul.f32 %v3123, 0.17677669
        %v3150 = vmul.f32 %v3128, 0.17677669
        %v3151 = vmul.f32 %v3133, 0.17677669
        %v3152 = vadd.f32 %v3136, %v855
        %v3153 = vadd.f32 %v3137, %v855
        %v3154 = vadd.f32 %v3138, %v855
        %v3155 = vadd.f32 %v3139, %v855
        %v3156 = vadd.f32 %v3140, %v855
        %v3157 = vadd.f32 %v3141, %v855
        %v3158 = vadd.f32 %v3142, %v855
        %v3159 = vadd.f32 %v3143, %v855
        %v3160 = vadd.f32 %v3144, %v855
        %v3161 = vadd.f32 %v3145, %v855
        %v3162 = vadd.f32 %v3146, %v855
        %v3163 = vadd.f32 %v3147, %v855
        %v3164 = vadd.f32 %v3148, %v855
        %v3165 = vadd.f32 %v3149, %v855
        %v3166 = vadd.f32 %v3150, %v855
        %v3167 = vadd.f32 %v3151, %v855
        %3168 = vmax.xlane.f32.xlu0 %v3152
        %v3169 = vpop.xlane.xlu0 %3168
        %3170 = vmax.xlane.f32.xlu0 %v3153
        %v3171 = vpop.xlane.xlu0 %3170
        %3172 = vmax.xlane.f32.xlu0 %v3154
        %v3173 = vpop.xlane.xlu0 %3172
        %3174 = vmax.xlane.f32.xlu0 %v3155
        %v3175 = vpop.xlane.xlu0 %3174
        %3176 = vmax.xlane.f32.xlu0 %v3156
        %v3177 = vpop.xlane.xlu0 %3176
        %3178 = vmax.xlane.f32.xlu0 %v3157
        %v3179 = vpop.xlane.xlu0 %3178
        %3180 = vmax.xlane.f32.xlu0 %v3158
        %v3181 = vpop.xlane.xlu0 %3180
        %3182 = vmax.xlane.f32.xlu0 %v3159
        %v3183 = vpop.xlane.xlu0 %3182
        %3184 = vmax.xlane.f32.xlu0 %v3160
        %v3185 = vpop.xlane.xlu0 %3184
        %3186 = vmax.xlane.f32.xlu0 %v3161
        %v3187 = vpop.xlane.xlu0 %3186
        %3188 = vmax.xlane.f32.xlu0 %v3162
        %v3189 = vpop.xlane.xlu0 %3188
        %3190 = vmax.xlane.f32.xlu0 %v3163
        %v3191 = vpop.xlane.xlu0 %3190
        %3192 = vmax.xlane.f32.xlu0 %v3164
        %v3193 = vpop.xlane.xlu0 %3192
        %3194 = vmax.xlane.f32.xlu0 %v3165
        %v3195 = vpop.xlane.xlu0 %3194
        %3196 = vmax.xlane.f32.xlu0 %v3166
        %v3197 = vpop.xlane.xlu0 %3196
        %3198 = vmax.xlane.f32.xlu0 %v3167
        %v3199 = vpop.xlane.xlu0 %3198
        %v3200 = vsub.f32 %v3152, %v3169
        %v3201 = vsub.f32 %v3153, %v3171
        %v3202 = vsub.f32 %v3154, %v3173
        %v3203 = vsub.f32 %v3155, %v3175
        %v3204 = vsub.f32 %v3156, %v3177
        %v3205 = vsub.f32 %v3157, %v3179
        %v3206 = vsub.f32 %v3158, %v3181
        %v3207 = vsub.f32 %v3159, %v3183
        %v3208 = vsub.f32 %v3160, %v3185
        %v3209 = vsub.f32 %v3161, %v3187
        %v3210 = vsub.f32 %v3162, %v3189
        %v3211 = vsub.f32 %v3163, %v3191
        %v3212 = vsub.f32 %v3164, %v3193
        %v3213 = vsub.f32 %v3165, %v3195
        %v3214 = vsub.f32 %v3166, %v3197
        %v3215 = vsub.f32 %v3167, %v3199
        %v3216 = vmul.f32 %v3200, 1.442695
        %v3217 = vpow.pop %v3216
        %v3218 = vmul.f32 %v3201, 1.442695
        %v3219 = vpow.pop %v3218
        %v3220 = vmul.f32 %v3202, 1.442695
        %v3221 = vpow.pop %v3220
        %v3222 = vmul.f32 %v3203, 1.442695
        %v3223 = vpow.pop %v3222
        %v3224 = vmul.f32 %v3204, 1.442695
        %v3225 = vpow.pop %v3224
        %v3226 = vmul.f32 %v3205, 1.442695
        %v3227 = vpow.pop %v3226
        %v3228 = vmul.f32 %v3206, 1.442695
        %v3229 = vpow.pop %v3228
        %v3230 = vmul.f32 %v3207, 1.442695
        %v3231 = vpow.pop %v3230
        %v3232 = vmul.f32 %v3208, 1.442695
        %v3233 = vpow.pop %v3232
        %v3234 = vmul.f32 %v3209, 1.442695
        %v3235 = vpow.pop %v3234
        %v3236 = vmul.f32 %v3210, 1.442695
        %v3237 = vpow.pop %v3236
        %v3238 = vmul.f32 %v3211, 1.442695
        %v3239 = vpow.pop %v3238
        %v3240 = vmul.f32 %v3212, 1.442695
        %v3241 = vpow.pop %v3240
        %v3242 = vmul.f32 %v3213, 1.442695
        %v3243 = vpow.pop %v3242
        %v3244 = vmul.f32 %v3214, 1.442695
        %v3245 = vpow.pop %v3244
        %v3246 = vmul.f32 %v3215, 1.442695
        %v3247 = vpow.pop %v3246
        %v3248 = vmul.f32 %v3217, %v838
        %v3249 = vmul.f32 %v3219, %v839
        %v3250 = vmul.f32 %v3221, %v840
        %v3251 = vmul.f32 %v3223, %v841
        %v3252 = vmul.f32 %v3225, %v842
        %v3253 = vmul.f32 %v3227, %v843
        %v3254 = vmul.f32 %v3229, %v844
        %v3255 = vmul.f32 %v3231, %v845
        %v3256 = vmul.f32 %v3233, %v846
        %v3257 = vmul.f32 %v3235, %v847
        %v3258 = vmul.f32 %v3237, %v848
        %v3259 = vmul.f32 %v3239, %v849
        %v3260 = vmul.f32 %v3241, %v850
        %v3261 = vmul.f32 %v3243, %v851
        %v3262 = vmul.f32 %v3245, %v852
        %v3263 = vmul.f32 %v3247, %v853
        %3264 = vadd.xlane.f32.xlu0 %v3248
        %v3265 = vpop.xlane.xlu0 %3264
        %3266 = vadd.xlane.f32.xlu0 %v3249
        %v3267 = vpop.xlane.xlu0 %3266
        %3268 = vadd.xlane.f32.xlu0 %v3250
        %v3269 = vpop.xlane.xlu0 %3268
        %3270 = vadd.xlane.f32.xlu0 %v3251
        %v3271 = vpop.xlane.xlu0 %3270
        %3272 = vadd.xlane.f32.xlu0 %v3252
        %v3273 = vpop.xlane.xlu0 %3272
        %3274 = vadd.xlane.f32.xlu0 %v3253
        %v3275 = vpop.xlane.xlu0 %3274
        %3276 = vadd.xlane.f32.xlu0 %v3254
        %v3277 = vpop.xlane.xlu0 %3276
        %3278 = vadd.xlane.f32.xlu0 %v3255
        %v3279 = vpop.xlane.xlu0 %3278
        %3280 = vadd.xlane.f32.xlu0 %v3256
        %v3281 = vpop.xlane.xlu0 %3280
        %3282 = vadd.xlane.f32.xlu0 %v3257
        %v3283 = vpop.xlane.xlu0 %3282
        %3284 = vadd.xlane.f32.xlu0 %v3258
        %v3285 = vpop.xlane.xlu0 %3284
        %3286 = vadd.xlane.f32.xlu0 %v3259
        %v3287 = vpop.xlane.xlu0 %3286
        %3288 = vadd.xlane.f32.xlu0 %v3260
        %v3289 = vpop.xlane.xlu0 %3288
        %3290 = vadd.xlane.f32.xlu0 %v3261
        %v3291 = vpop.xlane.xlu0 %3290
        %3292 = vadd.xlane.f32.xlu0 %v3262
        %v3293 = vpop.xlane.xlu0 %3292
        %3294 = vadd.xlane.f32.xlu0 %v3263
        %v3295 = vpop.xlane.xlu0 %3294
        %v3296 = vadd.f32 %v3265, 1e-06
        %v3297 = vadd.f32 %v3267, 1e-06
        %v3298 = vadd.f32 %v3269, 1e-06
        %v3299 = vadd.f32 %v3271, 1e-06
        %v3300 = vadd.f32 %v3273, 1e-06
        %v3301 = vadd.f32 %v3275, 1e-06
        %v3302 = vadd.f32 %v3277, 1e-06
        %v3303 = vadd.f32 %v3279, 1e-06
        %v3304 = vadd.f32 %v3281, 1e-06
        %v3305 = vadd.f32 %v3283, 1e-06
        %v3306 = vadd.f32 %v3285, 1e-06
        %v3307 = vadd.f32 %v3287, 1e-06
        %v3308 = vadd.f32 %v3289, 1e-06
        %v3309 = vadd.f32 %v3291, 1e-06
        %v3310 = vadd.f32 %v3293, 1e-06
        %v3311 = vadd.f32 %v3295, 1e-06
        %v3312 = vrcp.pop %v3296
        %v3313 = vrcp.pop %v3297
        %v3314 = vrcp.pop %v3298
        %v3315 = vrcp.pop %v3299
        %v3316 = vrcp.pop %v3300
        %v3317 = vrcp.pop %v3301
        %v3318 = vrcp.pop %v3302
        %v3319 = vrcp.pop %v3303
        %v3320 = vrcp.pop %v3304
        %v3321 = vrcp.pop %v3305
        %v3322 = vrcp.pop %v3306
        %v3323 = vrcp.pop %v3307
        %v3324 = vrcp.pop %v3308
        %v3325 = vrcp.pop %v3309
        %v3326 = vrcp.pop %v3310
        %v3327 = vrcp.pop %v3311
        %v3328 = vadd.f32 %v3248, 1e-07
        %v3329 = vadd.f32 %v3249, 1e-07
        %v3330 = vadd.f32 %v3250, 1e-07
        %v3331 = vadd.f32 %v3251, 1e-07
        %v3332 = vadd.f32 %v3252, 1e-07
        %v3333 = vadd.f32 %v3253, 1e-07
        %v3334 = vadd.f32 %v3254, 1e-07
        %v3335 = vadd.f32 %v3255, 1e-07
        %v3336 = vadd.f32 %v3256, 1e-07
        %v3337 = vadd.f32 %v3257, 1e-07
        %v3338 = vadd.f32 %v3258, 1e-07
        %v3339 = vadd.f32 %v3259, 1e-07
        %v3340 = vadd.f32 %v3260, 1e-07
        %v3341 = vadd.f32 %v3261, 1e-07
        %v3342 = vadd.f32 %v3262, 1e-07
        %v3343 = vadd.f32 %v3263, 1e-07
        %v3344 = vmul.f32 %v3328, %v3312
        %v3345 = vmul.f32 %v3329, %v3313
        %v3346 = vmul.f32 %v3330, %v3314
        %v3347 = vmul.f32 %v3331, %v3315
        %v3348 = vmul.f32 %v3332, %v3316
        %v3349 = vmul.f32 %v3333, %v3317
        %v3350 = vmul.f32 %v3334, %v3318
        %v3351 = vmul.f32 %v3335, %v3319
        %v3352 = vmul.f32 %v3336, %v3320
        %v3353 = vmul.f32 %v3337, %v3321
        %v3354 = vmul.f32 %v3338, %v3322
        %v3355 = vmul.f32 %v3339, %v3323
        %v3356 = vmul.f32 %v3340, %v3324
        %v3357 = vmul.f32 %v3341, %v3325
        %v3358 = vmul.f32 %v3342, %v3326
        %v3359 = vmul.f32 %v3343, %v3327
        %3360 = vrot.lane.b32.xlu0 %v719, 32
        %v3361 = vpop.permute.xlu0 %3360
        %3362 = vrot.lane.b32.xlu0 %v724, 32
        %v3363 = vpop.permute.xlu0 %3362
        %3364 = vrot.lane.b32.xlu0 %v729, 32
        %v3365 = vpop.permute.xlu0 %3364
        %3366 = vrot.lane.b32.xlu0 %v734, 32
        %v3367 = vpop.permute.xlu0 %3366
        %3368 = vrot.lane.b32.xlu0 %v739, 32
        %v3369 = vpop.permute.xlu0 %3368
        %3370 = vrot.lane.b32.xlu0 %v744, 32
        %v3371 = vpop.permute.xlu0 %3370
        %3372 = vrot.lane.b32.xlu0 %v749, 32
        %v3373 = vpop.permute.xlu0 %3372
        %3374 = vrot.lane.b32.xlu0 %v754, 32
        %v3375 = vpop.permute.xlu0 %3374
        %3376 = vrot.lane.b32.xlu0 %v759, 32
        %v3377 = vpop.permute.xlu0 %3376
        %3378 = vrot.lane.b32.xlu0 %v764, 32
        %v3379 = vpop.permute.xlu0 %3378
        %3380 = vrot.lane.b32.xlu0 %v769, 32
        %v3381 = vpop.permute.xlu0 %3380
        %3382 = vrot.lane.b32.xlu0 %v774, 32
        %v3383 = vpop.permute.xlu0 %3382
        %3384 = vrot.lane.b32.xlu0 %v779, 32
        %v3385 = vpop.permute.xlu0 %3384
        %3386 = vrot.lane.b32.xlu0 %v784, 32
        %v3387 = vpop.permute.xlu0 %3386
        %3388 = vrot.lane.b32.xlu0 %v789, 32
        %v3389 = vpop.permute.xlu0 %3388
        %3390 = vrot.lane.b32.xlu0 %v794, 32
        %v3391 = vpop.permute.xlu0 %3390
        %3408 = vmatprep.subr.mxu0 0.0
        %3409 = vmatpush1.msra.mxu0 %v3391
        %3410 = vmatprep.subr.mxu0 0.0
        %3411 = vmatpush1.msra.mxu0 %v3389
        %3412 = vmatprep.subr.mxu0 0.0
        %3413 = vmatpush1.msra.mxu0 %v3387
        %3414 = vmatprep.subr.mxu0 0.0
        %3415 = vmatpush1.msra.mxu0 %v3385
        %3416 = vmatprep.subr.mxu0 0.0
        %3417 = vmatpush1.msra.mxu0 %v3383
        %3418 = vmatprep.subr.mxu0 0.0
        %3419 = vmatpush1.msra.mxu0 %v3381
        %3420 = vmatprep.subr.mxu0 0.0
        %3421 = vmatpush1.msra.mxu0 %v3379
        %3422 = vmatprep.subr.mxu0 0.0
        %3423 = vmatpush1.msra.mxu0 %v3377
        %3424 = vmatprep.subr.mxu0 0.0
        %3425 = vmatpush1.msra.mxu0 %v3375
        %3426 = vmatprep.subr.mxu0 0.0
        %3427 = vmatpush1.msra.mxu0 %v3373
        %3428 = vmatprep.subr.mxu0 0.0
        %3429 = vmatpush1.msra.mxu0 %v3371
        %3430 = vmatprep.subr.mxu0 0.0
        %3431 = vmatpush1.msra.mxu0 %v3369
        %3432 = vmatprep.subr.mxu0 0.0
        %3433 = vmatpush1.msra.mxu0 %v3367
        %3434 = vmatprep.subr.mxu0 0.0
        %3435 = vmatpush1.msra.mxu0 %v3365
        %3436 = vmatprep.subr.mxu0 0.0
        %3437 = vmatpush1.msra.mxu0 %v3363
        %3438 = vmatprep.subr.mxu0 0.0
        %3439 = vmatpush1.msra.mxu0 %v3361
        %3440 = vmatprep.subr.mxu0 0.0
        %3441 = vmatpush2.msra.mxu0 0.0
        %3442 = vmatprep.subr.mxu0 0.0
        %3443 = vmatpush2.msra.mxu0 0.0
        %3444 = vmatprep.subr.mxu0 0.0
        %3445 = vmatpush2.msra.mxu0 0.0
        %3446 = vmatprep.subr.mxu0 0.0
        %3447 = vmatpush2.msra.mxu0 0.0
        %3448 = vmatprep.subr.mxu0 0.0
        %3449 = vmatpush2.msra.mxu0 0.0
        %3450 = vmatprep.subr.mxu0 0.0
        %3451 = vmatpush2.msra.mxu0 0.0
        %3452 = vmatprep.subr.mxu0 0.0
        %3453 = vmatpush2.msra.mxu0 0.0
        %3454 = vmatprep.subr.mxu0 0.0
        %3455 = vmatpush2.msra.mxu0 0.0
        %3456 = vmatprep.subr.mxu0 0.0
        %3457 = vmatpush2.msra.mxu0 0.0
        %3458 = vmatprep.subr.mxu0 0.0
        %3459 = vmatpush2.msra.mxu0 0.0
        %3460 = vmatprep.subr.mxu0 0.0
        %3461 = vmatpush2.msra.mxu0 0.0
        %3462 = vmatprep.subr.mxu0 0.0
        %3463 = vmatpush2.msra.mxu0 0.0
        %3464 = vmatprep.subr.mxu0 0.0
        %3465 = vmatpush2.msra.mxu0 0.0
        %3466 = vmatprep.subr.mxu0 0.0
        %3467 = vmatpush2.msra.mxu0 0.0
        %3468 = vmatprep.subr.mxu0 0.0
        %3469 = vmatpush2.msra.mxu0 0.0
        %3470 = vmatprep.subr.mxu0 0.0
        %3471 = vmatpush2.msra.mxu0 0.0
        %3472 = vmatprep.mubr.f32.mxu0 0.0
        %3473 = vmatmul.mubr.f32.gmra.mxu0 %v3344
        %v3474 = vpop.f32.mrf.mxu0
        %v3475 = vadd.f32 0.0, %v3474
        %v3476 = vpop.f32.mrf.mxu0
        %3477 = vmatprep.mubr.f32.mxu0 0.0
        %3478 = vmatmul.mubr.f32.gmra.mxu0 %v3345
        %v3479 = vpop.f32.mrf.mxu0
        %v3480 = vadd.f32 0.0, %v3479
        %v3481 = vpop.f32.mrf.mxu0
        %3482 = vmatprep.mubr.f32.mxu0 0.0
        %3483 = vmatmul.mubr.f32.gmra.mxu0 %v3346
        %v3484 = vpop.f32.mrf.mxu0
        %v3485 = vadd.f32 0.0, %v3484
        %v3486 = vpop.f32.mrf.mxu0
        %3487 = vmatprep.mubr.f32.mxu0 0.0
        %3488 = vmatmul.mubr.f32.gmra.mxu0 %v3347
        %v3489 = vpop.f32.mrf.mxu0
        %v3490 = vadd.f32 0.0, %v3489
        %v3491 = vpop.f32.mrf.mxu0
        %3492 = vmatprep.mubr.f32.mxu0 0.0
        %3493 = vmatmul.mubr.f32.gmra.mxu0 %v3348
        %v3494 = vpop.f32.mrf.mxu0
        %v3495 = vadd.f32 0.0, %v3494
        %v3496 = vpop.f32.mrf.mxu0
        %3497 = vmatprep.mubr.f32.mxu0 0.0
        %3498 = vmatmul.mubr.f32.gmra.mxu0 %v3349
        %v3499 = vpop.f32.mrf.mxu0
        %v3500 = vadd.f32 0.0, %v3499
        %v3501 = vpop.f32.mrf.mxu0
        %3502 = vmatprep.mubr.f32.mxu0 0.0
        %3503 = vmatmul.mubr.f32.gmra.mxu0 %v3350
        %v3504 = vpop.f32.mrf.mxu0
        %v3505 = vadd.f32 0.0, %v3504
        %v3506 = vpop.f32.mrf.mxu0
        %3507 = vmatprep.mubr.f32.mxu0 0.0
        %3508 = vmatmul.mubr.f32.gmra.mxu0 %v3351
        %v3509 = vpop.f32.mrf.mxu0
        %v3510 = vadd.f32 0.0, %v3509
        %v3511 = vpop.f32.mrf.mxu0
        %3512 = vmatprep.mubr.f32.mxu0 0.0
        %3513 = vmatmul.mubr.f32.gmra.mxu0 %v3352
        %v3514 = vpop.f32.mrf.mxu0
        %v3515 = vadd.f32 0.0, %v3514
        %v3516 = vpop.f32.mrf.mxu0
        %3517 = vmatprep.mubr.f32.mxu0 0.0
        %3518 = vmatmul.mubr.f32.gmra.mxu0 %v3353
        %v3519 = vpop.f32.mrf.mxu0
        %v3520 = vadd.f32 0.0, %v3519
        %v3521 = vpop.f32.mrf.mxu0
        %3522 = vmatprep.mubr.f32.mxu0 0.0
        %3523 = vmatmul.mubr.f32.gmra.mxu0 %v3354
        %v3524 = vpop.f32.mrf.mxu0
        %v3525 = vadd.f32 0.0, %v3524
        %v3526 = vpop.f32.mrf.mxu0
        %3527 = vmatprep.mubr.f32.mxu0 0.0
        %3528 = vmatmul.mubr.f32.gmra.mxu0 %v3355
        %v3529 = vpop.f32.mrf.mxu0
        %v3530 = vadd.f32 0.0, %v3529
        %v3531 = vpop.f32.mrf.mxu0
        %3532 = vmatprep.mubr.f32.mxu0 0.0
        %3533 = vmatmul.mubr.f32.gmra.mxu0 %v3356
        %v3534 = vpop.f32.mrf.mxu0
        %v3535 = vadd.f32 0.0, %v3534
        %v3536 = vpop.f32.mrf.mxu0
        %3537 = vmatprep.mubr.f32.mxu0 0.0
        %3538 = vmatmul.mubr.f32.gmra.mxu0 %v3357
        %v3539 = vpop.f32.mrf.mxu0
        %v3540 = vadd.f32 0.0, %v3539
        %v3541 = vpop.f32.mrf.mxu0
        %3542 = vmatprep.mubr.f32.mxu0 0.0
        %3543 = vmatmul.mubr.f32.gmra.mxu0 %v3358
        %v3544 = vpop.f32.mrf.mxu0
        %v3545 = vadd.f32 0.0, %v3544
        %v3546 = vpop.f32.mrf.mxu0
        %3547 = vmatprep.mubr.f32.mxu0 0.0
        %3548 = vmatmul.mubr.f32.gmra.mxu0 %v3359
        %v3549 = vpop.f32.mrf.mxu0
        %v3550 = vadd.f32 0.0, %v3549
        %v3551 = vpop.f32.mrf.mxu0
        %3552 = vdwg.mxu0
        %3569 = vrot.lane.b32.xlu0 %v2095, 32
        %v3570 = vpop.permute.xlu0 %3569
        %3571 = vrot.lane.b32.xlu0 %v2100, 32
        %v3572 = vpop.permute.xlu0 %3571
        %3573 = vrot.lane.b32.xlu0 %v2105, 32
        %v3574 = vpop.permute.xlu0 %3573
        %3575 = vrot.lane.b32.xlu0 %v2110, 32
        %v3576 = vpop.permute.xlu0 %3575
        %3577 = vrot.lane.b32.xlu0 %v2115, 32
        %v3578 = vpop.permute.xlu0 %3577
        %3579 = vrot.lane.b32.xlu0 %v2120, 32
        %v3580 = vpop.permute.xlu0 %3579
        %3581 = vrot.lane.b32.xlu0 %v2125, 32
        %v3582 = vpop.permute.xlu0 %3581
        %3583 = vrot.lane.b32.xlu0 %v2130, 32
        %v3584 = vpop.permute.xlu0 %3583
        %3585 = vrot.lane.b32.xlu0 %v2135, 32
        %v3586 = vpop.permute.xlu0 %3585
        %3587 = vrot.lane.b32.xlu0 %v2140, 32
        %v3588 = vpop.permute.xlu0 %3587
        %3589 = vrot.lane.b32.xlu0 %v2145, 32
        %v3590 = vpop.permute.xlu0 %3589
        %3591 = vrot.lane.b32.xlu0 %v2150, 32
        %v3592 = vpop.permute.xlu0 %3591
        %3593 = vrot.lane.b32.xlu0 %v2155, 32
        %v3594 = vpop.permute.xlu0 %3593
        %3595 = vrot.lane.b32.xlu0 %v2160, 32
        %v3596 = vpop.permute.xlu0 %3595
        %3597 = vrot.lane.b32.xlu0 %v2165, 32
        %v3598 = vpop.permute.xlu0 %3597
        %3599 = vrot.lane.b32.xlu0 %v2170, 32
        %v3600 = vpop.permute.xlu0 %3599
        %3633 = vrot.lane.b32.xlu0 %v2785, 64
        %v3634 = vpop.permute.xlu0 %3633
        %3635 = vrot.lane.b32.xlu0 %v2790, 64
        %v3636 = vpop.permute.xlu0 %3635
        %3637 = vrot.lane.b32.xlu0 %v2795, 64
        %v3638 = vpop.permute.xlu0 %3637
        %3639 = vrot.lane.b32.xlu0 %v2800, 64
        %v3640 = vpop.permute.xlu0 %3639
        %3641 = vrot.lane.b32.xlu0 %v2805, 64
        %v3642 = vpop.permute.xlu0 %3641
        %3643 = vrot.lane.b32.xlu0 %v2810, 64
        %v3644 = vpop.permute.xlu0 %3643
        %3645 = vrot.lane.b32.xlu0 %v2815, 64
        %v3646 = vpop.permute.xlu0 %3645
        %3647 = vrot.lane.b32.xlu0 %v2820, 64
        %v3648 = vpop.permute.xlu0 %3647
        %3649 = vrot.lane.b32.xlu0 %v2825, 64
        %v3650 = vpop.permute.xlu0 %3649
        %3651 = vrot.lane.b32.xlu0 %v2830, 64
        %v3652 = vpop.permute.xlu0 %3651
        %3653 = vrot.lane.b32.xlu0 %v2835, 64
        %v3654 = vpop.permute.xlu0 %3653
        %3655 = vrot.lane.b32.xlu0 %v2840, 64
        %v3656 = vpop.permute.xlu0 %3655
        %3657 = vrot.lane.b32.xlu0 %v2845, 64
        %v3658 = vpop.permute.xlu0 %3657
        %3659 = vrot.lane.b32.xlu0 %v2850, 64
        %v3660 = vpop.permute.xlu0 %3659
        %3661 = vrot.lane.b32.xlu0 %v2855, 64
        %v3662 = vpop.permute.xlu0 %3661
        %3663 = vrot.lane.b32.xlu0 %v2860, 64
        %v3664 = vpop.permute.xlu0 %3663
        %3697 = vrot.lane.b32.xlu0 %v3475, 96
        %v3698 = vpop.permute.xlu0 %3697
        %3699 = vrot.lane.b32.xlu0 %v3480, 96
        %v3700 = vpop.permute.xlu0 %3699
        %3701 = vrot.lane.b32.xlu0 %v3485, 96
        %v3702 = vpop.permute.xlu0 %3701
        %3703 = vrot.lane.b32.xlu0 %v3490, 96
        %v3704 = vpop.permute.xlu0 %3703
        %3705 = vrot.lane.b32.xlu0 %v3495, 96
        %v3706 = vpop.permute.xlu0 %3705
        %3707 = vrot.lane.b32.xlu0 %v3500, 96
        %v3708 = vpop.permute.xlu0 %3707
        %3709 = vrot.lane.b32.xlu0 %v3505, 96
        %v3710 = vpop.permute.xlu0 %3709
        %3711 = vrot.lane.b32.xlu0 %v3510, 96
        %v3712 = vpop.permute.xlu0 %3711
        %3713 = vrot.lane.b32.xlu0 %v3515, 96
        %v3714 = vpop.permute.xlu0 %3713
        %3715 = vrot.lane.b32.xlu0 %v3520, 96
        %v3716 = vpop.permute.xlu0 %3715
        %3717 = vrot.lane.b32.xlu0 %v3525, 96
        %v3718 = vpop.permute.xlu0 %3717
        %3719 = vrot.lane.b32.xlu0 %v3530, 96
        %v3720 = vpop.permute.xlu0 %3719
        %3721 = vrot.lane.b32.xlu0 %v3535, 96
        %v3722 = vpop.permute.xlu0 %3721
        %3723 = vrot.lane.b32.xlu0 %v3540, 96
        %v3724 = vpop.permute.xlu0 %3723
        %3725 = vrot.lane.b32.xlu0 %v3545, 96
        %v3726 = vpop.permute.xlu0 %3725
        %3727 = vrot.lane.b32.xlu0 %v3550, 96
        %v3728 = vpop.permute.xlu0 %3727
        %v3745 = vsel %vm856, %v1389, %v3570
        %v3746 = vsel %vm856, %v1394, %v3572
        %v3747 = vsel %vm856, %v1399, %v3574
        %v3748 = vsel %vm856, %v1404, %v3576
        %v3749 = vsel %vm856, %v1409, %v3578
        %v3750 = vsel %vm856, %v1414, %v3580
        %v3751 = vsel %vm856, %v1419, %v3582
        %v3752 = vsel %vm856, %v1424, %v3584
        %v3753 = vsel %vm856, %v1429, %v3586
        %v3754 = vsel %vm856, %v1434, %v3588
        %v3755 = vsel %vm856, %v1439, %v3590
        %v3756 = vsel %vm856, %v1444, %v3592
        %v3757 = vsel %vm856, %v1449, %v3594
        %v3758 = vsel %vm856, %v1454, %v3596
        %v3759 = vsel %vm856, %v1459, %v3598
        %v3760 = vsel %vm856, %v1464, %v3600
        %vm3761 = vcmask 523264
        %v3762 = vsel %vm3761, %v3745, %v3634
        %v3763 = vsel %vm3761, %v3746, %v3636
        %v3764 = vsel %vm3761, %v3747, %v3638
        %v3765 = vsel %vm3761, %v3748, %v3640
        %v3766 = vsel %vm3761, %v3749, %v3642
        %v3767 = vsel %vm3761, %v3750, %v3644
        %v3768 = vsel %vm3761, %v3751, %v3646
        %v3769 = vsel %vm3761, %v3752, %v3648
        %v3770 = vsel %vm3761, %v3753, %v3650
        %v3771 = vsel %vm3761, %v3754, %v3652
        %v3772 = vsel %vm3761, %v3755, %v3654
        %v3773 = vsel %vm3761, %v3756, %v3656
        %v3774 = vsel %vm3761, %v3757, %v3658
        %v3775 = vsel %vm3761, %v3758, %v3660
        %v3776 = vsel %vm3761, %v3759, %v3662
        %v3777 = vsel %vm3761, %v3760, %v3664
        %vm3778 = vcmask 785408
        %v3779 = vsel %vm3778, %v3762, %v3698
        %v3780 = vsel %vm3778, %v3763, %v3700
        %v3781 = vsel %vm3778, %v3764, %v3702
        %v3782 = vsel %vm3778, %v3765, %v3704
        %v3783 = vsel %vm3778, %v3766, %v3706
        %v3784 = vsel %vm3778, %v3767, %v3708
        %v3785 = vsel %vm3778, %v3768, %v3710
        %v3786 = vsel %vm3778, %v3769, %v3712
        %v3787 = vsel %vm3778, %v3770, %v3714
        %v3788 = vsel %vm3778, %v3771, %v3716
        %v3789 = vsel %vm3778, %v3772, %v3718
        %v3790 = vsel %vm3778, %v3773, %v3720
        %v3791 = vsel %vm3778, %v3774, %v3722
        %v3792 = vsel %vm3778, %v3775, %v3724
        %v3793 = vsel %vm3778, %v3776, %v3726
        %v3794 = vsel %vm3778, %v3777, %v3728
        %v3795 = vld [vmem:[#allocation5] sm:$0xff]
        %v3796 = vld [vmem:[#allocation5 + $0x8] sm:$0xff]
        %v3797 = vld [vmem:[#allocation5 + $0x10] sm:$0xff]
        %v3798 = vld [vmem:[#allocation5 + $0x18] sm:$0xff]
        %v3799 = vld [vmem:[#allocation5 + $0x20] sm:$0xff]
        %v3800 = vld [vmem:[#allocation5 + $0x28] sm:$0xff]
        %v3801 = vld [vmem:[#allocation5 + $0x30] sm:$0xff]
        %v3802 = vld [vmem:[#allocation5 + $0x38] sm:$0xff]
        %v3803 = vld [vmem:[#allocation5 + $0x40] sm:$0xff]
        %v3804 = vld [vmem:[#allocation5 + $0x48] sm:$0xff]
        %v3805 = vld [vmem:[#allocation5 + $0x50] sm:$0xff]
        %v3806 = vld [vmem:[#allocation5 + $0x58] sm:$0xff]
        %v3807 = vld [vmem:[#allocation5 + $0x60] sm:$0xff]
        %v3808 = vld [vmem:[#allocation5 + $0x68] sm:$0xff]
        %v3809 = vld [vmem:[#allocation5 + $0x70] sm:$0xff]
        %v3810 = vld [vmem:[#allocation5 + $0x78] sm:$0xff]
        %v3811 = vld [vmem:[%s5] sm:$0x1]
        %v3813 = vlaneseq
        %v3814 = vshrl.u32 %v3813, 7
        %v3815 = vsub.s32 0, %v3814
        %v3816 = vrot.slane %v3811, %v3815
        %3818 = vmatprep.subr.mxu0 0.0
        %3819 = vmatpush1.msra.mxu0 %v3810
        %3820 = vmatprep.subr.mxu0 0.0
        %3821 = vmatpush1.msra.mxu0 %v3809
        %3822 = vmatprep.subr.mxu0 0.0
        %3823 = vmatpush1.msra.mxu0 %v3808
        %3824 = vmatprep.subr.mxu0 0.0
        %3825 = vmatpush1.msra.mxu0 %v3807
        %3826 = vmatprep.subr.mxu0 0.0
        %3827 = vmatpush1.msra.mxu0 %v3806
        %3828 = vmatprep.subr.mxu0 0.0
        %3829 = vmatpush1.msra.mxu0 %v3805
        %3830 = vmatprep.subr.mxu0 0.0
        %3831 = vmatpush1.msra.mxu0 %v3804
        %3832 = vmatprep.subr.mxu0 0.0
        %3833 = vmatpush1.msra.mxu0 %v3803
        %3834 = vmatprep.subr.mxu0 0.0
        %3835 = vmatpush1.msra.mxu0 %v3802
        %3836 = vmatprep.subr.mxu0 0.0
        %3837 = vmatpush1.msra.mxu0 %v3801
        %3838 = vmatprep.subr.mxu0 0.0
        %3839 = vmatpush1.msra.mxu0 %v3800
        %3840 = vmatprep.subr.mxu0 0.0
        %3841 = vmatpush1.msra.mxu0 %v3799
        %3842 = vmatprep.subr.mxu0 0.0
        %3843 = vmatpush1.msra.mxu0 %v3798
        %3844 = vmatprep.subr.mxu0 0.0
        %3845 = vmatpush1.msra.mxu0 %v3797
        %3846 = vmatprep.subr.mxu0 0.0
        %3847 = vmatpush1.msra.mxu0 %v3796
        %3848 = vmatprep.subr.mxu0 0.0
        %3849 = vmatpush1.msra.mxu0 %v3795
        %3850 = vmatprep.subr.mxu0 0.0
        %3851 = vmatpush2.msra.mxu0 0.0
        %3852 = vmatprep.subr.mxu0 0.0
        %3853 = vmatpush2.msra.mxu0 0.0
        %3854 = vmatprep.subr.mxu0 0.0
        %3855 = vmatpush2.msra.mxu0 0.0
        %3856 = vmatprep.subr.mxu0 0.0
        %3857 = vmatpush2.msra.mxu0 0.0
        %3858 = vmatprep.subr.mxu0 0.0
        %3859 = vmatpush2.msra.mxu0 0.0
        %3860 = vmatprep.subr.mxu0 0.0
        %3861 = vmatpush2.msra.mxu0 0.0
        %3862 = vmatprep.subr.mxu0 0.0
        %3863 = vmatpush2.msra.mxu0 0.0
        %3864 = vmatprep.subr.mxu0 0.0
        %3865 = vmatpush2.msra.mxu0 0.0
        %3866 = vmatprep.subr.mxu0 0.0
        %3867 = vmatpush2.msra.mxu0 0.0
        %3868 = vmatprep.subr.mxu0 0.0
        %3869 = vmatpush2.msra.mxu0 0.0
        %3870 = vmatprep.subr.mxu0 0.0
        %3871 = vmatpush2.msra.mxu0 0.0
        %3872 = vmatprep.subr.mxu0 0.0
        %3873 = vmatpush2.msra.mxu0 0.0
        %3874 = vmatprep.subr.mxu0 0.0
        %3875 = vmatpush2.msra.mxu0 0.0
        %3876 = vmatprep.subr.mxu0 0.0
        %3877 = vmatpush2.msra.mxu0 0.0
        %3878 = vmatprep.subr.mxu0 0.0
        %3879 = vmatpush2.msra.mxu0 0.0
        %3880 = vmatprep.subr.mxu0 0.0
        %3881 = vmatpush2.msra.mxu0 0.0
        %3882 = vmatprep.mubr.f32.mxu0 0.0
        %3883 = vmatmul.mubr.f32.gmra.mxu0 %v3779
        %v3884 = vpop.f32.mrf.mxu0
        %v3885 = vadd.f32 %v3816, %v3884
        %v3886 = vpop.f32.mrf.mxu0
        %3887 = vmatprep.mubr.f32.mxu0 0.0
        %3888 = vmatmul.mubr.f32.gmra.mxu0 %v3780
        %v3889 = vpop.f32.mrf.mxu0
        %v3890 = vadd.f32 %v3816, %v3889
        %v3891 = vpop.f32.mrf.mxu0
        %3892 = vmatprep.mubr.f32.mxu0 0.0
        %3893 = vmatmul.mubr.f32.gmra.mxu0 %v3781
        %v3894 = vpop.f32.mrf.mxu0
        %v3895 = vadd.f32 %v3816, %v3894
        %v3896 = vpop.f32.mrf.mxu0
        %3897 = vmatprep.mubr.f32.mxu0 0.0
        %3898 = vmatmul.mubr.f32.gmra.mxu0 %v3782
        %v3899 = vpop.f32.mrf.mxu0
        %v3900 = vadd.f32 %v3816, %v3899
        %v3901 = vpop.f32.mrf.mxu0
        %3902 = vmatprep.mubr.f32.mxu0 0.0
        %3903 = vmatmul.mubr.f32.gmra.mxu0 %v3783
        %v3904 = vpop.f32.mrf.mxu0
        %v3905 = vadd.f32 %v3816, %v3904
        %v3906 = vpop.f32.mrf.mxu0
        %3907 = vmatprep.mubr.f32.mxu0 0.0
        %3908 = vmatmul.mubr.f32.gmra.mxu0 %v3784
        %v3909 = vpop.f32.mrf.mxu0
        %v3910 = vadd.f32 %v3816, %v3909
        %v3911 = vpop.f32.mrf.mxu0
        %3912 = vmatprep.mubr.f32.mxu0 0.0
        %3913 = vmatmul.mubr.f32.gmra.mxu0 %v3785
        %v3914 = vpop.f32.mrf.mxu0
        %v3915 = vadd.f32 %v3816, %v3914
        %v3916 = vpop.f32.mrf.mxu0
        %3917 = vmatprep.mubr.f32.mxu0 0.0
        %3918 = vmatmul.mubr.f32.gmra.mxu0 %v3786
        %v3919 = vpop.f32.mrf.mxu0
        %v3920 = vadd.f32 %v3816, %v3919
        %v3921 = vpop.f32.mrf.mxu0
        %3922 = vmatprep.mubr.f32.mxu0 0.0
        %3923 = vmatmul.mubr.f32.gmra.mxu0 %v3787
        %v3924 = vpop.f32.mrf.mxu0
        %v3925 = vadd.f32 %v3816, %v3924
        %v3926 = vpop.f32.mrf.mxu0
        %3927 = vmatprep.mubr.f32.mxu0 0.0
        %3928 = vmatmul.mubr.f32.gmra.mxu0 %v3788
        %v3929 = vpop.f32.mrf.mxu0
        %v3930 = vadd.f32 %v3816, %v3929
        %v3931 = vpop.f32.mrf.mxu0
        %3932 = vmatprep.mubr.f32.mxu0 0.0
        %3933 = vmatmul.mubr.f32.gmra.mxu0 %v3789
        %v3934 = vpop.f32.mrf.mxu0
        %v3935 = vadd.f32 %v3816, %v3934
        %v3936 = vpop.f32.mrf.mxu0
        %3937 = vmatprep.mubr.f32.mxu0 0.0
        %3938 = vmatmul.mubr.f32.gmra.mxu0 %v3790
        %v3939 = vpop.f32.mrf.mxu0
        %v3940 = vadd.f32 %v3816, %v3939
        %v3941 = vpop.f32.mrf.mxu0
        %3942 = vmatprep.mubr.f32.mxu0 0.0
        %3943 = vmatmul.mubr.f32.gmra.mxu0 %v3791
        %v3944 = vpop.f32.mrf.mxu0
        %v3945 = vadd.f32 %v3816, %v3944
        %v3946 = vpop.f32.mrf.mxu0
        %3947 = vmatprep.mubr.f32.mxu0 0.0
        %3948 = vmatmul.mubr.f32.gmra.mxu0 %v3792
        %v3949 = vpop.f32.mrf.mxu0
        %v3950 = vadd.f32 %v3816, %v3949
        %v3951 = vpop.f32.mrf.mxu0
        %3952 = vmatprep.mubr.f32.mxu0 0.0
        %3953 = vmatmul.mubr.f32.gmra.mxu0 %v3793
        %v3954 = vpop.f32.mrf.mxu0
        %v3955 = vadd.f32 %v3816, %v3954
        %v3956 = vpop.f32.mrf.mxu0
        %3957 = vmatprep.mubr.f32.mxu0 0.0
        %3958 = vmatmul.mubr.f32.gmra.mxu0 %v3794
        %v3959 = vpop.f32.mrf.mxu0
        %v3960 = vadd.f32 %v3816, %v3959
        %v3961 = vpop.f32.mrf.mxu0
        %3962 = vdwg.mxu0
        %v3963 = vmul.f32 %v3885, %v350
        %v3964 = vmul.f32 %v3890, %v355
        %v3965 = vmul.f32 %v3895, %v360
        %v3966 = vmul.f32 %v3900, %v365
        %v3967 = vmul.f32 %v3905, %v370
        %v3968 = vmul.f32 %v3910, %v375
        %v3969 = vmul.f32 %v3915, %v380
        %v3970 = vmul.f32 %v3920, %v385
        %v3971 = vmul.f32 %v3925, %v390
        %v3972 = vmul.f32 %v3930, %v395
        %v3973 = vmul.f32 %v3935, %v400
        %v3974 = vmul.f32 %v3940, %v405
        %v3975 = vmul.f32 %v3945, %v410
        %v3976 = vmul.f32 %v3950, %v415
        %v3977 = vmul.f32 %v3955, %v420
        %v3978 = vmul.f32 %v3960, %v425
        %3979 = vst [vmem:[%s300] sm:$0xff] %v3963
        %3980 = vst [vmem:[%s300 + $0x8] sm:$0xff] %v3964
        %3981 = vst [vmem:[%s300 + $0x10] sm:$0xff] %v3965
        %3982 = vst [vmem:[%s300 + $0x18] sm:$0xff] %v3966
        %3983 = vst [vmem:[%s300 + $0x20] sm:$0xff] %v3967
        %3984 = vst [vmem:[%s300 + $0x28] sm:$0xff] %v3968
        %3985 = vst [vmem:[%s300 + $0x30] sm:$0xff] %v3969
        %3986 = vst [vmem:[%s300 + $0x38] sm:$0xff] %v3970
        %3987 = vst [vmem:[%s300 + $0x40] sm:$0xff] %v3971
        %3988 = vst [vmem:[%s300 + $0x48] sm:$0xff] %v3972
        %3989 = vst [vmem:[%s300 + $0x50] sm:$0xff] %v3973
        %3990 = vst [vmem:[%s300 + $0x58] sm:$0xff] %v3974
        %3991 = vst [vmem:[%s300 + $0x60] sm:$0xff] %v3975
        %3992 = vst [vmem:[%s300 + $0x68] sm:$0xff] %v3976
        %3993 = vst [vmem:[%s300 + $0x70] sm:$0xff] %v3977
        %3994 = vst [vmem:[%s300 + $0x78] sm:$0xff] %v3978
        %s3995 = sand.u32 %s171, 1
        %s3996 = scalar_lea.sflag [#allocation4], %s3995
        %s3997 = sand.u32 %s171, 1
        %s3998 = smul.addr %s3997, 128
        %s3999 = scalar_lea.vmem [#allocation7], %s3998
        // Predicated region
        $region53: #{tpu_custom_call.1} parent=43 // pred_check
          %p4000 = pneg %p181
        $region54: #{tpu_custom_call.1} parent=43 // pred_check_branch
          %4002 = sbr.rel (%p4000) target = $region56
        $region55: #{tpu_custom_call.1} parent=43 // pred_region
          %s4004 = ssub.s32 2048, 2048
          %4005 = vsyncadd %s3996, %s4004
          %s4006 = smul.addr %s22, 16
          %s4007 = smul.addr %s4006, 128
          %s4008 = scalar_lea.hbm %s6, %s4007
          %s4009 = sshll.u32 %s3999, 4
          %s4010 = int_to_ptr.vmem [resolvable:$true] %s4009
          %4015 = dma.vmem_to_hbm [thread:$0]  %s4010, 2048, %s4008, %s3996, 128, 128, 8
        $region56: #{tpu_custom_call.1} parent=43 // pred_fallthru
          _
      $region44: #{tpu_custom_call.1} parent=5 // pred_fallthru
        _
      %p4016 = scmp.le.s32.totalorder 2, %s17
      // Predicated region
      $region57: #{tpu_custom_call.1} parent=5 // pred_check
        %p4017 = pneg %p4016
      $region58: #{tpu_custom_call.1} parent=5 // pred_check_branch
        %4019 = sbr.rel (%p4017) target = $region60
      $region59: #{tpu_custom_call.1} parent=5 // pred_region
        %s4020 = ssub.s32 %s17, 2
        // Predicated region
        $region61: #{tpu_custom_call.1} parent=59 // pred_check
          %p4021 = pneg %p187
        $region62: #{tpu_custom_call.1} parent=59 // pred_check_branch
          %4023 = sbr.rel (%p4021) target = $region64
        $region63: #{tpu_custom_call.1} parent=59 // pred_region
          %s4024 = sand.u32 %s172, 1
          %s4025 = scalar_lea.sflag [#allocation4], %s4024
          %s4026 = sand.u32 %s172, 1
          %s4027 = smul.addr %s4026, 128
          %s4028 = scalar_lea.vmem [#allocation7], %s4027
          %4029 = dma.done %s4025, 2048
        $region64: #{tpu_custom_call.1} parent=59 // pred_fallthru
          _
      $region60: #{tpu_custom_call.1} parent=5 // pred_fallthru
        _
    $region6: #{tpu_custom_call.1} parent=1 // loop_footer
      %s21 = sadd.s32 1, %s17
    $region7: #{tpu_custom_call.1} parent=1 // loop_footer_branch
      %16 = sbr.rel target = $region3
    $region8: #{tpu_custom_call.1} parent=1 // loop_exit
      _
    %4030 = vsyncpa [#allocation3], 1
    %s4031 = scalar_lea.sflag [#allocation3], 1
    %4032 = vsyncpa %s4031, 1
    %4033 = vsyncpa [#allocation6], 1
    %4034 = vsyncpa [#allocation4], 1
    %s4035 = scalar_lea.sflag [#allocation4], 1
    %4036 = vsyncpa %s4035, 1

</llo_original>
